<compile_context>
chip_gen: v7x
topology: tpu7x:2x2x1
jax: 0.10.0
libtpu: 0.0.40
codegen_flags: <defaults>
</compile_context>

<pallas_src>
import functools

import jax
import jax.numpy as jnp
from jax import lax
from jax.experimental import pallas as pl
from jax.experimental.pallas import tpu as pltpu

NEG_SLOPE = 0.01   # F.leaky_relu default negative slope
NEG_FILL = -1e30   # mask fill; representable in both f32 and bf16


# ---------------------------------------------------------------------------
# Kernel 1: node projection + per-head attention logits (O(N) data, un-gridded)
# ---------------------------------------------------------------------------
def gat_project_kernel(h_ref, wfc_ref, asrc_ref, adst_ref,
                       z_ref, esrcT_ref, edst_ref, *, num_heads, head_dim):
    # z = h @ W_fc  (all heads fused along the lane dim)                     (N, D)
    z = jnp.dot(h_ref[...], wfc_ref[...], preferred_element_type=jnp.float32)

    # Per-head attention logits via the block-diagonal (D, H) projections.
    # e_src produced lane-major (H, N) directly through dot dimension numbers.
    e_srcT = lax.dot_general(asrc_ref[...], z, (((0,), (1,)), ((), ())),
                             preferred_element_type=jnp.float32)              # (H, N)
    e_dst = jnp.dot(z, adst_ref[...], preferred_element_type=jnp.float32)     # (N, H)

    # Re-emit everything head-major (head on the leading axis) so the aggregation
    # kernel's fori_loop only needs free dynamic leading-axis indices.
    n = z.shape[0]
    ones = jnp.ones((n, 1), dtype=jnp.float32)
    for k in range(num_heads):
        zk = z[:, k * head_dim:(k + 1) * head_dim]                            # (N, d)
        # Appended ones column: dot(p, z_ext) later yields the weighted sum AND the
        # softmax denominator in one MXU pass, both accumulated in f32.
        z_ref[k] = jnp.concatenate([zk, ones], axis=-1).astype(z_ref.dtype)   # (N, d+1)
        esrcT_ref[k] = e_srcT[k:k + 1, :].astype(esrcT_ref.dtype)             # (1, N)
        edst_ref[k] = e_dst[:, k:k + 1].astype(edst_ref.dtype)                # (N, 1)


# ---------------------------------------------------------------------------
# Kernel 2: masked softmax + aggregation, gridded over destination-row blocks
# ---------------------------------------------------------------------------
def gat_aggregate_kernel(z_ref, esrcT_ref, edst_ref, adj_ref, snorm_ref, out_ref,
                         *, num_heads, head_dim):
    cdt = z_ref.dtype
    mask = adj_ref[...] != 0                     # (TM, N) bool from int8/bool adjacency
    snorm = snorm_ref[...]                       # (TM, 1) f32 graph-norm factors
    neg_fill = jnp.asarray(NEG_FILL, dtype=cdt)

    def head_body(k, carry):
        e_src = esrcT_ref[k]                     # (1, N)   compute dtype
        e_dst = edst_ref[k]                      # (TM, 1)  compute dtype
        scores = e_dst + e_src                   # (TM, N)  logits for edges j -> i
        scores = jnp.maximum(scores, NEG_SLOPE * scores)            # leaky_relu
        # Mask folded into the fill only; masked entries underflow to exactly 0 after
        # exp for any row with >= 1 edge (isolated rows -> uniform attention).
        masked = jnp.where(mask, scores, neg_fill)
        row_max = jnp.max(masked, axis=-1, keepdims=True)
        p = jnp.exp(masked - row_max)            # (TM, N) compute dtype

        # One MXU dot: columns [0:d] = unnormalized weighted sum, column d = softmax
        # denominator (from the ones column), accumulated in f32 by the MXU.
        r = jnp.dot(p, z_ref[k], preferred_element_type=jnp.float32)   # (TM, d+1)
        num = r[:, :head_dim]
        denom = r[:, head_dim:head_dim + 1]
        h_k = num * pl.reciprocal(denom) * snorm                        # exact recip + graph norm
        out_ref[k] = jnp.maximum(h_k, 0.0).astype(out_ref.dtype)        # relu
        return carry

    lax.fori_loop(0, num_heads, head_body, 0)


# ---------------------------------------------------------------------------
# Wrapper
# ---------------------------------------------------------------------------
def gat_head_forward(h, w_fc, a_src, a_dst, adj, snorm_n, *, num_heads,
                     tm=128, compute_dtype=jnp.bfloat16,
                     vmem_limit_bytes=48 * 1024 * 1024):
    """GAT head-layer forward.

    h:(N,in_dim) f32, w_fc:(in_dim,H*d) f32, a_src/a_dst:(H,d) f32,
    adj:(N,N) int8/bool (nonzero = edge src j -> dst i) -- must already be narrow,
    snorm_n:(N,1) f32.

    compute_dtype: dtype of the per-edge score/softmax elementwise math.  bf16
      (default) is the fast path on v6e/v7x; pass jnp.float32 on v5e.
    tm / vmem_limit_bytes: raise tm to 256-512 and the limit toward ~96 MiB for
      large N on v5e/v6e (128 MiB VMEM); keep defaults on v7x (64 MiB VMEM).
    """
    N, _ = h.shape
    D = w_fc.shape[1]
    assert D % num_heads == 0
    d = D // num_heads
    if jnp.issubdtype(adj.dtype, jnp.floating):
        raise ValueError("pass the adjacency as int8/bool; a per-call float->int8 cast "
                         "re-reads the full O(N^2) array in HBM")

    # (D, H) block-diagonal attention projections: per-head logits become one wide
    # MXU matmul instead of H skinny (N,d)@(d,1) matmuls.
    eye_h = jnp.eye(num_heads, dtype=w_fc.dtype)
    A_src = (a_src[:, :, None] * eye_h[:, None, :]).reshape(D, num_heads)
    A_dst = (a_dst[:, :, None] * eye_h[:, None, :]).reshape(D, num_heads)

    vmem = pl.BlockSpec(memory_space=pltpu.MemorySpace.VMEM)
    z_ext, e_srcT, e_dst = pl.pallas_call(
        functools.partial(gat_project_kernel, num_heads=num_heads, head_dim=d),
        out_shape=(jax.ShapeDtypeStruct((num_heads, N, d + 1), compute_dtype),
                   jax.ShapeDtypeStruct((num_heads, 1, N), compute_dtype),
                   jax.ShapeDtypeStruct((num_heads, N, 1), compute_dtype)),
        in_specs=[vmem] * 4,
        out_specs=(vmem, vmem, vmem),
    )(h, w_fc, A_src, A_dst)

    tm = min(tm, N)                              # full-array block when N is small
    grid = (pl.cdiv(N, tm),)
    kernel = functools.partial(gat_aggregate_kernel, num_heads=num_heads, head_dim=d)

    out_hm = pl.pallas_call(
        kernel,
        out_shape=jax.ShapeDtypeStruct((num_heads, N, d), jnp.float32),
        grid_spec=pltpu.PrefetchScalarGridSpec(
            num_scalar_prefetch=0,
            grid=grid,
            in_specs=[
                pl.BlockSpec((num_heads, N, d + 1), lambda i: (0, 0, 0)),  # z (+ones): resident
                pl.BlockSpec((num_heads, 1, N), lambda i: (0, 0, 0)),      # e_src^T: resident
                pl.BlockSpec((num_heads, tm, 1), lambda i: (0, i, 0)),     # e_dst row block
                pl.BlockSpec((tm, N), lambda i: (i, 0)),                   # adj row block (int8)
                pl.BlockSpec((tm, 1), lambda i: (i, 0)),                   # snorm row block
            ],
            out_specs=pl.BlockSpec((num_heads, tm, d), lambda i: (0, i, 0)),
        ),
        compiler_params=pltpu.CompilerParams(
            # Row blocks are independent -> megacore sharding on v7x (pick tm <= N/4
            # there so each core still pipelines its adj DMA); no-op on v5e/v6e.
            dimension_semantics=("parallel",),
            vmem_limit_bytes=vmem_limit_bytes,
        ),
    )(z_ext, e_srcT, e_dst, adj, snorm_n)

    # Layout plumbing only, O(N*D): head-major (H, N, d) -> (N, H*d).
    return jnp.transpose(out_hm, (1, 0, 2)).reshape(N, D)


# ---------------------------------------------------------------------------
# Pure-JAX reference (f32)
# ---------------------------------------------------------------------------
def reference_forward(h, w_fc, a_src, a_dst, adj, snorm_n, *, num_heads):
    D = w_fc.shape[1]
    d = D // num_heads
    z = h @ w_fc
    mask = adj > 0
    outs = []
    for k in range(num_heads):
        zk = z[:, k * d:(k + 1) * d]
        e_src = zk @ a_src[k]
        e_dst = zk @ a_dst[k]
        scores = e_dst[:, None] + e_src[None, :]
        scores = jnp.where(scores >= 0.0, scores, NEG_SLOPE * scores)
        masked = jnp.where(mask, scores, -1e30)
        p = jnp.exp(masked - jnp.max(masked, axis=-1, keepdims=True))
        p = jnp.where(mask, p, 0.0)
        alpha = p / jnp.sum(p, axis=-1, keepdims=True)
        outs.append(alpha @ zk)
    out = jnp.concatenate(outs, axis=-1) * snorm_n
    return jnp.maximum(out, 0.0)


if __name__ == "__main__":
    # Small shapes consistent with the module; N chosen to exercise >1 row block.
    N = 256
    in_dim = 32
    out_dim_total = 64
    num_heads = 8
    d = out_dim_total // num_heads           # per-head out_dim = 8
    D = out_dim_total

    key = jax.random.PRNGKey(0)
    k_h, k_fc, k_att, k_adj, k_sn = jax.random.split(key, 5)

    h = jax.random.normal(k_h, (N, in_dim), dtype=jnp.float32)

    # deterministic "sampled" Bayesian weights (all heads fused along columns)
    w_fc = jax.random.normal(k_fc, (in_dim, D), dtype=jnp.float32) * 0.1
    a_full = jax.random.normal(k_att, (num_heads, 2 * d), dtype=jnp.float32) * 0.1
    a_src, a_dst = a_full[:, :d], a_full[:, d:]

    # Sparse random adjacency stored as int8 upstream (never cast per call),
    # with guaranteed self-loops (isolated rows would be NaN in the reference).
    adj = (jax.random.uniform(k_adj, (N, N)) < 0.05).astype(jnp.int8)
    adj = jnp.maximum(adj, jnp.eye(N, dtype=jnp.int8))

    # graph-norm factors
    snorm_n = jax.random.uniform(k_sn, (N, 1), minval=0.2, maxval=1.0,
                                 dtype=jnp.float32)

    ref = reference_forward(h, w_fc, a_src, a_dst, adj, snorm_n, num_heads=num_heads)

    # f32 compute path (recommended on v5e): matches the f32 reference tightly.
    out_f32 = gat_head_forward(h, w_fc, a_src, a_dst, adj, snorm_n,
                               num_heads=num_heads, compute_dtype=jnp.float32)
    out_f32 = jax.block_until_ready(out_f32)
    assert out_f32.shape == (N, D)
    assert jnp.allclose(out_f32, ref, atol=1e-4, rtol=1e-4), "f32 path mismatch vs reference"

    # bf16 score/softmax path (fast path for v6e/v7x); accumulations stay f32, so
    # only bf16 rounding of scores / probabilities / z separates it from the reference.
    out_bf16 = gat_head_forward(h, w_fc, a_src, a_dst, adj, snorm_n,
                                num_heads=num_heads, compute_dtype=jnp.bfloat16)
    out_bf16 = jax.block_until_ready(out_bf16)
    err = jnp.abs(out_bf16 - ref)
    assert float(jnp.max(err)) < 5e-2 and float(jnp.mean(err)) < 5e-3, \
        "bf16 path mismatch vs reference"

    print("KERNEL_OK")
</pallas_src>

<mosaic_0001>
module attributes {stable_mosaic.version = 11 : i64} {
  func.func @gat_project_kernel(%arg0: memref<256x32xf32, #tpu.memory_space<vmem>>, %arg1: memref<32x64xf32, #tpu.memory_space<vmem>>, %arg2: memref<64x8xf32, #tpu.memory_space<vmem>>, %arg3: memref<64x8xf32, #tpu.memory_space<vmem>>, %arg4: memref<8x256x9xf32, #tpu.memory_space<vmem>>, %arg5: memref<8x1x256xf32, #tpu.memory_space<vmem>>, %arg6: memref<8x256x1xf32, #tpu.memory_space<vmem>>) attributes {dimension_semantics = [], scalar_prefetch = 0 : i64, scratch_operands = 0 : i64, tpu.core_type = #tpu.core_type<tc>} {
    %c0 = arith.constant 0 : index
    %c0_0 = arith.constant 0 : index
    %0 = vector.load %arg0[%c0, %c0_0] : memref<256x32xf32, #tpu.memory_space<vmem>>, vector<256x32xf32>
    %c0_1 = arith.constant 0 : index
    %c0_2 = arith.constant 0 : index
    %1 = vector.load %arg1[%c0_1, %c0_2] : memref<32x64xf32, #tpu.memory_space<vmem>>, vector<32x64xf32>
    %cst = arith.constant dense<0.000000e+00> : vector<256x64xf32>
    %2 = tpu.matmul %0, %1, %cst {dimension_numbers = #tpu.dot_dimension_numbers<[1], [0], [0], [1], [0, 0, 1, 1], [], []>} : vector<256x32xf32>, vector<32x64xf32>, vector<256x64xf32> -> vector<256x64xf32>
    %c0_3 = arith.constant 0 : index
    %c0_4 = arith.constant 0 : index
    %3 = vector.load %arg2[%c0_3, %c0_4] : memref<64x8xf32, #tpu.memory_space<vmem>>, vector<64x8xf32>
    %cst_5 = arith.constant dense<0.000000e+00> : vector<8x256xf32>
    %4 = tpu.matmul %3, %2, %cst_5 {dimension_numbers = #tpu.dot_dimension_numbers<[0], [1], [1], [0], [0, 1, 1, 0], [], []>} : vector<64x8xf32>, vector<256x64xf32>, vector<8x256xf32> -> vector<8x256xf32>
    %c0_6 = arith.constant 0 : index
    %c0_7 = arith.constant 0 : index
    %5 = vector.load %arg3[%c0_6, %c0_7] : memref<64x8xf32, #tpu.memory_space<vmem>>, vector<64x8xf32>
    %cst_8 = arith.constant dense<0.000000e+00> : vector<256x8xf32>
    %6 = tpu.matmul %2, %5, %cst_8 {dimension_numbers = #tpu.dot_dimension_numbers<[1], [0], [0], [1], [0, 0, 1, 1], [], []>} : vector<256x64xf32>, vector<64x8xf32>, vector<256x8xf32> -> vector<256x8xf32>
    %cst_9 = arith.constant 1.000000e+00 : f32
    %7 = vector.broadcast %cst_9 : f32 to vector<256x1xf32>
    %8 = vector.extract_strided_slice %2 {offsets = [0, 0], sizes = [256, 8], strides = [1, 1]} : vector<256x64xf32> to vector<256x8xf32>
    %9 = tpu.concatenate %8, %7 in 1 : vector<256x8xf32>, vector<256x1xf32> -> vector<256x9xf32>
    %c0_10 = arith.constant 0 : index
    %c0_11 = arith.constant 0 : index
    %c0_12 = arith.constant 0 : index
    %10 = vector.load %arg4[%c0_10, %c0_11, %c0_12] : memref<8x256x9xf32, #tpu.memory_space<vmem>>, vector<1x256x9xf32>
    %11 = vector.shape_cast %10 : vector<1x256x9xf32> to vector<256x9xf32>
    %12 = vector.shape_cast %9 : vector<256x9xf32> to vector<1x256x9xf32>
    tpu.vector_store %arg4[%c0_10, %c0_11, %c0_12], %12 {strides = array<i32>} : memref<8x256x9xf32, #tpu.memory_space<vmem>>, vector<1x256x9xf32>,
    %13 = vector.extract_strided_slice %4 {offsets = [0, 0], sizes = [1, 256], strides = [1, 1]} : vector<8x256xf32> to vector<1x256xf32>
    %c0_13 = arith.constant 0 : index
    %c0_14 = arith.constant 0 : index
    %c0_15 = arith.constant 0 : index
    %14 = vector.load %arg5[%c0_13, %c0_14, %c0_15] : memref<8x1x256xf32, #tpu.memory_space<vmem>>, vector<1x1x256xf32>
    %15 = vector.shape_cast %14 : vector<1x1x256xf32> to vector<1x256xf32>
    %16 = vector.shape_cast %13 : vector<1x256xf32> to vector<1x1x256xf32>
    tpu.vector_store %arg5[%c0_13, %c0_14, %c0_15], %16 {strides = array<i32>} : memref<8x1x256xf32, #tpu.memory_space<vmem>>, vector<1x1x256xf32>,
    %17 = vector.extract_strided_slice %6 {offsets = [0, 0], sizes = [256, 1], strides = [1, 1]} : vector<256x8xf32> to vector<256x1xf32>
    %c0_16 = arith.constant 0 : index
    %c0_17 = arith.constant 0 : index
    %c0_18 = arith.constant 0 : index
    %18 = vector.load %arg6[%c0_16, %c0_17, %c0_18] : memref<8x256x1xf32, #tpu.memory_space<vmem>>, vector<1x256x1xf32>
    %19 = vector.shape_cast %18 : vector<1x256x1xf32> to vector<256x1xf32>
    %20 = vector.shape_cast %17 : vector<256x1xf32> to vector<1x256x1xf32>
    tpu.vector_store %arg6[%c0_16, %c0_17, %c0_18], %20 {strides = array<i32>} : memref<8x256x1xf32, #tpu.memory_space<vmem>>, vector<1x256x1xf32>,
    %21 = vector.extract_strided_slice %2 {offsets = [0, 8], sizes = [256, 8], strides = [1, 1]} : vector<256x64xf32> to vector<256x8xf32>
    %22 = tpu.concatenate %21, %7 in 1 : vector<256x8xf32>, vector<256x1xf32> -> vector<256x9xf32>
    %c1 = arith.constant 1 : index
    %c0_19 = arith.constant 0 : index
    %c0_20 = arith.constant 0 : index
    %23 = vector.load %arg4[%c1, %c0_19, %c0_20] : memref<8x256x9xf32, #tpu.memory_space<vmem>>, vector<1x256x9xf32>
    %24 = vector.shape_cast %23 : vector<1x256x9xf32> to vector<256x9xf32>
    %25 = vector.shape_cast %22 : vector<256x9xf32> to vector<1x256x9xf32>
    tpu.vector_store %arg4[%c1, %c0_19, %c0_20], %25 {strides = array<i32>} : memref<8x256x9xf32, #tpu.memory_space<vmem>>, vector<1x256x9xf32>,
    %26 = vector.extract_strided_slice %4 {offsets = [1, 0], sizes = [1, 256], strides = [1, 1]} : vector<8x256xf32> to vector<1x256xf32>
    %c1_21 = arith.constant 1 : index
    %c0_22 = arith.constant 0 : index
    %c0_23 = arith.constant 0 : index
    %27 = vector.load %arg5[%c1_21, %c0_22, %c0_23] : memref<8x1x256xf32, #tpu.memory_space<vmem>>, vector<1x1x256xf32>
    %28 = vector.shape_cast %27 : vector<1x1x256xf32> to vector<1x256xf32>
    %29 = vector.shape_cast %26 : vector<1x256xf32> to vector<1x1x256xf32>
    tpu.vector_store %arg5[%c1_21, %c0_22, %c0_23], %29 {strides = array<i32>} : memref<8x1x256xf32, #tpu.memory_space<vmem>>, vector<1x1x256xf32>,
    %30 = vector.extract_strided_slice %6 {offsets = [0, 1], sizes = [256, 1], strides = [1, 1]} : vector<256x8xf32> to vector<256x1xf32>
    %c1_24 = arith.constant 1 : index
    %c0_25 = arith.constant 0 : index
    %c0_26 = arith.constant 0 : index
    %31 = vector.load %arg6[%c1_24, %c0_25, %c0_26] : memref<8x256x1xf32, #tpu.memory_space<vmem>>, vector<1x256x1xf32>
    %32 = vector.shape_cast %31 : vector<1x256x1xf32> to vector<256x1xf32>
    %33 = vector.shape_cast %30 : vector<256x1xf32> to vector<1x256x1xf32>
    tpu.vector_store %arg6[%c1_24, %c0_25, %c0_26], %33 {strides = array<i32>} : memref<8x256x1xf32, #tpu.memory_space<vmem>>, vector<1x256x1xf32>,
    %34 = vector.extract_strided_slice %2 {offsets = [0, 16], sizes = [256, 8], strides = [1, 1]} : vector<256x64xf32> to vector<256x8xf32>
    %35 = tpu.concatenate %34, %7 in 1 : vector<256x8xf32>, vector<256x1xf32> -> vector<256x9xf32>
    %c2 = arith.constant 2 : index
    %c0_27 = arith.constant 0 : index
    %c0_28 = arith.constant 0 : index
    %36 = vector.load %arg4[%c2, %c0_27, %c0_28] : memref<8x256x9xf32, #tpu.memory_space<vmem>>, vector<1x256x9xf32>
    %37 = vector.shape_cast %36 : vector<1x256x9xf32> to vector<256x9xf32>
    %38 = vector.shape_cast %35 : vector<256x9xf32> to vector<1x256x9xf32>
    tpu.vector_store %arg4[%c2, %c0_27, %c0_28], %38 {strides = array<i32>} : memref<8x256x9xf32, #tpu.memory_space<vmem>>, vector<1x256x9xf32>,
    %39 = vector.extract_strided_slice %4 {offsets = [2, 0], sizes = [1, 256], strides = [1, 1]} : vector<8x256xf32> to vector<1x256xf32>
    %c2_29 = arith.constant 2 : index
    %c0_30 = arith.constant 0 : index
    %c0_31 = arith.constant 0 : index
    %40 = vector.load %arg5[%c2_29, %c0_30, %c0_31] : memref<8x1x256xf32, #tpu.memory_space<vmem>>, vector<1x1x256xf32>
    %41 = vector.shape_cast %40 : vector<1x1x256xf32> to vector<1x256xf32>
    %42 = vector.shape_cast %39 : vector<1x256xf32> to vector<1x1x256xf32>
    tpu.vector_store %arg5[%c2_29, %c0_30, %c0_31], %42 {strides = array<i32>} : memref<8x1x256xf32, #tpu.memory_space<vmem>>, vector<1x1x256xf32>,
    %43 = vector.extract_strided_slice %6 {offsets = [0, 2], sizes = [256, 1], strides = [1, 1]} : vector<256x8xf32> to vector<256x1xf32>
    %c2_32 = arith.constant 2 : index
    %c0_33 = arith.constant 0 : index
    %c0_34 = arith.constant 0 : index
    %44 = vector.load %arg6[%c2_32, %c0_33, %c0_34] : memref<8x256x1xf32, #tpu.memory_space<vmem>>, vector<1x256x1xf32>
    %45 = vector.shape_cast %44 : vector<1x256x1xf32> to vector<256x1xf32>
    %46 = vector.shape_cast %43 : vector<256x1xf32> to vector<1x256x1xf32>
    tpu.vector_store %arg6[%c2_32, %c0_33, %c0_34], %46 {strides = array<i32>} : memref<8x256x1xf32, #tpu.memory_space<vmem>>, vector<1x256x1xf32>,
    %47 = vector.extract_strided_slice %2 {offsets = [0, 24], sizes = [256, 8], strides = [1, 1]} : vector<256x64xf32> to vector<256x8xf32>
    %48 = tpu.concatenate %47, %7 in 1 : vector<256x8xf32>, vector<256x1xf32> -> vector<256x9xf32>
    %c3 = arith.constant 3 : index
    %c0_35 = arith.constant 0 : index
    %c0_36 = arith.constant 0 : index
    %49 = vector.load %arg4[%c3, %c0_35, %c0_36] : memref<8x256x9xf32, #tpu.memory_space<vmem>>, vector<1x256x9xf32>
    %50 = vector.shape_cast %49 : vector<1x256x9xf32> to vector<256x9xf32>
    %51 = vector.shape_cast %48 : vector<256x9xf32> to vector<1x256x9xf32>
    tpu.vector_store %arg4[%c3, %c0_35, %c0_36], %51 {strides = array<i32>} : memref<8x256x9xf32, #tpu.memory_space<vmem>>, vector<1x256x9xf32>,
    %52 = vector.extract_strided_slice %4 {offsets = [3, 0], sizes = [1, 256], strides = [1, 1]} : vector<8x256xf32> to vector<1x256xf32>
    %c3_37 = arith.constant 3 : index
    %c0_38 = arith.constant 0 : index
    %c0_39 = arith.constant 0 : index
    %53 = vector.load %arg5[%c3_37, %c0_38, %c0_39] : memref<8x1x256xf32, #tpu.memory_space<vmem>>, vector<1x1x256xf32>
    %54 = vector.shape_cast %53 : vector<1x1x256xf32> to vector<1x256xf32>
    %55 = vector.shape_cast %52 : vector<1x256xf32> to vector<1x1x256xf32>
    tpu.vector_store %arg5[%c3_37, %c0_38, %c0_39], %55 {strides = array<i32>} : memref<8x1x256xf32, #tpu.memory_space<vmem>>, vector<1x1x256xf32>,
    %56 = vector.extract_strided_slice %6 {offsets = [0, 3], sizes = [256, 1], strides = [1, 1]} : vector<256x8xf32> to vector<256x1xf32>
    %c3_40 = arith.constant 3 : index
    %c0_41 = arith.constant 0 : index
    %c0_42 = arith.constant 0 : index
    %57 = vector.load %arg6[%c3_40, %c0_41, %c0_42] : memref<8x256x1xf32, #tpu.memory_space<vmem>>, vector<1x256x1xf32>
    %58 = vector.shape_cast %57 : vector<1x256x1xf32> to vector<256x1xf32>
    %59 = vector.shape_cast %56 : vector<256x1xf32> to vector<1x256x1xf32>
    tpu.vector_store %arg6[%c3_40, %c0_41, %c0_42], %59 {strides = array<i32>} : memref<8x256x1xf32, #tpu.memory_space<vmem>>, vector<1x256x1xf32>,
    %60 = vector.extract_strided_slice %2 {offsets = [0, 32], sizes = [256, 8], strides = [1, 1]} : vector<256x64xf32> to vector<256x8xf32>
    %61 = tpu.concatenate %60, %7 in 1 : vector<256x8xf32>, vector<256x1xf32> -> vector<256x9xf32>
    %c4 = arith.constant 4 : index
    %c0_43 = arith.constant 0 : index
    %c0_44 = arith.constant 0 : index
    %62 = vector.load %arg4[%c4, %c0_43, %c0_44] : memref<8x256x9xf32, #tpu.memory_space<vmem>>, vector<1x256x9xf32>
    %63 = vector.shape_cast %62 : vector<1x256x9xf32> to vector<256x9xf32>
    %64 = vector.shape_cast %61 : vector<256x9xf32> to vector<1x256x9xf32>
    tpu.vector_store %arg4[%c4, %c0_43, %c0_44], %64 {strides = array<i32>} : memref<8x256x9xf32, #tpu.memory_space<vmem>>, vector<1x256x9xf32>,
    %65 = vector.extract_strided_slice %4 {offsets = [4, 0], sizes = [1, 256], strides = [1, 1]} : vector<8x256xf32> to vector<1x256xf32>
    %c4_45 = arith.constant 4 : index
    %c0_46 = arith.constant 0 : index
    %c0_47 = arith.constant 0 : index
    %66 = vector.load %arg5[%c4_45, %c0_46, %c0_47] : memref<8x1x256xf32, #tpu.memory_space<vmem>>, vector<1x1x256xf32>
    %67 = vector.shape_cast %66 : vector<1x1x256xf32> to vector<1x256xf32>
    %68 = vector.shape_cast %65 : vector<1x256xf32> to vector<1x1x256xf32>
    tpu.vector_store %arg5[%c4_45, %c0_46, %c0_47], %68 {strides = array<i32>} : memref<8x1x256xf32, #tpu.memory_space<vmem>>, vector<1x1x256xf32>,
    %69 = vector.extract_strided_slice %6 {offsets = [0, 4], sizes = [256, 1], strides = [1, 1]} : vector<256x8xf32> to vector<256x1xf32>
    %c4_48 = arith.constant 4 : index
    %c0_49 = arith.constant 0 : index
    %c0_50 = arith.constant 0 : index
    %70 = vector.load %arg6[%c4_48, %c0_49, %c0_50] : memref<8x256x1xf32, #tpu.memory_space<vmem>>, vector<1x256x1xf32>
    %71 = vector.shape_cast %70 : vector<1x256x1xf32> to vector<256x1xf32>
    %72 = vector.shape_cast %69 : vector<256x1xf32> to vector<1x256x1xf32>
    tpu.vector_store %arg6[%c4_48, %c0_49, %c0_50], %72 {strides = array<i32>} : memref<8x256x1xf32, #tpu.memory_space<vmem>>, vector<1x256x1xf32>,
    %73 = vector.extract_strided_slice %2 {offsets = [0, 40], sizes = [256, 8], strides = [1, 1]} : vector<256x64xf32> to vector<256x8xf32>
    %74 = tpu.concatenate %73, %7 in 1 : vector<256x8xf32>, vector<256x1xf32> -> vector<256x9xf32>
    %c5 = arith.constant 5 : index
    %c0_51 = arith.constant 0 : index
    %c0_52 = arith.constant 0 : index
    %75 = vector.load %arg4[%c5, %c0_51, %c0_52] : memref<8x256x9xf32, #tpu.memory_space<vmem>>, vector<1x256x9xf32>
    %76 = vector.shape_cast %75 : vector<1x256x9xf32> to vector<256x9xf32>
    %77 = vector.shape_cast %74 : vector<256x9xf32> to vector<1x256x9xf32>
    tpu.vector_store %arg4[%c5, %c0_51, %c0_52], %77 {strides = array<i32>} : memref<8x256x9xf32, #tpu.memory_space<vmem>>, vector<1x256x9xf32>,
    %78 = vector.extract_strided_slice %4 {offsets = [5, 0], sizes = [1, 256], strides = [1, 1]} : vector<8x256xf32> to vector<1x256xf32>
    %c5_53 = arith.constant 5 : index
    %c0_54 = arith.constant 0 : index
    %c0_55 = arith.constant 0 : index
    %79 = vector.load %arg5[%c5_53, %c0_54, %c0_55] : memref<8x1x256xf32, #tpu.memory_space<vmem>>, vector<1x1x256xf32>
    %80 = vector.shape_cast %79 : vector<1x1x256xf32> to vector<1x256xf32>
    %81 = vector.shape_cast %78 : vector<1x256xf32> to vector<1x1x256xf32>
    tpu.vector_store %arg5[%c5_53, %c0_54, %c0_55], %81 {strides = array<i32>} : memref<8x1x256xf32, #tpu.memory_space<vmem>>, vector<1x1x256xf32>,
    %82 = vector.extract_strided_slice %6 {offsets = [0, 5], sizes = [256, 1], strides = [1, 1]} : vector<256x8xf32> to vector<256x1xf32>
    %c5_56 = arith.constant 5 : index
    %c0_57 = arith.constant 0 : index
    %c0_58 = arith.constant 0 : index
    %83 = vector.load %arg6[%c5_56, %c0_57, %c0_58] : memref<8x256x1xf32, #tpu.memory_space<vmem>>, vector<1x256x1xf32>
    %84 = vector.shape_cast %83 : vector<1x256x1xf32> to vector<256x1xf32>
    %85 = vector.shape_cast %82 : vector<256x1xf32> to vector<1x256x1xf32>
    tpu.vector_store %arg6[%c5_56, %c0_57, %c0_58], %85 {strides = array<i32>} : memref<8x256x1xf32, #tpu.memory_space<vmem>>, vector<1x256x1xf32>,
    %86 = vector.extract_strided_slice %2 {offsets = [0, 48], sizes = [256, 8], strides = [1, 1]} : vector<256x64xf32> to vector<256x8xf32>
    %87 = tpu.concatenate %86, %7 in 1 : vector<256x8xf32>, vector<256x1xf32> -> vector<256x9xf32>
    %c6 = arith.constant 6 : index
    %c0_59 = arith.constant 0 : index
    %c0_60 = arith.constant 0 : index
    %88 = vector.load %arg4[%c6, %c0_59, %c0_60] : memref<8x256x9xf32, #tpu.memory_space<vmem>>, vector<1x256x9xf32>
    %89 = vector.shape_cast %88 : vector<1x256x9xf32> to vector<256x9xf32>
    %90 = vector.shape_cast %87 : vector<256x9xf32> to vector<1x256x9xf32>
    tpu.vector_store %arg4[%c6, %c0_59, %c0_60], %90 {strides = array<i32>} : memref<8x256x9xf32, #tpu.memory_space<vmem>>, vector<1x256x9xf32>,
    %91 = vector.extract_strided_slice %4 {offsets = [6, 0], sizes = [1, 256], strides = [1, 1]} : vector<8x256xf32> to vector<1x256xf32>
    %c6_61 = arith.constant 6 : index
    %c0_62 = arith.constant 0 : index
    %c0_63 = arith.constant 0 : index
    %92 = vector.load %arg5[%c6_61, %c0_62, %c0_63] : memref<8x1x256xf32, #tpu.memory_space<vmem>>, vector<1x1x256xf32>
    %93 = vector.shape_cast %92 : vector<1x1x256xf32> to vector<1x256xf32>
    %94 = vector.shape_cast %91 : vector<1x256xf32> to vector<1x1x256xf32>
    tpu.vector_store %arg5[%c6_61, %c0_62, %c0_63], %94 {strides = array<i32>} : memref<8x1x256xf32, #tpu.memory_space<vmem>>, vector<1x1x256xf32>,
    %95 = vector.extract_strided_slice %6 {offsets = [0, 6], sizes = [256, 1], strides = [1, 1]} : vector<256x8xf32> to vector<256x1xf32>
    %c6_64 = arith.constant 6 : index
    %c0_65 = arith.constant 0 : index
    %c0_66 = arith.constant 0 : index
    %96 = vector.load %arg6[%c6_64, %c0_65, %c0_66] : memref<8x256x1xf32, #tpu.memory_space<vmem>>, vector<1x256x1xf32>
    %97 = vector.shape_cast %96 : vector<1x256x1xf32> to vector<256x1xf32>
    %98 = vector.shape_cast %95 : vector<256x1xf32> to vector<1x256x1xf32>
    tpu.vector_store %arg6[%c6_64, %c0_65, %c0_66], %98 {strides = array<i32>} : memref<8x256x1xf32, #tpu.memory_space<vmem>>, vector<1x256x1xf32>,
    %99 = vector.extract_strided_slice %2 {offsets = [0, 56], sizes = [256, 8], strides = [1, 1]} : vector<256x64xf32> to vector<256x8xf32>
    %100 = tpu.concatenate %99, %7 in 1 : vector<256x8xf32>, vector<256x1xf32> -> vector<256x9xf32>
    %c7 = arith.constant 7 : index
    %c0_67 = arith.constant 0 : index
    %c0_68 = arith.constant 0 : index
    %101 = vector.load %arg4[%c7, %c0_67, %c0_68] : memref<8x256x9xf32, #tpu.memory_space<vmem>>, vector<1x256x9xf32>
    %102 = vector.shape_cast %101 : vector<1x256x9xf32> to vector<256x9xf32>
    %103 = vector.shape_cast %100 : vector<256x9xf32> to vector<1x256x9xf32>
    tpu.vector_store %arg4[%c7, %c0_67, %c0_68], %103 {strides = array<i32>} : memref<8x256x9xf32, #tpu.memory_space<vmem>>, vector<1x256x9xf32>,
    %104 = vector.extract_strided_slice %4 {offsets = [7, 0], sizes = [1, 256], strides = [1, 1]} : vector<8x256xf32> to vector<1x256xf32>
    %c7_69 = arith.constant 7 : index
    %c0_70 = arith.constant 0 : index
    %c0_71 = arith.constant 0 : index
    %105 = vector.load %arg5[%c7_69, %c0_70, %c0_71] : memref<8x1x256xf32, #tpu.memory_space<vmem>>, vector<1x1x256xf32>
    %106 = vector.shape_cast %105 : vector<1x1x256xf32> to vector<1x256xf32>
    %107 = vector.shape_cast %104 : vector<1x256xf32> to vector<1x1x256xf32>
    tpu.vector_store %arg5[%c7_69, %c0_70, %c0_71], %107 {strides = array<i32>} : memref<8x1x256xf32, #tpu.memory_space<vmem>>, vector<1x1x256xf32>,
    %108 = vector.extract_strided_slice %6 {offsets = [0, 7], sizes = [256, 1], strides = [1, 1]} : vector<256x8xf32> to vector<256x1xf32>
    %c7_72 = arith.constant 7 : index
    %c0_73 = arith.constant 0 : index
    %c0_74 = arith.constant 0 : index
    %109 = vector.load %arg6[%c7_72, %c0_73, %c0_74] : memref<8x256x1xf32, #tpu.memory_space<vmem>>, vector<1x256x1xf32>
    %110 = vector.shape_cast %109 : vector<1x256x1xf32> to vector<256x1xf32>
    %111 = vector.shape_cast %108 : vector<256x1xf32> to vector<1x256x1xf32>
    tpu.vector_store %arg6[%c7_72, %c0_73, %c0_74], %111 {strides = array<i32>} : memref<8x256x1xf32, #tpu.memory_space<vmem>>, vector<1x256x1xf32>,
    return
  }
}

</mosaic_0001>

<llo_original>
// kernel: tpu_custom_call.1
$region0: #{tpu_custom_call.1}
  #allocation0 [shape = 'u32[]', space=smem, size = 0x4, offset = 0x4, fixed_abs, tag = 'smem constant byte address 0x4 - core index']
  #allocation1 [shape = 'u32[144,128]{1,0:T(1,128)}', space=vmem, size = 0x12000, scoped, tag = 'internal scratch']
  %s0 = inlined_call_operand.vmem [shape: f32[256,32], index: 0, kind: input, shape index: {}]
  %s1 = inlined_call_operand.vmem [shape: f32[32,64], index: 1, kind: input, shape index: {}]
  %s2 = inlined_call_operand.vmem [shape: f32[64,8], index: 2, kind: input, shape index: {}]
  %s3 = inlined_call_operand.vmem [shape: f32[64,8], index: 3, kind: input, shape index: {}]
  %s4 = inlined_call_operand.vmem [shape: f32[8,256,9], index: 4, kind: output, shape index: {0}]
  %s5 = inlined_call_operand.hbm [shape: f32[8,1,256], index: 5, kind: output, shape index: {1}]
  %s6 = inlined_call_operand.vmem [shape: f32[8,256,1], index: 6, kind: output, shape index: {2}]
  %7 = xla_tuple %s4, %s5, %s6
  %s8 = sld [smem:[#allocation0]]
  $region42: #{tpu_custom_call.1} parent=0
    _
  %s10 = ssub.s32 1, %s8
  %s11 = scalar_select 0, %s10, %s8
  $region1: #{tpu_custom_call.1} parent=0
    #allocation2 [shape = 'u8[8192]{0}', space=vmem, size = 0x2000, scoped, tag = 'output window, operand 1, single buffered']
    #allocation3 [shape = 's32[1]{0}', space=sflag, size = 0x4, scoped, tag = 'scoped memory for tpu_custom_call.1']
    %12 = vsyncpa [#allocation3], 0
    // Predicated region
    $region2: #{tpu_custom_call.1} parent=1 // pred_check
      _
    $region3: #{tpu_custom_call.1} parent=1 // pred_check_branch
      %14 = sbr.rel (0) target = $region5
    $region4: #{tpu_custom_call.1} parent=1 // pred_region
      _
    $region5: #{tpu_custom_call.1} parent=1 // pred_fallthru
      _
    // Predicated region
    $region6: #{tpu_custom_call.1} parent=1 // pred_check
      _
    $region7: #{tpu_custom_call.1} parent=1 // pred_check_branch
      %16 = sbr.rel (0) target = $region9
    $region8: #{tpu_custom_call.1} parent=1 // pred_region
      _
    $region9: #{tpu_custom_call.1} parent=1 // pred_fallthru
      _
    // Predicated region
    $region10: #{tpu_custom_call.1} parent=1 // pred_check
      _
    $region11: #{tpu_custom_call.1} parent=1 // pred_check_branch
      %18 = sbr.rel (0) target = $region13
    $region12: #{tpu_custom_call.1} parent=1 // pred_region
      _
    $region13: #{tpu_custom_call.1} parent=1 // pred_fallthru
      _
    // Predicated region
    $region14: #{tpu_custom_call.1} parent=1 // pred_check
      _
    $region15: #{tpu_custom_call.1} parent=1 // pred_check_branch
      %20 = sbr.rel (0) target = $region17
    $region16: #{tpu_custom_call.1} parent=1 // pred_region
      _
    $region17: #{tpu_custom_call.1} parent=1 // pred_fallthru
      _
    %v21 = vld [vmem:[%s0] sm:$0xff]
    %v22 = vld [vmem:[%s0 + $0x8] sm:$0xff]
    %v23 = vld [vmem:[%s0 + $0x10] sm:$0xff]
    %v24 = vld [vmem:[%s0 + $0x18] sm:$0xff]
    %v25 = vld [vmem:[%s0 + $0x20] sm:$0xff]
    %v26 = vld [vmem:[%s0 + $0x28] sm:$0xff]
    %v27 = vld [vmem:[%s0 + $0x30] sm:$0xff]
    %v28 = vld [vmem:[%s0 + $0x38] sm:$0xff]
    %v29 = vld [vmem:[%s0 + $0x40] sm:$0xff]
    %v30 = vld [vmem:[%s0 + $0x48] sm:$0xff]
    %v31 = vld [vmem:[%s0 + $0x50] sm:$0xff]
    %v32 = vld [vmem:[%s0 + $0x58] sm:$0xff]
    %v33 = vld [vmem:[%s0 + $0x60] sm:$0xff]
    %v34 = vld [vmem:[%s0 + $0x68] sm:$0xff]
    %v35 = vld [vmem:[%s0 + $0x70] sm:$0xff]
    %v36 = vld [vmem:[%s0 + $0x78] sm:$0xff]
    %v37 = vld [vmem:[%s0 + $0x80] sm:$0xff]
    %v38 = vld [vmem:[%s0 + $0x88] sm:$0xff]
    %v39 = vld [vmem:[%s0 + $0x90] sm:$0xff]
    %v40 = vld [vmem:[%s0 + $0x98] sm:$0xff]
    %v41 = vld [vmem:[%s0 + $0xa0] sm:$0xff]
    %v42 = vld [vmem:[%s0 + $0xa8] sm:$0xff]
    %v43 = vld [vmem:[%s0 + $0xb0] sm:$0xff]
    %v44 = vld [vmem:[%s0 + $0xb8] sm:$0xff]
    %v45 = vld [vmem:[%s0 + $0xc0] sm:$0xff]
    %v46 = vld [vmem:[%s0 + $0xc8] sm:$0xff]
    %v47 = vld [vmem:[%s0 + $0xd0] sm:$0xff]
    %v48 = vld [vmem:[%s0 + $0xd8] sm:$0xff]
    %v49 = vld [vmem:[%s0 + $0xe0] sm:$0xff]
    %v50 = vld [vmem:[%s0 + $0xe8] sm:$0xff]
    %v51 = vld [vmem:[%s0 + $0xf0] sm:$0xff]
    %v52 = vld [vmem:[%s0 + $0xf8] sm:$0xff]
    %v53 = vld [vmem:[%s1] sm:$0xff]
    %v54 = vld [vmem:[%s1 + $0x8] sm:$0xff]
    %v55 = vld [vmem:[%s1 + $0x10] sm:$0xff]
    %v56 = vld [vmem:[%s1 + $0x18] sm:$0xff]
    %vm57 = vcmask 261120
    %v59 = vsel %vm57, %v21, 0
    %v62 = vsel %vm57, %v22, 0
    %v65 = vsel %vm57, %v23, 0
    %v68 = vsel %vm57, %v24, 0
    %v71 = vsel %vm57, %v25, 0
    %v74 = vsel %vm57, %v26, 0
    %v77 = vsel %vm57, %v27, 0
    %v80 = vsel %vm57, %v28, 0
    %v83 = vsel %vm57, %v29, 0
    %v86 = vsel %vm57, %v30, 0
    %v89 = vsel %vm57, %v31, 0
    %v92 = vsel %vm57, %v32, 0
    %v95 = vsel %vm57, %v33, 0
    %v98 = vsel %vm57, %v34, 0
    %v101 = vsel %vm57, %v35, 0
    %v104 = vsel %vm57, %v36, 0
    %v107 = vsel %vm57, %v37, 0
    %v110 = vsel %vm57, %v38, 0
    %v113 = vsel %vm57, %v39, 0
    %v116 = vsel %vm57, %v40, 0
    %v119 = vsel %vm57, %v41, 0
    %v122 = vsel %vm57, %v42, 0
    %v125 = vsel %vm57, %v43, 0
    %v128 = vsel %vm57, %v44, 0
    %v131 = vsel %vm57, %v45, 0
    %v134 = vsel %vm57, %v46, 0
    %v137 = vsel %vm57, %v47, 0
    %v140 = vsel %vm57, %v48, 0
    %v143 = vsel %vm57, %v49, 0
    %v146 = vsel %vm57, %v50, 0
    %v149 = vsel %vm57, %v51, 0
    %v152 = vsel %vm57, %v52, 0
    %154 = vmatprep.subr.mxu0 0.0
    %155 = vmatpush1.msra.mxu0 %v53
    %156 = vmatprep.subr.mxu0 0.0
    %157 = vmatpush1.msra.mxu0 %v54
    %158 = vmatprep.subr.mxu0 0.0
    %159 = vmatpush1.msra.mxu0 %v55
    %160 = vmatprep.subr.mxu0 0.0
    %161 = vmatpush1.msra.mxu0 %v56
    %162 = vmatprep.subr.mxu0 0.0
    %163 = vmatpush1.msra.mxu0 0.0
    %164 = vmatprep.subr.mxu0 0.0
    %165 = vmatpush1.msra.mxu0 0.0
    %166 = vmatprep.subr.mxu0 0.0
    %167 = vmatpush1.msra.mxu0 0.0
    %168 = vmatprep.subr.mxu0 0.0
    %169 = vmatpush1.msra.mxu0 0.0
    %170 = vmatprep.subr.mxu0 0.0
    %171 = vmatpush1.msra.mxu0 0.0
    %172 = vmatprep.subr.mxu0 0.0
    %173 = vmatpush1.msra.mxu0 0.0
    %174 = vmatprep.subr.mxu0 0.0
    %175 = vmatpush1.msra.mxu0 0.0
    %176 = vmatprep.subr.mxu0 0.0
    %177 = vmatpush1.msra.mxu0 0.0
    %178 = vmatprep.subr.mxu0 0.0
    %179 = vmatpush1.msra.mxu0 0.0
    %180 = vmatprep.subr.mxu0 0.0
    %181 = vmatpush1.msra.mxu0 0.0
    %182 = vmatprep.subr.mxu0 0.0
    %183 = vmatpush1.msra.mxu0 0.0
    %184 = vmatprep.subr.mxu0 0.0
    %185 = vmatpush1.msra.mxu0 0.0
    %186 = vmatprep.subr.mxu0 0.0
    %187 = vmatpush1.msra.mxu0 0.0
    %188 = vmatprep.subr.mxu0 0.0
    %189 = vmatpush1.msra.mxu0 0.0
    %190 = vmatprep.subr.mxu0 0.0
    %191 = vmatpush1.msra.mxu0 0.0
    %192 = vmatprep.subr.mxu0 0.0
    %193 = vmatpush1.msra.mxu0 0.0
    %194 = vmatprep.subr.mxu0 0.0
    %195 = vmatpush1.msra.mxu0 0.0
    %196 = vmatprep.subr.mxu0 0.0
    %197 = vmatpush1.msra.mxu0 0.0
    %198 = vmatprep.subr.mxu0 0.0
    %199 = vmatpush1.msra.mxu0 0.0
    %200 = vmatprep.subr.mxu0 0.0
    %201 = vmatpush1.msra.mxu0 0.0
    %202 = vmatprep.subr.mxu0 0.0
    %203 = vmatpush1.msra.mxu0 0.0
    %204 = vmatprep.subr.mxu0 0.0
    %205 = vmatpush1.msra.mxu0 0.0
    %206 = vmatprep.subr.mxu0 0.0
    %207 = vmatpush1.msra.mxu0 0.0
    %208 = vmatprep.subr.mxu0 0.0
    %209 = vmatpush1.msra.mxu0 0.0
    %210 = vmatprep.subr.mxu0 0.0
    %211 = vmatpush1.msra.mxu0 0.0
    %212 = vmatprep.subr.mxu0 0.0
    %213 = vmatpush1.msra.mxu0 0.0
    %214 = vmatprep.subr.mxu0 0.0
    %215 = vmatpush1.msra.mxu0 0.0
    %216 = vmatprep.subr.mxu0 0.0
    %217 = vmatpush1.msra.mxu0 0.0
    %218 = vmatprep.mubr.f32.mxu0 0.0
    %219 = vmatmul.mubr.f32.gmra.mrb[0].mxu0 %v59
    %v220 = vpop.f32.mrb[0].mxu0
    %v221 = vadd.f32 0.0, %v220
    %v222 = vpop.f32.mrb[0].mxu0
    %223 = vmatprep.mubr.f32.mxu0 0.0
    %224 = vmatmul.mubr.f32.gmra.mrb[0].mxu0 %v62
    %v225 = vpop.f32.mrb[0].mxu0
    %v226 = vadd.f32 0.0, %v225
    %v227 = vpop.f32.mrb[0].mxu0
    %228 = vmatprep.mubr.f32.mxu0 0.0
    %229 = vmatmul.mubr.f32.gmra.mrb[0].mxu0 %v65
    %v230 = vpop.f32.mrb[0].mxu0
    %v231 = vadd.f32 0.0, %v230
    %v232 = vpop.f32.mrb[0].mxu0
    %233 = vmatprep.mubr.f32.mxu0 0.0
    %234 = vmatmul.mubr.f32.gmra.mrb[0].mxu0 %v68
    %v235 = vpop.f32.mrb[0].mxu0
    %v236 = vadd.f32 0.0, %v235
    %v237 = vpop.f32.mrb[0].mxu0
    %238 = vmatprep.mubr.f32.mxu0 0.0
    %239 = vmatmul.mubr.f32.gmra.mrb[0].mxu0 %v71
    %v240 = vpop.f32.mrb[0].mxu0
    %v241 = vadd.f32 0.0, %v240
    %v242 = vpop.f32.mrb[0].mxu0
    %243 = vmatprep.mubr.f32.mxu0 0.0
    %244 = vmatmul.mubr.f32.gmra.mrb[0].mxu0 %v74
    %v245 = vpop.f32.mrb[0].mxu0
    %v246 = vadd.f32 0.0, %v245
    %v247 = vpop.f32.mrb[0].mxu0
    %248 = vmatprep.mubr.f32.mxu0 0.0
    %249 = vmatmul.mubr.f32.gmra.mrb[0].mxu0 %v77
    %v250 = vpop.f32.mrb[0].mxu0
    %v251 = vadd.f32 0.0, %v250
    %v252 = vpop.f32.mrb[0].mxu0
    %253 = vmatprep.mubr.f32.mxu0 0.0
    %254 = vmatmul.mubr.f32.gmra.mrb[0].mxu0 %v80
    %v255 = vpop.f32.mrb[0].mxu0
    %v256 = vadd.f32 0.0, %v255
    %v257 = vpop.f32.mrb[0].mxu0
    %258 = vmatprep.mubr.f32.mxu0 0.0
    %259 = vmatmul.mubr.f32.gmra.mrb[0].mxu0 %v83
    %v260 = vpop.f32.mrb[0].mxu0
    %v261 = vadd.f32 0.0, %v260
    %v262 = vpop.f32.mrb[0].mxu0
    %263 = vmatprep.mubr.f32.mxu0 0.0
    %264 = vmatmul.mubr.f32.gmra.mrb[0].mxu0 %v86
    %v265 = vpop.f32.mrb[0].mxu0
    %v266 = vadd.f32 0.0, %v265
    %v267 = vpop.f32.mrb[0].mxu0
    %268 = vmatprep.mubr.f32.mxu0 0.0
    %269 = vmatmul.mubr.f32.gmra.mrb[0].mxu0 %v89
    %v270 = vpop.f32.mrb[0].mxu0
    %v271 = vadd.f32 0.0, %v270
    %v272 = vpop.f32.mrb[0].mxu0
    %273 = vmatprep.mubr.f32.mxu0 0.0
    %274 = vmatmul.mubr.f32.gmra.mrb[0].mxu0 %v92
    %v275 = vpop.f32.mrb[0].mxu0
    %v276 = vadd.f32 0.0, %v275
    %v277 = vpop.f32.mrb[0].mxu0
    %278 = vmatprep.mubr.f32.mxu0 0.0
    %279 = vmatmul.mubr.f32.gmra.mrb[0].mxu0 %v95
    %v280 = vpop.f32.mrb[0].mxu0
    %v281 = vadd.f32 0.0, %v280
    %v282 = vpop.f32.mrb[0].mxu0
    %283 = vmatprep.mubr.f32.mxu0 0.0
    %284 = vmatmul.mubr.f32.gmra.mrb[0].mxu0 %v98
    %v285 = vpop.f32.mrb[0].mxu0
    %v286 = vadd.f32 0.0, %v285
    %v287 = vpop.f32.mrb[0].mxu0
    %288 = vmatprep.mubr.f32.mxu0 0.0
    %289 = vmatmul.mubr.f32.gmra.mrb[0].mxu0 %v101
    %v290 = vpop.f32.mrb[0].mxu0
    %v291 = vadd.f32 0.0, %v290
    %v292 = vpop.f32.mrb[0].mxu0
    %293 = vmatprep.mubr.f32.mxu0 0.0
    %294 = vmatmul.mubr.f32.gmra.mrb[0].mxu0 %v104
    %v295 = vpop.f32.mrb[0].mxu0
    %v296 = vadd.f32 0.0, %v295
    %v297 = vpop.f32.mrb[0].mxu0
    %298 = vmatprep.mubr.f32.mxu0 0.0
    %299 = vmatmul.mubr.f32.gmra.mrb[0].mxu0 %v107
    %v300 = vpop.f32.mrb[0].mxu0
    %v301 = vadd.f32 0.0, %v300
    %v302 = vpop.f32.mrb[0].mxu0
    %303 = vmatprep.mubr.f32.mxu0 0.0
    %304 = vmatmul.mubr.f32.gmra.mrb[0].mxu0 %v110
    %v305 = vpop.f32.mrb[0].mxu0
    %v306 = vadd.f32 0.0, %v305
    %v307 = vpop.f32.mrb[0].mxu0
    %308 = vmatprep.mubr.f32.mxu0 0.0
    %309 = vmatmul.mubr.f32.gmra.mrb[0].mxu0 %v113
    %v310 = vpop.f32.mrb[0].mxu0
    %v311 = vadd.f32 0.0, %v310
    %v312 = vpop.f32.mrb[0].mxu0
    %313 = vmatprep.mubr.f32.mxu0 0.0
    %314 = vmatmul.mubr.f32.gmra.mrb[0].mxu0 %v116
    %v315 = vpop.f32.mrb[0].mxu0
    %v316 = vadd.f32 0.0, %v315
    %v317 = vpop.f32.mrb[0].mxu0
    %318 = vmatprep.mubr.f32.mxu0 0.0
    %319 = vmatmul.mubr.f32.gmra.mrb[0].mxu0 %v119
    %v320 = vpop.f32.mrb[0].mxu0
    %v321 = vadd.f32 0.0, %v320
    %v322 = vpop.f32.mrb[0].mxu0
    %323 = vmatprep.mubr.f32.mxu0 0.0
    %324 = vmatmul.mubr.f32.gmra.mrb[0].mxu0 %v122
    %v325 = vpop.f32.mrb[0].mxu0
    %v326 = vadd.f32 0.0, %v325
    %v327 = vpop.f32.mrb[0].mxu0
    %328 = vmatprep.mubr.f32.mxu0 0.0
    %329 = vmatmul.mubr.f32.gmra.mrb[0].mxu0 %v125
    %v330 = vpop.f32.mrb[0].mxu0
    %v331 = vadd.f32 0.0, %v330
    %v332 = vpop.f32.mrb[0].mxu0
    %333 = vmatprep.mubr.f32.mxu0 0.0
    %334 = vmatmul.mubr.f32.gmra.mrb[0].mxu0 %v128
    %v335 = vpop.f32.mrb[0].mxu0
    %v336 = vadd.f32 0.0, %v335
    %v337 = vpop.f32.mrb[0].mxu0
    %338 = vmatprep.mubr.f32.mxu0 0.0
    %339 = vmatmul.mubr.f32.gmra.mrb[0].mxu0 %v131
    %v340 = vpop.f32.mrb[0].mxu0
    %v341 = vadd.f32 0.0, %v340
    %v342 = vpop.f32.mrb[0].mxu0
    %343 = vmatprep.mubr.f32.mxu0 0.0
    %344 = vmatmul.mubr.f32.gmra.mrb[0].mxu0 %v134
    %v345 = vpop.f32.mrb[0].mxu0
    %v346 = vadd.f32 0.0, %v345
    %v347 = vpop.f32.mrb[0].mxu0
    %348 = vmatprep.mubr.f32.mxu0 0.0
    %349 = vmatmul.mubr.f32.gmra.mrb[0].mxu0 %v137
    %v350 = vpop.f32.mrb[0].mxu0
    %v351 = vadd.f32 0.0, %v350
    %v352 = vpop.f32.mrb[0].mxu0
    %353 = vmatprep.mubr.f32.mxu0 0.0
    %354 = vmatmul.mubr.f32.gmra.mrb[0].mxu0 %v140
    %v355 = vpop.f32.mrb[0].mxu0
    %v356 = vadd.f32 0.0, %v355
    %v357 = vpop.f32.mrb[0].mxu0
    %358 = vmatprep.mubr.f32.mxu0 0.0
    %359 = vmatmul.mubr.f32.gmra.mrb[0].mxu0 %v143
    %v360 = vpop.f32.mrb[0].mxu0
    %v361 = vadd.f32 0.0, %v360
    %v362 = vpop.f32.mrb[0].mxu0
    %363 = vmatprep.mubr.f32.mxu0 0.0
    %364 = vmatmul.mubr.f32.gmra.mrb[0].mxu0 %v146
    %v365 = vpop.f32.mrb[0].mxu0
    %v366 = vadd.f32 0.0, %v365
    %v367 = vpop.f32.mrb[0].mxu0
    %368 = vmatprep.mubr.f32.mxu0 0.0
    %369 = vmatmul.mubr.f32.gmra.mrb[0].mxu0 %v149
    %v370 = vpop.f32.mrb[0].mxu0
    %v371 = vadd.f32 0.0, %v370
    %v372 = vpop.f32.mrb[0].mxu0
    %373 = vmatprep.mubr.f32.mxu0 0.0
    %374 = vmatmul.mubr.f32.gmra.mrb[0].mxu0 %v152
    %v375 = vpop.f32.mrb[0].mxu0
    %v376 = vadd.f32 0.0, %v375
    %v377 = vpop.f32.mrb[0].mxu0
    %378 = vdwg.mxu0
    %v379 = vld [vmem:[%s2] sm:$0xff]
    %v380 = vld [vmem:[%s2 + $0x8] sm:$0xff]
    %v381 = vld [vmem:[%s2 + $0x10] sm:$0xff]
    %v382 = vld [vmem:[%s2 + $0x18] sm:$0xff]
    %v383 = vld [vmem:[%s2 + $0x20] sm:$0xff]
    %v384 = vld [vmem:[%s2 + $0x28] sm:$0xff]
    %v385 = vld [vmem:[%s2 + $0x30] sm:$0xff]
    %v386 = vld [vmem:[%s2 + $0x38] sm:$0xff]
    %387 = vxpose.xlu0.b32.start [1/16] %v379, 128
    %388 = vxpose.xlu0.b32.cont [2/16] %v380, 128
    %389 = vxpose.xlu0.b32.cont [3/16] %v381, 128
    %390 = vxpose.xlu0.b32.cont [4/16] %v382, 128
    %391 = vxpose.xlu0.b32.cont [5/16] %v383, 128
    %392 = vxpose.xlu0.b32.cont [6/16] %v384, 128
    %393 = vxpose.xlu0.b32.cont [7/16] %v385, 128
    %394 = vxpose.xlu0.b32.cont [8/16] %v386, 128
    %395 = vxpose.xlu0.b32.cont [9/16] 0.0, 128
    %396 = vxpose.xlu0.b32.cont [10/16] 0.0, 128
    %397 = vxpose.xlu0.b32.cont [11/16] 0.0, 128
    %398 = vxpose.xlu0.b32.cont [12/16] 0.0, 128
    %399 = vxpose.xlu0.b32.cont [13/16] 0.0, 128
    %400 = vxpose.xlu0.b32.cont [14/16] 0.0, 128
    %401 = vxpose.xlu0.b32.cont [15/16] 0.0, 128
    %402 = vxpose.xlu0.b32.end [16/16] 0.0, 128
    %v403 = vpop.trf.xlu0
    %v404 = vpop.trf.xlu0
    %v405 = vpop.trf.xlu0
    %v406 = vpop.trf.xlu0
    %v407 = vpop.trf.xlu0
    %v408 = vpop.trf.xlu0
    %v409 = vpop.trf.xlu0
    %v410 = vpop.trf.xlu0
    %v411 = vpop.trf.xlu0
    %v412 = vpop.trf.xlu0
    %v413 = vpop.trf.xlu0
    %v414 = vpop.trf.xlu0
    %v415 = vpop.trf.xlu0
    %v416 = vpop.trf.xlu0
    %v417 = vpop.trf.xlu0
    %v418 = vpop.trf.xlu0
    %vm419 = vcmask 523264
    %v421 = vsel %vm419, %v403, 0
    %v424 = vsel %vm419, %v221, 0
    %v427 = vsel %vm419, %v226, 0
    %v430 = vsel %vm419, %v231, 0
    %v433 = vsel %vm419, %v236, 0
    %v436 = vsel %vm419, %v241, 0
    %v439 = vsel %vm419, %v246, 0
    %v442 = vsel %vm419, %v251, 0
    %v445 = vsel %vm419, %v256, 0
    %v448 = vsel %vm419, %v261, 0
    %v451 = vsel %vm419, %v266, 0
    %v454 = vsel %vm419, %v271, 0
    %v457 = vsel %vm419, %v276, 0
    %v460 = vsel %vm419, %v281, 0
    %v463 = vsel %vm419, %v286, 0
    %v466 = vsel %vm419, %v291, 0
    %v469 = vsel %vm419, %v296, 0
    %v472 = vsel %vm419, %v301, 0
    %v475 = vsel %vm419, %v306, 0
    %v478 = vsel %vm419, %v311, 0
    %v481 = vsel %vm419, %v316, 0
    %v484 = vsel %vm419, %v321, 0
    %v487 = vsel %vm419, %v326, 0
    %v490 = vsel %vm419, %v331, 0
    %v493 = vsel %vm419, %v336, 0
    %v496 = vsel %vm419, %v341, 0
    %v499 = vsel %vm419, %v346, 0
    %v502 = vsel %vm419, %v351, 0
    %v505 = vsel %vm419, %v356, 0
    %v508 = vsel %vm419, %v361, 0
    %v511 = vsel %vm419, %v366, 0
    %v514 = vsel %vm419, %v371, 0
    %v517 = vsel %vm419, %v376, 0
    %519 = vmatprep.subr.mxu0 0.0
    %520 = vmatpush1.xpose.msra.mxu0 %v424
    %521 = vmatprep.subr.mxu0 0.0
    %522 = vmatpush1.xpose.msra.mxu0 %v427
    %523 = vmatprep.subr.mxu0 0.0
    %524 = vmatpush1.xpose.msra.mxu0 %v430
    %525 = vmatprep.subr.mxu0 0.0
    %526 = vmatpush1.xpose.msra.mxu0 %v433
    %527 = vmatprep.subr.mxu0 0.0
    %528 = vmatpush1.xpose.msra.mxu0 %v436
    %529 = vmatprep.subr.mxu0 0.0
    %530 = vmatpush1.xpose.msra.mxu0 %v439
    %531 = vmatprep.subr.mxu0 0.0
    %532 = vmatpush1.xpose.msra.mxu0 %v442
    %533 = vmatprep.subr.mxu0 0.0
    %534 = vmatpush1.xpose.msra.mxu0 %v445
    %535 = vmatprep.subr.mxu0 0.0
    %536 = vmatpush1.xpose.msra.mxu0 %v448
    %537 = vmatprep.subr.mxu0 0.0
    %538 = vmatpush1.xpose.msra.mxu0 %v451
    %539 = vmatprep.subr.mxu0 0.0
    %540 = vmatpush1.xpose.msra.mxu0 %v454
    %541 = vmatprep.subr.mxu0 0.0
    %542 = vmatpush1.xpose.msra.mxu0 %v457
    %543 = vmatprep.subr.mxu0 0.0
    %544 = vmatpush1.xpose.msra.mxu0 %v460
    %545 = vmatprep.subr.mxu0 0.0
    %546 = vmatpush1.xpose.msra.mxu0 %v463
    %547 = vmatprep.subr.mxu0 0.0
    %548 = vmatpush1.xpose.msra.mxu0 %v466
    %549 = vmatprep.subr.mxu0 0.0
    %550 = vmatpush1.xpose.msra.mxu0 %v469
    %551 = vmatprep.subr.mxu0 0.0
    %552 = vmatpush1.xpose.msra.mxu0 %v472
    %553 = vmatprep.subr.mxu0 0.0
    %554 = vmatpush1.xpose.msra.mxu0 %v475
    %555 = vmatprep.subr.mxu0 0.0
    %556 = vmatpush1.xpose.msra.mxu0 %v478
    %557 = vmatprep.subr.mxu0 0.0
    %558 = vmatpush1.xpose.msra.mxu0 %v481
    %559 = vmatprep.subr.mxu0 0.0
    %560 = vmatpush1.xpose.msra.mxu0 %v484
    %561 = vmatprep.subr.mxu0 0.0
    %562 = vmatpush1.xpose.msra.mxu0 %v487
    %563 = vmatprep.subr.mxu0 0.0
    %564 = vmatpush1.xpose.msra.mxu0 %v490
    %565 = vmatprep.subr.mxu0 0.0
    %566 = vmatpush1.xpose.msra.mxu0 %v493
    %567 = vmatprep.subr.mxu0 0.0
    %568 = vmatpush1.xpose.msra.mxu0 %v496
    %569 = vmatprep.subr.mxu0 0.0
    %570 = vmatpush1.xpose.msra.mxu0 %v499
    %571 = vmatprep.subr.mxu0 0.0
    %572 = vmatpush1.xpose.msra.mxu0 %v502
    %573 = vmatprep.subr.mxu0 0.0
    %574 = vmatpush1.xpose.msra.mxu0 %v505
    %575 = vmatprep.subr.mxu0 0.0
    %576 = vmatpush1.xpose.msra.mxu0 %v508
    %577 = vmatprep.subr.mxu0 0.0
    %578 = vmatpush1.xpose.msra.mxu0 %v511
    %579 = vmatprep.subr.mxu0 0.0
    %580 = vmatpush1.xpose.msra.mxu0 %v514
    %581 = vmatprep.subr.mxu0 0.0
    %582 = vmatpush1.xpose.msra.mxu0 %v517
    %583 = vmatprep.mubr.f32.mxu0 0.0
    %584 = vmatmul.mubr.f32.gmra.mrb[0].mxu0 %v421
    %v585 = vpop.f32.mrb[0].mxu0
    %v586 = vadd.f32 0.0, %v585
    %v587 = vpop.f32.mrb[0].mxu0
    %v588 = vadd.f32 0.0, %v587
    %589 = vdwg.mxu0
    %v590 = vld [vmem:[%s3] sm:$0xff]
    %v591 = vld [vmem:[%s3 + $0x8] sm:$0xff]
    %v592 = vld [vmem:[%s3 + $0x10] sm:$0xff]
    %v593 = vld [vmem:[%s3 + $0x18] sm:$0xff]
    %v594 = vld [vmem:[%s3 + $0x20] sm:$0xff]
    %v595 = vld [vmem:[%s3 + $0x28] sm:$0xff]
    %v596 = vld [vmem:[%s3 + $0x30] sm:$0xff]
    %v597 = vld [vmem:[%s3 + $0x38] sm:$0xff]
    %598 = vmatprep.subr.mxu0 0.0
    %599 = vmatpush1.msra.mxu0 %v590
    %600 = vmatprep.subr.mxu0 0.0
    %601 = vmatpush1.msra.mxu0 %v591
    %602 = vmatprep.subr.mxu0 0.0
    %603 = vmatpush1.msra.mxu0 %v592
    %604 = vmatprep.subr.mxu0 0.0
    %605 = vmatpush1.msra.mxu0 %v593
    %606 = vmatprep.subr.mxu0 0.0
    %607 = vmatpush1.msra.mxu0 %v594
    %608 = vmatprep.subr.mxu0 0.0
    %609 = vmatpush1.msra.mxu0 %v595
    %610 = vmatprep.subr.mxu0 0.0
    %611 = vmatpush1.msra.mxu0 %v596
    %612 = vmatprep.subr.mxu0 0.0
    %613 = vmatpush1.msra.mxu0 %v597
    %614 = vmatprep.subr.mxu0 0.0
    %615 = vmatpush1.msra.mxu0 0.0
    %616 = vmatprep.subr.mxu0 0.0
    %617 = vmatpush1.msra.mxu0 0.0
    %618 = vmatprep.subr.mxu0 0.0
    %619 = vmatpush1.msra.mxu0 0.0
    %620 = vmatprep.subr.mxu0 0.0
    %621 = vmatpush1.msra.mxu0 0.0
    %622 = vmatprep.subr.mxu0 0.0
    %623 = vmatpush1.msra.mxu0 0.0
    %624 = vmatprep.subr.mxu0 0.0
    %625 = vmatpush1.msra.mxu0 0.0
    %626 = vmatprep.subr.mxu0 0.0
    %627 = vmatpush1.msra.mxu0 0.0
    %628 = vmatprep.subr.mxu0 0.0
    %629 = vmatpush1.msra.mxu0 0.0
    %630 = vmatprep.subr.mxu0 0.0
    %631 = vmatpush1.msra.mxu0 0.0
    %632 = vmatprep.subr.mxu0 0.0
    %633 = vmatpush1.msra.mxu0 0.0
    %634 = vmatprep.subr.mxu0 0.0
    %635 = vmatpush1.msra.mxu0 0.0
    %636 = vmatprep.subr.mxu0 0.0
    %637 = vmatpush1.msra.mxu0 0.0
    %638 = vmatprep.subr.mxu0 0.0
    %639 = vmatpush1.msra.mxu0 0.0
    %640 = vmatprep.subr.mxu0 0.0
    %641 = vmatpush1.msra.mxu0 0.0
    %642 = vmatprep.subr.mxu0 0.0
    %643 = vmatpush1.msra.mxu0 0.0
    %644 = vmatprep.subr.mxu0 0.0
    %645 = vmatpush1.msra.mxu0 0.0
    %646 = vmatprep.subr.mxu0 0.0
    %647 = vmatpush1.msra.mxu0 0.0
    %648 = vmatprep.subr.mxu0 0.0
    %649 = vmatpush1.msra.mxu0 0.0
    %650 = vmatprep.subr.mxu0 0.0
    %651 = vmatpush1.msra.mxu0 0.0
    %652 = vmatprep.subr.mxu0 0.0
    %653 = vmatpush1.msra.mxu0 0.0
    %654 = vmatprep.subr.mxu0 0.0
    %655 = vmatpush1.msra.mxu0 0.0
    %656 = vmatprep.subr.mxu0 0.0
    %657 = vmatpush1.msra.mxu0 0.0
    %658 = vmatprep.subr.mxu0 0.0
    %659 = vmatpush1.msra.mxu0 0.0
    %660 = vmatprep.subr.mxu0 0.0
    %661 = vmatpush1.msra.mxu0 0.0
    %662 = vmatprep.mubr.f32.mxu0 0.0
    %663 = vmatmul.mubr.f32.gmra.mrb[0].mxu0 %v424
    %v664 = vpop.f32.mrb[0].mxu0
    %v665 = vadd.f32 0.0, %v664
    %v666 = vpop.f32.mrb[0].mxu0
    %667 = vmatprep.mubr.f32.mxu0 0.0
    %668 = vmatmul.mubr.f32.gmra.mrb[0].mxu0 %v427
    %v669 = vpop.f32.mrb[0].mxu0
    %v670 = vadd.f32 0.0, %v669
    %v671 = vpop.f32.mrb[0].mxu0
    %672 = vmatprep.mubr.f32.mxu0 0.0
    %673 = vmatmul.mubr.f32.gmra.mrb[0].mxu0 %v430
    %v674 = vpop.f32.mrb[0].mxu0
    %v675 = vadd.f32 0.0, %v674
    %v676 = vpop.f32.mrb[0].mxu0
    %677 = vmatprep.mubr.f32.mxu0 0.0
    %678 = vmatmul.mubr.f32.gmra.mrb[0].mxu0 %v433
    %v679 = vpop.f32.mrb[0].mxu0
    %v680 = vadd.f32 0.0, %v679
    %v681 = vpop.f32.mrb[0].mxu0
    %682 = vmatprep.mubr.f32.mxu0 0.0
    %683 = vmatmul.mubr.f32.gmra.mrb[0].mxu0 %v436
    %v684 = vpop.f32.mrb[0].mxu0
    %v685 = vadd.f32 0.0, %v684
    %v686 = vpop.f32.mrb[0].mxu0
    %687 = vmatprep.mubr.f32.mxu0 0.0
    %688 = vmatmul.mubr.f32.gmra.mrb[0].mxu0 %v439
    %v689 = vpop.f32.mrb[0].mxu0
    %v690 = vadd.f32 0.0, %v689
    %v691 = vpop.f32.mrb[0].mxu0
    %692 = vmatprep.mubr.f32.mxu0 0.0
    %693 = vmatmul.mubr.f32.gmra.mrb[0].mxu0 %v442
    %v694 = vpop.f32.mrb[0].mxu0
    %v695 = vadd.f32 0.0, %v694
    %v696 = vpop.f32.mrb[0].mxu0
    %697 = vmatprep.mubr.f32.mxu0 0.0
    %698 = vmatmul.mubr.f32.gmra.mrb[0].mxu0 %v445
    %v699 = vpop.f32.mrb[0].mxu0
    %v700 = vadd.f32 0.0, %v699
    %v701 = vpop.f32.mrb[0].mxu0
    %702 = vmatprep.mubr.f32.mxu0 0.0
    %703 = vmatmul.mubr.f32.gmra.mrb[0].mxu0 %v448
    %v704 = vpop.f32.mrb[0].mxu0
    %v705 = vadd.f32 0.0, %v704
    %v706 = vpop.f32.mrb[0].mxu0
    %707 = vmatprep.mubr.f32.mxu0 0.0
    %708 = vmatmul.mubr.f32.gmra.mrb[0].mxu0 %v451
    %v709 = vpop.f32.mrb[0].mxu0
    %v710 = vadd.f32 0.0, %v709
    %v711 = vpop.f32.mrb[0].mxu0
    %712 = vmatprep.mubr.f32.mxu0 0.0
    %713 = vmatmul.mubr.f32.gmra.mrb[0].mxu0 %v454
    %v714 = vpop.f32.mrb[0].mxu0
    %v715 = vadd.f32 0.0, %v714
    %v716 = vpop.f32.mrb[0].mxu0
    %717 = vmatprep.mubr.f32.mxu0 0.0
    %718 = vmatmul.mubr.f32.gmra.mrb[0].mxu0 %v457
    %v719 = vpop.f32.mrb[0].mxu0
    %v720 = vadd.f32 0.0, %v719
    %v721 = vpop.f32.mrb[0].mxu0
    %722 = vmatprep.mubr.f32.mxu0 0.0
    %723 = vmatmul.mubr.f32.gmra.mrb[0].mxu0 %v460
    %v724 = vpop.f32.mrb[0].mxu0
    %v725 = vadd.f32 0.0, %v724
    %v726 = vpop.f32.mrb[0].mxu0
    %727 = vmatprep.mubr.f32.mxu0 0.0
    %728 = vmatmul.mubr.f32.gmra.mrb[0].mxu0 %v463
    %v729 = vpop.f32.mrb[0].mxu0
    %v730 = vadd.f32 0.0, %v729
    %v731 = vpop.f32.mrb[0].mxu0
    %732 = vmatprep.mubr.f32.mxu0 0.0
    %733 = vmatmul.mubr.f32.gmra.mrb[0].mxu0 %v466
    %v734 = vpop.f32.mrb[0].mxu0
    %v735 = vadd.f32 0.0, %v734
    %v736 = vpop.f32.mrb[0].mxu0
    %737 = vmatprep.mubr.f32.mxu0 0.0
    %738 = vmatmul.mubr.f32.gmra.mrb[0].mxu0 %v469
    %v739 = vpop.f32.mrb[0].mxu0
    %v740 = vadd.f32 0.0, %v739
    %v741 = vpop.f32.mrb[0].mxu0
    %742 = vmatprep.mubr.f32.mxu0 0.0
    %743 = vmatmul.mubr.f32.gmra.mrb[0].mxu0 %v472
    %v744 = vpop.f32.mrb[0].mxu0
    %v745 = vadd.f32 0.0, %v744
    %v746 = vpop.f32.mrb[0].mxu0
    %747 = vmatprep.mubr.f32.mxu0 0.0
    %748 = vmatmul.mubr.f32.gmra.mrb[0].mxu0 %v475
    %v749 = vpop.f32.mrb[0].mxu0
    %v750 = vadd.f32 0.0, %v749
    %v751 = vpop.f32.mrb[0].mxu0
    %752 = vmatprep.mubr.f32.mxu0 0.0
    %753 = vmatmul.mubr.f32.gmra.mrb[0].mxu0 %v478
    %v754 = vpop.f32.mrb[0].mxu0
    %v755 = vadd.f32 0.0, %v754
    %v756 = vpop.f32.mrb[0].mxu0
    %757 = vmatprep.mubr.f32.mxu0 0.0
    %758 = vmatmul.mubr.f32.gmra.mrb[0].mxu0 %v481
    %v759 = vpop.f32.mrb[0].mxu0
    %v760 = vadd.f32 0.0, %v759
    %v761 = vpop.f32.mrb[0].mxu0
    %762 = vmatprep.mubr.f32.mxu0 0.0
    %763 = vmatmul.mubr.f32.gmra.mrb[0].mxu0 %v484
    %v764 = vpop.f32.mrb[0].mxu0
    %v765 = vadd.f32 0.0, %v764
    %v766 = vpop.f32.mrb[0].mxu0
    %767 = vmatprep.mubr.f32.mxu0 0.0
    %768 = vmatmul.mubr.f32.gmra.mrb[0].mxu0 %v487
    %v769 = vpop.f32.mrb[0].mxu0
    %v770 = vadd.f32 0.0, %v769
    %v771 = vpop.f32.mrb[0].mxu0
    %772 = vmatprep.mubr.f32.mxu0 0.0
    %773 = vmatmul.mubr.f32.gmra.mrb[0].mxu0 %v490
    %v774 = vpop.f32.mrb[0].mxu0
    %v775 = vadd.f32 0.0, %v774
    %v776 = vpop.f32.mrb[0].mxu0
    %777 = vmatprep.mubr.f32.mxu0 0.0
    %778 = vmatmul.mubr.f32.gmra.mrb[0].mxu0 %v493
    %v779 = vpop.f32.mrb[0].mxu0
    %v780 = vadd.f32 0.0, %v779
    %v781 = vpop.f32.mrb[0].mxu0
    %782 = vmatprep.mubr.f32.mxu0 0.0
    %783 = vmatmul.mubr.f32.gmra.mrb[0].mxu0 %v496
    %v784 = vpop.f32.mrb[0].mxu0
    %v785 = vadd.f32 0.0, %v784
    %v786 = vpop.f32.mrb[0].mxu0
    %787 = vmatprep.mubr.f32.mxu0 0.0
    %788 = vmatmul.mubr.f32.gmra.mrb[0].mxu0 %v499
    %v789 = vpop.f32.mrb[0].mxu0
    %v790 = vadd.f32 0.0, %v789
    %v791 = vpop.f32.mrb[0].mxu0
    %792 = vmatprep.mubr.f32.mxu0 0.0
    %793 = vmatmul.mubr.f32.gmra.mrb[0].mxu0 %v502
    %v794 = vpop.f32.mrb[0].mxu0
    %v795 = vadd.f32 0.0, %v794
    %v796 = vpop.f32.mrb[0].mxu0
    %797 = vmatprep.mubr.f32.mxu0 0.0
    %798 = vmatmul.mubr.f32.gmra.mrb[0].mxu0 %v505
    %v799 = vpop.f32.mrb[0].mxu0
    %v800 = vadd.f32 0.0, %v799
    %v801 = vpop.f32.mrb[0].mxu0
    %802 = vmatprep.mubr.f32.mxu0 0.0
    %803 = vmatmul.mubr.f32.gmra.mrb[0].mxu0 %v508
    %v804 = vpop.f32.mrb[0].mxu0
    %v805 = vadd.f32 0.0, %v804
    %v806 = vpop.f32.mrb[0].mxu0
    %807 = vmatprep.mubr.f32.mxu0 0.0
    %808 = vmatmul.mubr.f32.gmra.mrb[0].mxu0 %v511
    %v809 = vpop.f32.mrb[0].mxu0
    %v810 = vadd.f32 0.0, %v809
    %v811 = vpop.f32.mrb[0].mxu0
    %812 = vmatprep.mubr.f32.mxu0 0.0
    %813 = vmatmul.mubr.f32.gmra.mrb[0].mxu0 %v514
    %v814 = vpop.f32.mrb[0].mxu0
    %v815 = vadd.f32 0.0, %v814
    %v816 = vpop.f32.mrb[0].mxu0
    %817 = vmatprep.mubr.f32.mxu0 0.0
    %818 = vmatmul.mubr.f32.gmra.mrb[0].mxu0 %v517
    %v819 = vpop.f32.mrb[0].mxu0
    %v820 = vadd.f32 0.0, %v819
    %v821 = vpop.f32.mrb[0].mxu0
    %822 = vdwg.mxu0
    %vm823 = vcmask 64512
    %v824 = vsel %vm823, %v221, 1.0
    %v825 = vsel %vm823, %v226, 1.0
    %v826 = vsel %vm823, %v231, 1.0
    %v827 = vsel %vm823, %v236, 1.0
    %v828 = vsel %vm823, %v241, 1.0
    %v829 = vsel %vm823, %v246, 1.0
    %v830 = vsel %vm823, %v251, 1.0
    %v831 = vsel %vm823, %v256, 1.0
    %v832 = vsel %vm823, %v261, 1.0
    %v833 = vsel %vm823, %v266, 1.0
    %v834 = vsel %vm823, %v271, 1.0
    %v835 = vsel %vm823, %v276, 1.0
    %v836 = vsel %vm823, %v281, 1.0
    %v837 = vsel %vm823, %v286, 1.0
    %v838 = vsel %vm823, %v291, 1.0
    %v839 = vsel %vm823, %v296, 1.0
    %v840 = vsel %vm823, %v301, 1.0
    %v841 = vsel %vm823, %v306, 1.0
    %v842 = vsel %vm823, %v311, 1.0
    %v843 = vsel %vm823, %v316, 1.0
    %v844 = vsel %vm823, %v321, 1.0
    %v845 = vsel %vm823, %v326, 1.0
    %v846 = vsel %vm823, %v331, 1.0
    %v847 = vsel %vm823, %v336, 1.0
    %v848 = vsel %vm823, %v341, 1.0
    %v849 = vsel %vm823, %v346, 1.0
    %v850 = vsel %vm823, %v351, 1.0
    %v851 = vsel %vm823, %v356, 1.0
    %v852 = vsel %vm823, %v361, 1.0
    %v853 = vsel %vm823, %v366, 1.0
    %v854 = vsel %vm823, %v371, 1.0
    %v855 = vsel %vm823, %v376, 1.0
    %vm856 = vcmask 72704
    %857 = vst.msk [vmem:[%s4] sm:$0xff] %vm856, %v824
    %858 = vst.msk [vmem:[%s4 + $0x8] sm:$0xff] %vm856, %v825
    %859 = vst.msk [vmem:[%s4 + $0x10] sm:$0xff] %vm856, %v826
    %860 = vst.msk [vmem:[%s4 + $0x18] sm:$0xff] %vm856, %v827
    %861 = vst.msk [vmem:[%s4 + $0x20] sm:$0xff] %vm856, %v828
    %862 = vst.msk [vmem:[%s4 + $0x28] sm:$0xff] %vm856, %v829
    %863 = vst.msk [vmem:[%s4 + $0x30] sm:$0xff] %vm856, %v830
    %864 = vst.msk [vmem:[%s4 + $0x38] sm:$0xff] %vm856, %v831
    %865 = vst.msk [vmem:[%s4 + $0x40] sm:$0xff] %vm856, %v832
    %866 = vst.msk [vmem:[%s4 + $0x48] sm:$0xff] %vm856, %v833
    %867 = vst.msk [vmem:[%s4 + $0x50] sm:$0xff] %vm856, %v834
    %868 = vst.msk [vmem:[%s4 + $0x58] sm:$0xff] %vm856, %v835
    %869 = vst.msk [vmem:[%s4 + $0x60] sm:$0xff] %vm856, %v836
    %870 = vst.msk [vmem:[%s4 + $0x68] sm:$0xff] %vm856, %v837
    %871 = vst.msk [vmem:[%s4 + $0x70] sm:$0xff] %vm856, %v838
    %872 = vst.msk [vmem:[%s4 + $0x78] sm:$0xff] %vm856, %v839
    %873 = vst.msk [vmem:[%s4 + $0x80] sm:$0xff] %vm856, %v840
    %874 = vst.msk [vmem:[%s4 + $0x88] sm:$0xff] %vm856, %v841
    %875 = vst.msk [vmem:[%s4 + $0x90] sm:$0xff] %vm856, %v842
    %876 = vst.msk [vmem:[%s4 + $0x98] sm:$0xff] %vm856, %v843
    %877 = vst.msk [vmem:[%s4 + $0xa0] sm:$0xff] %vm856, %v844
    %878 = vst.msk [vmem:[%s4 + $0xa8] sm:$0xff] %vm856, %v845
    %879 = vst.msk [vmem:[%s4 + $0xb0] sm:$0xff] %vm856, %v846
    %880 = vst.msk [vmem:[%s4 + $0xb8] sm:$0xff] %vm856, %v847
    %881 = vst.msk [vmem:[%s4 + $0xc0] sm:$0xff] %vm856, %v848
    %882 = vst.msk [vmem:[%s4 + $0xc8] sm:$0xff] %vm856, %v849
    %883 = vst.msk [vmem:[%s4 + $0xd0] sm:$0xff] %vm856, %v850
    %884 = vst.msk [vmem:[%s4 + $0xd8] sm:$0xff] %vm856, %v851
    %885 = vst.msk [vmem:[%s4 + $0xe0] sm:$0xff] %vm856, %v852
    %886 = vst.msk [vmem:[%s4 + $0xe8] sm:$0xff] %vm856, %v853
    %887 = vst.msk [vmem:[%s4 + $0xf0] sm:$0xff] %vm856, %v854
    %888 = vst.msk [vmem:[%s4 + $0xf8] sm:$0xff] %vm856, %v855
    %v891 = vcombine.low %v586, %v588
    %v893 = vunpack.c.l.s4 1966171168
    %v894 = vunpack.c.0.s8 %v893
    %v895 = vlaneseq
    %v896 = vshrl.u32 %v895, 7
    %v897 = vsub.s32 %v894, %v896
    %v898 = vrot.slane %v891, %v897
    %v900 = vunpack.c.l.s4 1966171168
    %v901 = vunpack.c.0.s8 %v900
    %v902 = vlaneseq
    %v903 = vshrl.u32 %v902, 7
    %v904 = vsub.s32 %v901, %v903
    %v905 = vrot.slane %v898, %v904
    %v907 = vlaneseq
    %vm908 = vcmp.ge.s32.totalorder %v907, 0
    %vm909 = vcmp.lt.s32.totalorder %v907, 256
    %vm910 = vmand %vm908, %vm909
    %911 = vst.msk [vmem:[#allocation2] sm:$0x3] %vm910, %v905
    %vm912 = vcmask 7168
    %913 = vst.msk [vmem:[%s6] sm:$0xff] %vm912, %v665
    %914 = vst.msk [vmem:[%s6 + $0x8] sm:$0xff] %vm912, %v670
    %915 = vst.msk [vmem:[%s6 + $0x10] sm:$0xff] %vm912, %v675
    %916 = vst.msk [vmem:[%s6 + $0x18] sm:$0xff] %vm912, %v680
    %917 = vst.msk [vmem:[%s6 + $0x20] sm:$0xff] %vm912, %v685
    %918 = vst.msk [vmem:[%s6 + $0x28] sm:$0xff] %vm912, %v690
    %919 = vst.msk [vmem:[%s6 + $0x30] sm:$0xff] %vm912, %v695
    %920 = vst.msk [vmem:[%s6 + $0x38] sm:$0xff] %vm912, %v700
    %921 = vst.msk [vmem:[%s6 + $0x40] sm:$0xff] %vm912, %v705
    %922 = vst.msk [vmem:[%s6 + $0x48] sm:$0xff] %vm912, %v710
    %923 = vst.msk [vmem:[%s6 + $0x50] sm:$0xff] %vm912, %v715
    %924 = vst.msk [vmem:[%s6 + $0x58] sm:$0xff] %vm912, %v720
    %925 = vst.msk [vmem:[%s6 + $0x60] sm:$0xff] %vm912, %v725
    %926 = vst.msk [vmem:[%s6 + $0x68] sm:$0xff] %vm912, %v730
    %927 = vst.msk [vmem:[%s6 + $0x70] sm:$0xff] %vm912, %v735
    %928 = vst.msk [vmem:[%s6 + $0x78] sm:$0xff] %vm912, %v740
    %929 = vst.msk [vmem:[%s6 + $0x80] sm:$0xff] %vm912, %v745
    %930 = vst.msk [vmem:[%s6 + $0x88] sm:$0xff] %vm912, %v750
    %931 = vst.msk [vmem:[%s6 + $0x90] sm:$0xff] %vm912, %v755
    %932 = vst.msk [vmem:[%s6 + $0x98] sm:$0xff] %vm912, %v760
    %933 = vst.msk [vmem:[%s6 + $0xa0] sm:$0xff] %vm912, %v765
    %934 = vst.msk [vmem:[%s6 + $0xa8] sm:$0xff] %vm912, %v770
    %935 = vst.msk [vmem:[%s6 + $0xb0] sm:$0xff] %vm912, %v775
    %936 = vst.msk [vmem:[%s6 + $0xb8] sm:$0xff] %vm912, %v780
    %937 = vst.msk [vmem:[%s6 + $0xc0] sm:$0xff] %vm912, %v785
    %938 = vst.msk [vmem:[%s6 + $0xc8] sm:$0xff] %vm912, %v790
    %939 = vst.msk [vmem:[%s6 + $0xd0] sm:$0xff] %vm912, %v795
    %940 = vst.msk [vmem:[%s6 + $0xd8] sm:$0xff] %vm912, %v800
    %941 = vst.msk [vmem:[%s6 + $0xe0] sm:$0xff] %vm912, %v805
    %942 = vst.msk [vmem:[%s6 + $0xe8] sm:$0xff] %vm912, %v810
    %943 = vst.msk [vmem:[%s6 + $0xf0] sm:$0xff] %vm912, %v815
    %944 = vst.msk [vmem:[%s6 + $0xf8] sm:$0xff] %vm912, %v820
    %945 = vrot.lane.b32.xlu0 %v221, 120
    %v946 = vpop.permute.xlu0 %945
    %947 = vrot.lane.b32.xlu0 %v226, 120
    %v948 = vpop.permute.xlu0 %947
    %949 = vrot.lane.b32.xlu0 %v231, 120
    %v950 = vpop.permute.xlu0 %949
    %951 = vrot.lane.b32.xlu0 %v236, 120
    %v952 = vpop.permute.xlu0 %951
    %953 = vrot.lane.b32.xlu0 %v241, 120
    %v954 = vpop.permute.xlu0 %953
    %955 = vrot.lane.b32.xlu0 %v246, 120
    %v956 = vpop.permute.xlu0 %955
    %957 = vrot.lane.b32.xlu0 %v251, 120
    %v958 = vpop.permute.xlu0 %957
    %959 = vrot.lane.b32.xlu0 %v256, 120
    %v960 = vpop.permute.xlu0 %959
    %961 = vrot.lane.b32.xlu0 %v261, 120
    %v962 = vpop.permute.xlu0 %961
    %963 = vrot.lane.b32.xlu0 %v266, 120
    %v964 = vpop.permute.xlu0 %963
    %965 = vrot.lane.b32.xlu0 %v271, 120
    %v966 = vpop.permute.xlu0 %965
    %967 = vrot.lane.b32.xlu0 %v276, 120
    %v968 = vpop.permute.xlu0 %967
    %969 = vrot.lane.b32.xlu0 %v281, 120
    %v970 = vpop.permute.xlu0 %969
    %971 = vrot.lane.b32.xlu0 %v286, 120
    %v972 = vpop.permute.xlu0 %971
    %973 = vrot.lane.b32.xlu0 %v291, 120
    %v974 = vpop.permute.xlu0 %973
    %975 = vrot.lane.b32.xlu0 %v296, 120
    %v976 = vpop.permute.xlu0 %975
    %977 = vrot.lane.b32.xlu0 %v301, 120
    %v978 = vpop.permute.xlu0 %977
    %979 = vrot.lane.b32.xlu0 %v306, 120
    %v980 = vpop.permute.xlu0 %979
    %981 = vrot.lane.b32.xlu0 %v311, 120
    %v982 = vpop.permute.xlu0 %981
    %983 = vrot.lane.b32.xlu0 %v316, 120
    %v984 = vpop.permute.xlu0 %983
    %985 = vrot.lane.b32.xlu0 %v321, 120
    %v986 = vpop.permute.xlu0 %985
    %987 = vrot.lane.b32.xlu0 %v326, 120
    %v988 = vpop.permute.xlu0 %987
    %989 = vrot.lane.b32.xlu0 %v331, 120
    %v990 = vpop.permute.xlu0 %989
    %991 = vrot.lane.b32.xlu0 %v336, 120
    %v992 = vpop.permute.xlu0 %991
    %993 = vrot.lane.b32.xlu0 %v341, 120
    %v994 = vpop.permute.xlu0 %993
    %995 = vrot.lane.b32.xlu0 %v346, 120
    %v996 = vpop.permute.xlu0 %995
    %997 = vrot.lane.b32.xlu0 %v351, 120
    %v998 = vpop.permute.xlu0 %997
    %999 = vrot.lane.b32.xlu0 %v356, 120
    %v1000 = vpop.permute.xlu0 %999
    %1001 = vrot.lane.b32.xlu0 %v361, 120
    %v1002 = vpop.permute.xlu0 %1001
    %1003 = vrot.lane.b32.xlu0 %v366, 120
    %v1004 = vpop.permute.xlu0 %1003
    %1005 = vrot.lane.b32.xlu0 %v371, 120
    %v1006 = vpop.permute.xlu0 %1005
    %1007 = vrot.lane.b32.xlu0 %v376, 120
    %v1008 = vpop.permute.xlu0 %1007
    %v1041 = vsel %vm823, %v946, 1.0
    %v1042 = vsel %vm823, %v948, 1.0
    %v1043 = vsel %vm823, %v950, 1.0
    %v1044 = vsel %vm823, %v952, 1.0
    %v1045 = vsel %vm823, %v954, 1.0
    %v1046 = vsel %vm823, %v956, 1.0
    %v1047 = vsel %vm823, %v958, 1.0
    %v1048 = vsel %vm823, %v960, 1.0
    %v1049 = vsel %vm823, %v962, 1.0
    %v1050 = vsel %vm823, %v964, 1.0
    %v1051 = vsel %vm823, %v966, 1.0
    %v1052 = vsel %vm823, %v968, 1.0
    %v1053 = vsel %vm823, %v970, 1.0
    %v1054 = vsel %vm823, %v972, 1.0
    %v1055 = vsel %vm823, %v974, 1.0
    %v1056 = vsel %vm823, %v976, 1.0
    %v1057 = vsel %vm823, %v978, 1.0
    %v1058 = vsel %vm823, %v980, 1.0
    %v1059 = vsel %vm823, %v982, 1.0
    %v1060 = vsel %vm823, %v984, 1.0
    %v1061 = vsel %vm823, %v986, 1.0
    %v1062 = vsel %vm823, %v988, 1.0
    %v1063 = vsel %vm823, %v990, 1.0
    %v1064 = vsel %vm823, %v992, 1.0
    %v1065 = vsel %vm823, %v994, 1.0
    %v1066 = vsel %vm823, %v996, 1.0
    %v1067 = vsel %vm823, %v998, 1.0
    %v1068 = vsel %vm823, %v1000, 1.0
    %v1069 = vsel %vm823, %v1002, 1.0
    %v1070 = vsel %vm823, %v1004, 1.0
    %v1071 = vsel %vm823, %v1006, 1.0
    %v1072 = vsel %vm823, %v1008, 1.0
    %s1073 = scalar_lea.vmem %s4, 256
    %1074 = vst.msk [vmem:[%s1073] sm:$0xff] %vm856, %v1041
    %1075 = vst.msk [vmem:[%s1073 + $0x8] sm:$0xff] %vm856, %v1042
    %1076 = vst.msk [vmem:[%s1073 + $0x10] sm:$0xff] %vm856, %v1043
    %1077 = vst.msk [vmem:[%s1073 + $0x18] sm:$0xff] %vm856, %v1044
    %1078 = vst.msk [vmem:[%s1073 + $0x20] sm:$0xff] %vm856, %v1045
    %1079 = vst.msk [vmem:[%s1073 + $0x28] sm:$0xff] %vm856, %v1046
    %1080 = vst.msk [vmem:[%s1073 + $0x30] sm:$0xff] %vm856, %v1047
    %1081 = vst.msk [vmem:[%s1073 + $0x38] sm:$0xff] %vm856, %v1048
    %1082 = vst.msk [vmem:[%s1073 + $0x40] sm:$0xff] %vm856, %v1049
    %1083 = vst.msk [vmem:[%s1073 + $0x48] sm:$0xff] %vm856, %v1050
    %1084 = vst.msk [vmem:[%s1073 + $0x50] sm:$0xff] %vm856, %v1051
    %1085 = vst.msk [vmem:[%s1073 + $0x58] sm:$0xff] %vm856, %v1052
    %1086 = vst.msk [vmem:[%s1073 + $0x60] sm:$0xff] %vm856, %v1053
    %1087 = vst.msk [vmem:[%s1073 + $0x68] sm:$0xff] %vm856, %v1054
    %1088 = vst.msk [vmem:[%s1073 + $0x70] sm:$0xff] %vm856, %v1055
    %1089 = vst.msk [vmem:[%s1073 + $0x78] sm:$0xff] %vm856, %v1056
    %1090 = vst.msk [vmem:[%s1073 + $0x80] sm:$0xff] %vm856, %v1057
    %1091 = vst.msk [vmem:[%s1073 + $0x88] sm:$0xff] %vm856, %v1058
    %1092 = vst.msk [vmem:[%s1073 + $0x90] sm:$0xff] %vm856, %v1059
    %1093 = vst.msk [vmem:[%s1073 + $0x98] sm:$0xff] %vm856, %v1060
    %1094 = vst.msk [vmem:[%s1073 + $0xa0] sm:$0xff] %vm856, %v1061
    %1095 = vst.msk [vmem:[%s1073 + $0xa8] sm:$0xff] %vm856, %v1062
    %1096 = vst.msk [vmem:[%s1073 + $0xb0] sm:$0xff] %vm856, %v1063
    %1097 = vst.msk [vmem:[%s1073 + $0xb8] sm:$0xff] %vm856, %v1064
    %1098 = vst.msk [vmem:[%s1073 + $0xc0] sm:$0xff] %vm856, %v1065
    %1099 = vst.msk [vmem:[%s1073 + $0xc8] sm:$0xff] %vm856, %v1066
    %1100 = vst.msk [vmem:[%s1073 + $0xd0] sm:$0xff] %vm856, %v1067
    %1101 = vst.msk [vmem:[%s1073 + $0xd8] sm:$0xff] %vm856, %v1068
    %1102 = vst.msk [vmem:[%s1073 + $0xe0] sm:$0xff] %vm856, %v1069
    %1103 = vst.msk [vmem:[%s1073 + $0xe8] sm:$0xff] %vm856, %v1070
    %1104 = vst.msk [vmem:[%s1073 + $0xf0] sm:$0xff] %vm856, %v1071
    %1105 = vst.msk [vmem:[%s1073 + $0xf8] sm:$0xff] %vm856, %v1072
    %v1106 = vcombine.high %v898, %v898
    %v1108 = vunpack.c.l.s4 1966171168
    %v1109 = vunpack.c.0.s8 %v1108
    %v1110 = vlaneseq
    %v1111 = vshrl.u32 %v1110, 7
    %v1112 = vsub.s32 %v1109, %v1111
    %v1113 = vrot.slane %v1106, %v1112
    %s1115 = scalar_lea.vmem [#allocation2], 2
    %1116 = vst.msk [vmem:[%s1115] sm:$0x3] %vm910, %v1113
    %1149 = vrot.lane.b32.xlu0 %v665, 127
    %v1150 = vpop.permute.xlu0 %1149
    %1151 = vrot.lane.b32.xlu0 %v670, 127
    %v1152 = vpop.permute.xlu0 %1151
    %1153 = vrot.lane.b32.xlu0 %v675, 127
    %v1154 = vpop.permute.xlu0 %1153
    %1155 = vrot.lane.b32.xlu0 %v680, 127
    %v1156 = vpop.permute.xlu0 %1155
    %1157 = vrot.lane.b32.xlu0 %v685, 127
    %v1158 = vpop.permute.xlu0 %1157
    %1159 = vrot.lane.b32.xlu0 %v690, 127
    %v1160 = vpop.permute.xlu0 %1159
    %1161 = vrot.lane.b32.xlu0 %v695, 127
    %v1162 = vpop.permute.xlu0 %1161
    %1163 = vrot.lane.b32.xlu0 %v700, 127
    %v1164 = vpop.permute.xlu0 %1163
    %1165 = vrot.lane.b32.xlu0 %v705, 127
    %v1166 = vpop.permute.xlu0 %1165
    %1167 = vrot.lane.b32.xlu0 %v710, 127
    %v1168 = vpop.permute.xlu0 %1167
    %1169 = vrot.lane.b32.xlu0 %v715, 127
    %v1170 = vpop.permute.xlu0 %1169
    %1171 = vrot.lane.b32.xlu0 %v720, 127
    %v1172 = vpop.permute.xlu0 %1171
    %1173 = vrot.lane.b32.xlu0 %v725, 127
    %v1174 = vpop.permute.xlu0 %1173
    %1175 = vrot.lane.b32.xlu0 %v730, 127
    %v1176 = vpop.permute.xlu0 %1175
    %1177 = vrot.lane.b32.xlu0 %v735, 127
    %v1178 = vpop.permute.xlu0 %1177
    %1179 = vrot.lane.b32.xlu0 %v740, 127
    %v1180 = vpop.permute.xlu0 %1179
    %1181 = vrot.lane.b32.xlu0 %v745, 127
    %v1182 = vpop.permute.xlu0 %1181
    %1183 = vrot.lane.b32.xlu0 %v750, 127
    %v1184 = vpop.permute.xlu0 %1183
    %1185 = vrot.lane.b32.xlu0 %v755, 127
    %v1186 = vpop.permute.xlu0 %1185
    %1187 = vrot.lane.b32.xlu0 %v760, 127
    %v1188 = vpop.permute.xlu0 %1187
    %1189 = vrot.lane.b32.xlu0 %v765, 127
    %v1190 = vpop.permute.xlu0 %1189
    %1191 = vrot.lane.b32.xlu0 %v770, 127
    %v1192 = vpop.permute.xlu0 %1191
    %1193 = vrot.lane.b32.xlu0 %v775, 127
    %v1194 = vpop.permute.xlu0 %1193
    %1195 = vrot.lane.b32.xlu0 %v780, 127
    %v1196 = vpop.permute.xlu0 %1195
    %1197 = vrot.lane.b32.xlu0 %v785, 127
    %v1198 = vpop.permute.xlu0 %1197
    %1199 = vrot.lane.b32.xlu0 %v790, 127
    %v1200 = vpop.permute.xlu0 %1199
    %1201 = vrot.lane.b32.xlu0 %v795, 127
    %v1202 = vpop.permute.xlu0 %1201
    %1203 = vrot.lane.b32.xlu0 %v800, 127
    %v1204 = vpop.permute.xlu0 %1203
    %1205 = vrot.lane.b32.xlu0 %v805, 127
    %v1206 = vpop.permute.xlu0 %1205
    %1207 = vrot.lane.b32.xlu0 %v810, 127
    %v1208 = vpop.permute.xlu0 %1207
    %1209 = vrot.lane.b32.xlu0 %v815, 127
    %v1210 = vpop.permute.xlu0 %1209
    %1211 = vrot.lane.b32.xlu0 %v820, 127
    %v1212 = vpop.permute.xlu0 %1211
    %s1245 = scalar_lea.vmem %s6, 256
    %1246 = vst.msk [vmem:[%s1245] sm:$0xff] %vm912, %v1150
    %1247 = vst.msk [vmem:[%s1245 + $0x8] sm:$0xff] %vm912, %v1152
    %1248 = vst.msk [vmem:[%s1245 + $0x10] sm:$0xff] %vm912, %v1154
    %1249 = vst.msk [vmem:[%s1245 + $0x18] sm:$0xff] %vm912, %v1156
    %1250 = vst.msk [vmem:[%s1245 + $0x20] sm:$0xff] %vm912, %v1158
    %1251 = vst.msk [vmem:[%s1245 + $0x28] sm:$0xff] %vm912, %v1160
    %1252 = vst.msk [vmem:[%s1245 + $0x30] sm:$0xff] %vm912, %v1162
    %1253 = vst.msk [vmem:[%s1245 + $0x38] sm:$0xff] %vm912, %v1164
    %1254 = vst.msk [vmem:[%s1245 + $0x40] sm:$0xff] %vm912, %v1166
    %1255 = vst.msk [vmem:[%s1245 + $0x48] sm:$0xff] %vm912, %v1168
    %1256 = vst.msk [vmem:[%s1245 + $0x50] sm:$0xff] %vm912, %v1170
    %1257 = vst.msk [vmem:[%s1245 + $0x58] sm:$0xff] %vm912, %v1172
    %1258 = vst.msk [vmem:[%s1245 + $0x60] sm:$0xff] %vm912, %v1174
    %1259 = vst.msk [vmem:[%s1245 + $0x68] sm:$0xff] %vm912, %v1176
    %1260 = vst.msk [vmem:[%s1245 + $0x70] sm:$0xff] %vm912, %v1178
    %1261 = vst.msk [vmem:[%s1245 + $0x78] sm:$0xff] %vm912, %v1180
    %1262 = vst.msk [vmem:[%s1245 + $0x80] sm:$0xff] %vm912, %v1182
    %1263 = vst.msk [vmem:[%s1245 + $0x88] sm:$0xff] %vm912, %v1184
    %1264 = vst.msk [vmem:[%s1245 + $0x90] sm:$0xff] %vm912, %v1186
    %1265 = vst.msk [vmem:[%s1245 + $0x98] sm:$0xff] %vm912, %v1188
    %1266 = vst.msk [vmem:[%s1245 + $0xa0] sm:$0xff] %vm912, %v1190
    %1267 = vst.msk [vmem:[%s1245 + $0xa8] sm:$0xff] %vm912, %v1192
    %1268 = vst.msk [vmem:[%s1245 + $0xb0] sm:$0xff] %vm912, %v1194
    %1269 = vst.msk [vmem:[%s1245 + $0xb8] sm:$0xff] %vm912, %v1196
    %1270 = vst.msk [vmem:[%s1245 + $0xc0] sm:$0xff] %vm912, %v1198
    %1271 = vst.msk [vmem:[%s1245 + $0xc8] sm:$0xff] %vm912, %v1200
    %1272 = vst.msk [vmem:[%s1245 + $0xd0] sm:$0xff] %vm912, %v1202
    %1273 = vst.msk [vmem:[%s1245 + $0xd8] sm:$0xff] %vm912, %v1204
    %1274 = vst.msk [vmem:[%s1245 + $0xe0] sm:$0xff] %vm912, %v1206
    %1275 = vst.msk [vmem:[%s1245 + $0xe8] sm:$0xff] %vm912, %v1208
    %1276 = vst.msk [vmem:[%s1245 + $0xf0] sm:$0xff] %vm912, %v1210
    %1277 = vst.msk [vmem:[%s1245 + $0xf8] sm:$0xff] %vm912, %v1212
    %1278 = vrot.lane.b32.xlu0 %v221, 112
    %v1279 = vpop.permute.xlu0 %1278
    %1280 = vrot.lane.b32.xlu0 %v226, 112
    %v1281 = vpop.permute.xlu0 %1280
    %1282 = vrot.lane.b32.xlu0 %v231, 112
    %v1283 = vpop.permute.xlu0 %1282
    %1284 = vrot.lane.b32.xlu0 %v236, 112
    %v1285 = vpop.permute.xlu0 %1284
    %1286 = vrot.lane.b32.xlu0 %v241, 112
    %v1287 = vpop.permute.xlu0 %1286
    %1288 = vrot.lane.b32.xlu0 %v246, 112
    %v1289 = vpop.permute.xlu0 %1288
    %1290 = vrot.lane.b32.xlu0 %v251, 112
    %v1291 = vpop.permute.xlu0 %1290
    %1292 = vrot.lane.b32.xlu0 %v256, 112
    %v1293 = vpop.permute.xlu0 %1292
    %1294 = vrot.lane.b32.xlu0 %v261, 112
    %v1295 = vpop.permute.xlu0 %1294
    %1296 = vrot.lane.b32.xlu0 %v266, 112
    %v1297 = vpop.permute.xlu0 %1296
    %1298 = vrot.lane.b32.xlu0 %v271, 112
    %v1299 = vpop.permute.xlu0 %1298
    %1300 = vrot.lane.b32.xlu0 %v276, 112
    %v1301 = vpop.permute.xlu0 %1300
    %1302 = vrot.lane.b32.xlu0 %v281, 112
    %v1303 = vpop.permute.xlu0 %1302
    %1304 = vrot.lane.b32.xlu0 %v286, 112
    %v1305 = vpop.permute.xlu0 %1304
    %1306 = vrot.lane.b32.xlu0 %v291, 112
    %v1307 = vpop.permute.xlu0 %1306
    %1308 = vrot.lane.b32.xlu0 %v296, 112
    %v1309 = vpop.permute.xlu0 %1308
    %1310 = vrot.lane.b32.xlu0 %v301, 112
    %v1311 = vpop.permute.xlu0 %1310
    %1312 = vrot.lane.b32.xlu0 %v306, 112
    %v1313 = vpop.permute.xlu0 %1312
    %1314 = vrot.lane.b32.xlu0 %v311, 112
    %v1315 = vpop.permute.xlu0 %1314
    %1316 = vrot.lane.b32.xlu0 %v316, 112
    %v1317 = vpop.permute.xlu0 %1316
    %1318 = vrot.lane.b32.xlu0 %v321, 112
    %v1319 = vpop.permute.xlu0 %1318
    %1320 = vrot.lane.b32.xlu0 %v326, 112
    %v1321 = vpop.permute.xlu0 %1320
    %1322 = vrot.lane.b32.xlu0 %v331, 112
    %v1323 = vpop.permute.xlu0 %1322
    %1324 = vrot.lane.b32.xlu0 %v336, 112
    %v1325 = vpop.permute.xlu0 %1324
    %1326 = vrot.lane.b32.xlu0 %v341, 112
    %v1327 = vpop.permute.xlu0 %1326
    %1328 = vrot.lane.b32.xlu0 %v346, 112
    %v1329 = vpop.permute.xlu0 %1328
    %1330 = vrot.lane.b32.xlu0 %v351, 112
    %v1331 = vpop.permute.xlu0 %1330
    %1332 = vrot.lane.b32.xlu0 %v356, 112
    %v1333 = vpop.permute.xlu0 %1332
    %1334 = vrot.lane.b32.xlu0 %v361, 112
    %v1335 = vpop.permute.xlu0 %1334
    %1336 = vrot.lane.b32.xlu0 %v366, 112
    %v1337 = vpop.permute.xlu0 %1336
    %1338 = vrot.lane.b32.xlu0 %v371, 112
    %v1339 = vpop.permute.xlu0 %1338
    %1340 = vrot.lane.b32.xlu0 %v376, 112
    %v1341 = vpop.permute.xlu0 %1340
    %v1374 = vsel %vm823, %v1279, 1.0
    %v1375 = vsel %vm823, %v1281, 1.0
    %v1376 = vsel %vm823, %v1283, 1.0
    %v1377 = vsel %vm823, %v1285, 1.0
    %v1378 = vsel %vm823, %v1287, 1.0
    %v1379 = vsel %vm823, %v1289, 1.0
    %v1380 = vsel %vm823, %v1291, 1.0
    %v1381 = vsel %vm823, %v1293, 1.0
    %v1382 = vsel %vm823, %v1295, 1.0
    %v1383 = vsel %vm823, %v1297, 1.0
    %v1384 = vsel %vm823, %v1299, 1.0
    %v1385 = vsel %vm823, %v1301, 1.0
    %v1386 = vsel %vm823, %v1303, 1.0
    %v1387 = vsel %vm823, %v1305, 1.0
    %v1388 = vsel %vm823, %v1307, 1.0
    %v1389 = vsel %vm823, %v1309, 1.0
    %v1390 = vsel %vm823, %v1311, 1.0
    %v1391 = vsel %vm823, %v1313, 1.0
    %v1392 = vsel %vm823, %v1315, 1.0
    %v1393 = vsel %vm823, %v1317, 1.0
    %v1394 = vsel %vm823, %v1319, 1.0
    %v1395 = vsel %vm823, %v1321, 1.0
    %v1396 = vsel %vm823, %v1323, 1.0
    %v1397 = vsel %vm823, %v1325, 1.0
    %v1398 = vsel %vm823, %v1327, 1.0
    %v1399 = vsel %vm823, %v1329, 1.0
    %v1400 = vsel %vm823, %v1331, 1.0
    %v1401 = vsel %vm823, %v1333, 1.0
    %v1402 = vsel %vm823, %v1335, 1.0
    %v1403 = vsel %vm823, %v1337, 1.0
    %v1404 = vsel %vm823, %v1339, 1.0
    %v1405 = vsel %vm823, %v1341, 1.0
    %s1406 = scalar_lea.vmem %s4, 512
    %1407 = vst.msk [vmem:[%s1406] sm:$0xff] %vm856, %v1374
    %1408 = vst.msk [vmem:[%s1406 + $0x8] sm:$0xff] %vm856, %v1375
    %1409 = vst.msk [vmem:[%s1406 + $0x10] sm:$0xff] %vm856, %v1376
    %1410 = vst.msk [vmem:[%s1406 + $0x18] sm:$0xff] %vm856, %v1377
    %1411 = vst.msk [vmem:[%s1406 + $0x20] sm:$0xff] %vm856, %v1378
    %1412 = vst.msk [vmem:[%s1406 + $0x28] sm:$0xff] %vm856, %v1379
    %1413 = vst.msk [vmem:[%s1406 + $0x30] sm:$0xff] %vm856, %v1380
    %1414 = vst.msk [vmem:[%s1406 + $0x38] sm:$0xff] %vm856, %v1381
    %1415 = vst.msk [vmem:[%s1406 + $0x40] sm:$0xff] %vm856, %v1382
    %1416 = vst.msk [vmem:[%s1406 + $0x48] sm:$0xff] %vm856, %v1383
    %1417 = vst.msk [vmem:[%s1406 + $0x50] sm:$0xff] %vm856, %v1384
    %1418 = vst.msk [vmem:[%s1406 + $0x58] sm:$0xff] %vm856, %v1385
    %1419 = vst.msk [vmem:[%s1406 + $0x60] sm:$0xff] %vm856, %v1386
    %1420 = vst.msk [vmem:[%s1406 + $0x68] sm:$0xff] %vm856, %v1387
    %1421 = vst.msk [vmem:[%s1406 + $0x70] sm:$0xff] %vm856, %v1388
    %1422 = vst.msk [vmem:[%s1406 + $0x78] sm:$0xff] %vm856, %v1389
    %1423 = vst.msk [vmem:[%s1406 + $0x80] sm:$0xff] %vm856, %v1390
    %1424 = vst.msk [vmem:[%s1406 + $0x88] sm:$0xff] %vm856, %v1391
    %1425 = vst.msk [vmem:[%s1406 + $0x90] sm:$0xff] %vm856, %v1392
    %1426 = vst.msk [vmem:[%s1406 + $0x98] sm:$0xff] %vm856, %v1393
    %1427 = vst.msk [vmem:[%s1406 + $0xa0] sm:$0xff] %vm856, %v1394
    %1428 = vst.msk [vmem:[%s1406 + $0xa8] sm:$0xff] %vm856, %v1395
    %1429 = vst.msk [vmem:[%s1406 + $0xb0] sm:$0xff] %vm856, %v1396
    %1430 = vst.msk [vmem:[%s1406 + $0xb8] sm:$0xff] %vm856, %v1397
    %1431 = vst.msk [vmem:[%s1406 + $0xc0] sm:$0xff] %vm856, %v1398
    %1432 = vst.msk [vmem:[%s1406 + $0xc8] sm:$0xff] %vm856, %v1399
    %1433 = vst.msk [vmem:[%s1406 + $0xd0] sm:$0xff] %vm856, %v1400
    %1434 = vst.msk [vmem:[%s1406 + $0xd8] sm:$0xff] %vm856, %v1401
    %1435 = vst.msk [vmem:[%s1406 + $0xe0] sm:$0xff] %vm856, %v1402
    %1436 = vst.msk [vmem:[%s1406 + $0xe8] sm:$0xff] %vm856, %v1403
    %1437 = vst.msk [vmem:[%s1406 + $0xf0] sm:$0xff] %vm856, %v1404
    %1438 = vst.msk [vmem:[%s1406 + $0xf8] sm:$0xff] %vm856, %v1405
    %v1439 = vcombine.high %v905, %v905
    %s1441 = scalar_lea.vmem [#allocation2], 4
    %1442 = vst.msk [vmem:[%s1441] sm:$0x3] %vm910, %v1439
    %1443 = vrot.lane.b32.xlu0 %v665, 126
    %v1444 = vpop.permute.xlu0 %1443
    %1445 = vrot.lane.b32.xlu0 %v670, 126
    %v1446 = vpop.permute.xlu0 %1445
    %1447 = vrot.lane.b32.xlu0 %v675, 126
    %v1448 = vpop.permute.xlu0 %1447
    %1449 = vrot.lane.b32.xlu0 %v680, 126
    %v1450 = vpop.permute.xlu0 %1449
    %1451 = vrot.lane.b32.xlu0 %v685, 126
    %v1452 = vpop.permute.xlu0 %1451
    %1453 = vrot.lane.b32.xlu0 %v690, 126
    %v1454 = vpop.permute.xlu0 %1453
    %1455 = vrot.lane.b32.xlu0 %v695, 126
    %v1456 = vpop.permute.xlu0 %1455
    %1457 = vrot.lane.b32.xlu0 %v700, 126
    %v1458 = vpop.permute.xlu0 %1457
    %1459 = vrot.lane.b32.xlu0 %v705, 126
    %v1460 = vpop.permute.xlu0 %1459
    %1461 = vrot.lane.b32.xlu0 %v710, 126
    %v1462 = vpop.permute.xlu0 %1461
    %1463 = vrot.lane.b32.xlu0 %v715, 126
    %v1464 = vpop.permute.xlu0 %1463
    %1465 = vrot.lane.b32.xlu0 %v720, 126
    %v1466 = vpop.permute.xlu0 %1465
    %1467 = vrot.lane.b32.xlu0 %v725, 126
    %v1468 = vpop.permute.xlu0 %1467
    %1469 = vrot.lane.b32.xlu0 %v730, 126
    %v1470 = vpop.permute.xlu0 %1469
    %1471 = vrot.lane.b32.xlu0 %v735, 126
    %v1472 = vpop.permute.xlu0 %1471
    %1473 = vrot.lane.b32.xlu0 %v740, 126
    %v1474 = vpop.permute.xlu0 %1473
    %1475 = vrot.lane.b32.xlu0 %v745, 126
    %v1476 = vpop.permute.xlu0 %1475
    %1477 = vrot.lane.b32.xlu0 %v750, 126
    %v1478 = vpop.permute.xlu0 %1477
    %1479 = vrot.lane.b32.xlu0 %v755, 126
    %v1480 = vpop.permute.xlu0 %1479
    %1481 = vrot.lane.b32.xlu0 %v760, 126
    %v1482 = vpop.permute.xlu0 %1481
    %1483 = vrot.lane.b32.xlu0 %v765, 126
    %v1484 = vpop.permute.xlu0 %1483
    %1485 = vrot.lane.b32.xlu0 %v770, 126
    %v1486 = vpop.permute.xlu0 %1485
    %1487 = vrot.lane.b32.xlu0 %v775, 126
    %v1488 = vpop.permute.xlu0 %1487
    %1489 = vrot.lane.b32.xlu0 %v780, 126
    %v1490 = vpop.permute.xlu0 %1489
    %1491 = vrot.lane.b32.xlu0 %v785, 126
    %v1492 = vpop.permute.xlu0 %1491
    %1493 = vrot.lane.b32.xlu0 %v790, 126
    %v1494 = vpop.permute.xlu0 %1493
    %1495 = vrot.lane.b32.xlu0 %v795, 126
    %v1496 = vpop.permute.xlu0 %1495
    %1497 = vrot.lane.b32.xlu0 %v800, 126
    %v1498 = vpop.permute.xlu0 %1497
    %1499 = vrot.lane.b32.xlu0 %v805, 126
    %v1500 = vpop.permute.xlu0 %1499
    %1501 = vrot.lane.b32.xlu0 %v810, 126
    %v1502 = vpop.permute.xlu0 %1501
    %1503 = vrot.lane.b32.xlu0 %v815, 126
    %v1504 = vpop.permute.xlu0 %1503
    %1505 = vrot.lane.b32.xlu0 %v820, 126
    %v1506 = vpop.permute.xlu0 %1505
    %s1539 = scalar_lea.vmem %s6, 512
    %1540 = vst.msk [vmem:[%s1539] sm:$0xff] %vm912, %v1444
    %1541 = vst.msk [vmem:[%s1539 + $0x8] sm:$0xff] %vm912, %v1446
    %1542 = vst.msk [vmem:[%s1539 + $0x10] sm:$0xff] %vm912, %v1448
    %1543 = vst.msk [vmem:[%s1539 + $0x18] sm:$0xff] %vm912, %v1450
    %1544 = vst.msk [vmem:[%s1539 + $0x20] sm:$0xff] %vm912, %v1452
    %1545 = vst.msk [vmem:[%s1539 + $0x28] sm:$0xff] %vm912, %v1454
    %1546 = vst.msk [vmem:[%s1539 + $0x30] sm:$0xff] %vm912, %v1456
    %1547 = vst.msk [vmem:[%s1539 + $0x38] sm:$0xff] %vm912, %v1458
    %1548 = vst.msk [vmem:[%s1539 + $0x40] sm:$0xff] %vm912, %v1460
    %1549 = vst.msk [vmem:[%s1539 + $0x48] sm:$0xff] %vm912, %v1462
    %1550 = vst.msk [vmem:[%s1539 + $0x50] sm:$0xff] %vm912, %v1464
    %1551 = vst.msk [vmem:[%s1539 + $0x58] sm:$0xff] %vm912, %v1466
    %1552 = vst.msk [vmem:[%s1539 + $0x60] sm:$0xff] %vm912, %v1468
    %1553 = vst.msk [vmem:[%s1539 + $0x68] sm:$0xff] %vm912, %v1470
    %1554 = vst.msk [vmem:[%s1539 + $0x70] sm:$0xff] %vm912, %v1472
    %1555 = vst.msk [vmem:[%s1539 + $0x78] sm:$0xff] %vm912, %v1474
    %1556 = vst.msk [vmem:[%s1539 + $0x80] sm:$0xff] %vm912, %v1476
    %1557 = vst.msk [vmem:[%s1539 + $0x88] sm:$0xff] %vm912, %v1478
    %1558 = vst.msk [vmem:[%s1539 + $0x90] sm:$0xff] %vm912, %v1480
    %1559 = vst.msk [vmem:[%s1539 + $0x98] sm:$0xff] %vm912, %v1482
    %1560 = vst.msk [vmem:[%s1539 + $0xa0] sm:$0xff] %vm912, %v1484
    %1561 = vst.msk [vmem:[%s1539 + $0xa8] sm:$0xff] %vm912, %v1486
    %1562 = vst.msk [vmem:[%s1539 + $0xb0] sm:$0xff] %vm912, %v1488
    %1563 = vst.msk [vmem:[%s1539 + $0xb8] sm:$0xff] %vm912, %v1490
    %1564 = vst.msk [vmem:[%s1539 + $0xc0] sm:$0xff] %vm912, %v1492
    %1565 = vst.msk [vmem:[%s1539 + $0xc8] sm:$0xff] %vm912, %v1494
    %1566 = vst.msk [vmem:[%s1539 + $0xd0] sm:$0xff] %vm912, %v1496
    %1567 = vst.msk [vmem:[%s1539 + $0xd8] sm:$0xff] %vm912, %v1498
    %1568 = vst.msk [vmem:[%s1539 + $0xe0] sm:$0xff] %vm912, %v1500
    %1569 = vst.msk [vmem:[%s1539 + $0xe8] sm:$0xff] %vm912, %v1502
    %1570 = vst.msk [vmem:[%s1539 + $0xf0] sm:$0xff] %vm912, %v1504
    %1571 = vst.msk [vmem:[%s1539 + $0xf8] sm:$0xff] %vm912, %v1506
    %1572 = vrot.lane.b32.xlu0 %v221, 104
    %v1573 = vpop.permute.xlu0 %1572
    %1574 = vrot.lane.b32.xlu0 %v226, 104
    %v1575 = vpop.permute.xlu0 %1574
    %1576 = vrot.lane.b32.xlu0 %v231, 104
    %v1577 = vpop.permute.xlu0 %1576
    %1578 = vrot.lane.b32.xlu0 %v236, 104
    %v1579 = vpop.permute.xlu0 %1578
    %1580 = vrot.lane.b32.xlu0 %v241, 104
    %v1581 = vpop.permute.xlu0 %1580
    %1582 = vrot.lane.b32.xlu0 %v246, 104
    %v1583 = vpop.permute.xlu0 %1582
    %1584 = vrot.lane.b32.xlu0 %v251, 104
    %v1585 = vpop.permute.xlu0 %1584
    %1586 = vrot.lane.b32.xlu0 %v256, 104
    %v1587 = vpop.permute.xlu0 %1586
    %1588 = vrot.lane.b32.xlu0 %v261, 104
    %v1589 = vpop.permute.xlu0 %1588
    %1590 = vrot.lane.b32.xlu0 %v266, 104
    %v1591 = vpop.permute.xlu0 %1590
    %1592 = vrot.lane.b32.xlu0 %v271, 104
    %v1593 = vpop.permute.xlu0 %1592
    %1594 = vrot.lane.b32.xlu0 %v276, 104
    %v1595 = vpop.permute.xlu0 %1594
    %1596 = vrot.lane.b32.xlu0 %v281, 104
    %v1597 = vpop.permute.xlu0 %1596
    %1598 = vrot.lane.b32.xlu0 %v286, 104
    %v1599 = vpop.permute.xlu0 %1598
    %1600 = vrot.lane.b32.xlu0 %v291, 104
    %v1601 = vpop.permute.xlu0 %1600
    %1602 = vrot.lane.b32.xlu0 %v296, 104
    %v1603 = vpop.permute.xlu0 %1602
    %1604 = vrot.lane.b32.xlu0 %v301, 104
    %v1605 = vpop.permute.xlu0 %1604
    %1606 = vrot.lane.b32.xlu0 %v306, 104
    %v1607 = vpop.permute.xlu0 %1606
    %1608 = vrot.lane.b32.xlu0 %v311, 104
    %v1609 = vpop.permute.xlu0 %1608
    %1610 = vrot.lane.b32.xlu0 %v316, 104
    %v1611 = vpop.permute.xlu0 %1610
    %1612 = vrot.lane.b32.xlu0 %v321, 104
    %v1613 = vpop.permute.xlu0 %1612
    %1614 = vrot.lane.b32.xlu0 %v326, 104
    %v1615 = vpop.permute.xlu0 %1614
    %1616 = vrot.lane.b32.xlu0 %v331, 104
    %v1617 = vpop.permute.xlu0 %1616
    %1618 = vrot.lane.b32.xlu0 %v336, 104
    %v1619 = vpop.permute.xlu0 %1618
    %1620 = vrot.lane.b32.xlu0 %v341, 104
    %v1621 = vpop.permute.xlu0 %1620
    %1622 = vrot.lane.b32.xlu0 %v346, 104
    %v1623 = vpop.permute.xlu0 %1622
    %1624 = vrot.lane.b32.xlu0 %v351, 104
    %v1625 = vpop.permute.xlu0 %1624
    %1626 = vrot.lane.b32.xlu0 %v356, 104
    %v1627 = vpop.permute.xlu0 %1626
    %1628 = vrot.lane.b32.xlu0 %v361, 104
    %v1629 = vpop.permute.xlu0 %1628
    %1630 = vrot.lane.b32.xlu0 %v366, 104
    %v1631 = vpop.permute.xlu0 %1630
    %1632 = vrot.lane.b32.xlu0 %v371, 104
    %v1633 = vpop.permute.xlu0 %1632
    %1634 = vrot.lane.b32.xlu0 %v376, 104
    %v1635 = vpop.permute.xlu0 %1634
    %v1668 = vsel %vm823, %v1573, 1.0
    %v1669 = vsel %vm823, %v1575, 1.0
    %v1670 = vsel %vm823, %v1577, 1.0
    %v1671 = vsel %vm823, %v1579, 1.0
    %v1672 = vsel %vm823, %v1581, 1.0
    %v1673 = vsel %vm823, %v1583, 1.0
    %v1674 = vsel %vm823, %v1585, 1.0
    %v1675 = vsel %vm823, %v1587, 1.0
    %v1676 = vsel %vm823, %v1589, 1.0
    %v1677 = vsel %vm823, %v1591, 1.0
    %v1678 = vsel %vm823, %v1593, 1.0
    %v1679 = vsel %vm823, %v1595, 1.0
    %v1680 = vsel %vm823, %v1597, 1.0
    %v1681 = vsel %vm823, %v1599, 1.0
    %v1682 = vsel %vm823, %v1601, 1.0
    %v1683 = vsel %vm823, %v1603, 1.0
    %v1684 = vsel %vm823, %v1605, 1.0
    %v1685 = vsel %vm823, %v1607, 1.0
    %v1686 = vsel %vm823, %v1609, 1.0
    %v1687 = vsel %vm823, %v1611, 1.0
    %v1688 = vsel %vm823, %v1613, 1.0
    %v1689 = vsel %vm823, %v1615, 1.0
    %v1690 = vsel %vm823, %v1617, 1.0
    %v1691 = vsel %vm823, %v1619, 1.0
    %v1692 = vsel %vm823, %v1621, 1.0
    %v1693 = vsel %vm823, %v1623, 1.0
    %v1694 = vsel %vm823, %v1625, 1.0
    %v1695 = vsel %vm823, %v1627, 1.0
    %v1696 = vsel %vm823, %v1629, 1.0
    %v1697 = vsel %vm823, %v1631, 1.0
    %v1698 = vsel %vm823, %v1633, 1.0
    %v1699 = vsel %vm823, %v1635, 1.0
    %s1700 = scalar_lea.vmem %s4, 768
    %1701 = vst.msk [vmem:[%s1700] sm:$0xff] %vm856, %v1668
    %1702 = vst.msk [vmem:[%s1700 + $0x8] sm:$0xff] %vm856, %v1669
    %1703 = vst.msk [vmem:[%s1700 + $0x10] sm:$0xff] %vm856, %v1670
    %1704 = vst.msk [vmem:[%s1700 + $0x18] sm:$0xff] %vm856, %v1671
    %1705 = vst.msk [vmem:[%s1700 + $0x20] sm:$0xff] %vm856, %v1672
    %1706 = vst.msk [vmem:[%s1700 + $0x28] sm:$0xff] %vm856, %v1673
    %1707 = vst.msk [vmem:[%s1700 + $0x30] sm:$0xff] %vm856, %v1674
    %1708 = vst.msk [vmem:[%s1700 + $0x38] sm:$0xff] %vm856, %v1675
    %1709 = vst.msk [vmem:[%s1700 + $0x40] sm:$0xff] %vm856, %v1676
    %1710 = vst.msk [vmem:[%s1700 + $0x48] sm:$0xff] %vm856, %v1677
    %1711 = vst.msk [vmem:[%s1700 + $0x50] sm:$0xff] %vm856, %v1678
    %1712 = vst.msk [vmem:[%s1700 + $0x58] sm:$0xff] %vm856, %v1679
    %1713 = vst.msk [vmem:[%s1700 + $0x60] sm:$0xff] %vm856, %v1680
    %1714 = vst.msk [vmem:[%s1700 + $0x68] sm:$0xff] %vm856, %v1681
    %1715 = vst.msk [vmem:[%s1700 + $0x70] sm:$0xff] %vm856, %v1682
    %1716 = vst.msk [vmem:[%s1700 + $0x78] sm:$0xff] %vm856, %v1683
    %1717 = vst.msk [vmem:[%s1700 + $0x80] sm:$0xff] %vm856, %v1684
    %1718 = vst.msk [vmem:[%s1700 + $0x88] sm:$0xff] %vm856, %v1685
    %1719 = vst.msk [vmem:[%s1700 + $0x90] sm:$0xff] %vm856, %v1686
    %1720 = vst.msk [vmem:[%s1700 + $0x98] sm:$0xff] %vm856, %v1687
    %1721 = vst.msk [vmem:[%s1700 + $0xa0] sm:$0xff] %vm856, %v1688
    %1722 = vst.msk [vmem:[%s1700 + $0xa8] sm:$0xff] %vm856, %v1689
    %1723 = vst.msk [vmem:[%s1700 + $0xb0] sm:$0xff] %vm856, %v1690
    %1724 = vst.msk [vmem:[%s1700 + $0xb8] sm:$0xff] %vm856, %v1691
    %1725 = vst.msk [vmem:[%s1700 + $0xc0] sm:$0xff] %vm856, %v1692
    %1726 = vst.msk [vmem:[%s1700 + $0xc8] sm:$0xff] %vm856, %v1693
    %1727 = vst.msk [vmem:[%s1700 + $0xd0] sm:$0xff] %vm856, %v1694
    %1728 = vst.msk [vmem:[%s1700 + $0xd8] sm:$0xff] %vm856, %v1695
    %1729 = vst.msk [vmem:[%s1700 + $0xe0] sm:$0xff] %vm856, %v1696
    %1730 = vst.msk [vmem:[%s1700 + $0xe8] sm:$0xff] %vm856, %v1697
    %1731 = vst.msk [vmem:[%s1700 + $0xf0] sm:$0xff] %vm856, %v1698
    %1732 = vst.msk [vmem:[%s1700 + $0xf8] sm:$0xff] %vm856, %v1699
    %v1733 = vcombine.high %v1113, %v1113
    %s1735 = scalar_lea.vmem [#allocation2], 6
    %1736 = vst.msk [vmem:[%s1735] sm:$0x3] %vm910, %v1733
    %1737 = vrot.lane.b32.xlu0 %v665, 125
    %v1738 = vpop.permute.xlu0 %1737
    %1739 = vrot.lane.b32.xlu0 %v670, 125
    %v1740 = vpop.permute.xlu0 %1739
    %1741 = vrot.lane.b32.xlu0 %v675, 125
    %v1742 = vpop.permute.xlu0 %1741
    %1743 = vrot.lane.b32.xlu0 %v680, 125
    %v1744 = vpop.permute.xlu0 %1743
    %1745 = vrot.lane.b32.xlu0 %v685, 125
    %v1746 = vpop.permute.xlu0 %1745
    %1747 = vrot.lane.b32.xlu0 %v690, 125
    %v1748 = vpop.permute.xlu0 %1747
    %1749 = vrot.lane.b32.xlu0 %v695, 125
    %v1750 = vpop.permute.xlu0 %1749
    %1751 = vrot.lane.b32.xlu0 %v700, 125
    %v1752 = vpop.permute.xlu0 %1751
    %1753 = vrot.lane.b32.xlu0 %v705, 125
    %v1754 = vpop.permute.xlu0 %1753
    %1755 = vrot.lane.b32.xlu0 %v710, 125
    %v1756 = vpop.permute.xlu0 %1755
    %1757 = vrot.lane.b32.xlu0 %v715, 125
    %v1758 = vpop.permute.xlu0 %1757
    %1759 = vrot.lane.b32.xlu0 %v720, 125
    %v1760 = vpop.permute.xlu0 %1759
    %1761 = vrot.lane.b32.xlu0 %v725, 125
    %v1762 = vpop.permute.xlu0 %1761
    %1763 = vrot.lane.b32.xlu0 %v730, 125
    %v1764 = vpop.permute.xlu0 %1763
    %1765 = vrot.lane.b32.xlu0 %v735, 125
    %v1766 = vpop.permute.xlu0 %1765
    %1767 = vrot.lane.b32.xlu0 %v740, 125
    %v1768 = vpop.permute.xlu0 %1767
    %1769 = vrot.lane.b32.xlu0 %v745, 125
    %v1770 = vpop.permute.xlu0 %1769
    %1771 = vrot.lane.b32.xlu0 %v750, 125
    %v1772 = vpop.permute.xlu0 %1771
    %1773 = vrot.lane.b32.xlu0 %v755, 125
    %v1774 = vpop.permute.xlu0 %1773
    %1775 = vrot.lane.b32.xlu0 %v760, 125
    %v1776 = vpop.permute.xlu0 %1775
    %1777 = vrot.lane.b32.xlu0 %v765, 125
    %v1778 = vpop.permute.xlu0 %1777
    %1779 = vrot.lane.b32.xlu0 %v770, 125
    %v1780 = vpop.permute.xlu0 %1779
    %1781 = vrot.lane.b32.xlu0 %v775, 125
    %v1782 = vpop.permute.xlu0 %1781
    %1783 = vrot.lane.b32.xlu0 %v780, 125
    %v1784 = vpop.permute.xlu0 %1783
    %1785 = vrot.lane.b32.xlu0 %v785, 125
    %v1786 = vpop.permute.xlu0 %1785
    %1787 = vrot.lane.b32.xlu0 %v790, 125
    %v1788 = vpop.permute.xlu0 %1787
    %1789 = vrot.lane.b32.xlu0 %v795, 125
    %v1790 = vpop.permute.xlu0 %1789
    %1791 = vrot.lane.b32.xlu0 %v800, 125
    %v1792 = vpop.permute.xlu0 %1791
    %1793 = vrot.lane.b32.xlu0 %v805, 125
    %v1794 = vpop.permute.xlu0 %1793
    %1795 = vrot.lane.b32.xlu0 %v810, 125
    %v1796 = vpop.permute.xlu0 %1795
    %1797 = vrot.lane.b32.xlu0 %v815, 125
    %v1798 = vpop.permute.xlu0 %1797
    %1799 = vrot.lane.b32.xlu0 %v820, 125
    %v1800 = vpop.permute.xlu0 %1799
    %s1833 = scalar_lea.vmem %s6, 768
    %1834 = vst.msk [vmem:[%s1833] sm:$0xff] %vm912, %v1738
    %1835 = vst.msk [vmem:[%s1833 + $0x8] sm:$0xff] %vm912, %v1740
    %1836 = vst.msk [vmem:[%s1833 + $0x10] sm:$0xff] %vm912, %v1742
    %1837 = vst.msk [vmem:[%s1833 + $0x18] sm:$0xff] %vm912, %v1744
    %1838 = vst.msk [vmem:[%s1833 + $0x20] sm:$0xff] %vm912, %v1746
    %1839 = vst.msk [vmem:[%s1833 + $0x28] sm:$0xff] %vm912, %v1748
    %1840 = vst.msk [vmem:[%s1833 + $0x30] sm:$0xff] %vm912, %v1750
    %1841 = vst.msk [vmem:[%s1833 + $0x38] sm:$0xff] %vm912, %v1752
    %1842 = vst.msk [vmem:[%s1833 + $0x40] sm:$0xff] %vm912, %v1754
    %1843 = vst.msk [vmem:[%s1833 + $0x48] sm:$0xff] %vm912, %v1756
    %1844 = vst.msk [vmem:[%s1833 + $0x50] sm:$0xff] %vm912, %v1758
    %1845 = vst.msk [vmem:[%s1833 + $0x58] sm:$0xff] %vm912, %v1760
    %1846 = vst.msk [vmem:[%s1833 + $0x60] sm:$0xff] %vm912, %v1762
    %1847 = vst.msk [vmem:[%s1833 + $0x68] sm:$0xff] %vm912, %v1764
    %1848 = vst.msk [vmem:[%s1833 + $0x70] sm:$0xff] %vm912, %v1766
    %1849 = vst.msk [vmem:[%s1833 + $0x78] sm:$0xff] %vm912, %v1768
    %1850 = vst.msk [vmem:[%s1833 + $0x80] sm:$0xff] %vm912, %v1770
    %1851 = vst.msk [vmem:[%s1833 + $0x88] sm:$0xff] %vm912, %v1772
    %1852 = vst.msk [vmem:[%s1833 + $0x90] sm:$0xff] %vm912, %v1774
    %1853 = vst.msk [vmem:[%s1833 + $0x98] sm:$0xff] %vm912, %v1776
    %1854 = vst.msk [vmem:[%s1833 + $0xa0] sm:$0xff] %vm912, %v1778
    %1855 = vst.msk [vmem:[%s1833 + $0xa8] sm:$0xff] %vm912, %v1780
    %1856 = vst.msk [vmem:[%s1833 + $0xb0] sm:$0xff] %vm912, %v1782
    %1857 = vst.msk [vmem:[%s1833 + $0xb8] sm:$0xff] %vm912, %v1784
    %1858 = vst.msk [vmem:[%s1833 + $0xc0] sm:$0xff] %vm912, %v1786
    %1859 = vst.msk [vmem:[%s1833 + $0xc8] sm:$0xff] %vm912, %v1788
    %1860 = vst.msk [vmem:[%s1833 + $0xd0] sm:$0xff] %vm912, %v1790
    %1861 = vst.msk [vmem:[%s1833 + $0xd8] sm:$0xff] %vm912, %v1792
    %1862 = vst.msk [vmem:[%s1833 + $0xe0] sm:$0xff] %vm912, %v1794
    %1863 = vst.msk [vmem:[%s1833 + $0xe8] sm:$0xff] %vm912, %v1796
    %1864 = vst.msk [vmem:[%s1833 + $0xf0] sm:$0xff] %vm912, %v1798
    %1865 = vst.msk [vmem:[%s1833 + $0xf8] sm:$0xff] %vm912, %v1800
    %1866 = vrot.lane.b32.xlu0 %v221, 96
    %v1867 = vpop.permute.xlu0 %1866
    %1868 = vrot.lane.b32.xlu0 %v226, 96
    %v1869 = vpop.permute.xlu0 %1868
    %1870 = vrot.lane.b32.xlu0 %v231, 96
    %v1871 = vpop.permute.xlu0 %1870
    %1872 = vrot.lane.b32.xlu0 %v236, 96
    %v1873 = vpop.permute.xlu0 %1872
    %1874 = vrot.lane.b32.xlu0 %v241, 96
    %v1875 = vpop.permute.xlu0 %1874
    %1876 = vrot.lane.b32.xlu0 %v246, 96
    %v1877 = vpop.permute.xlu0 %1876
    %1878 = vrot.lane.b32.xlu0 %v251, 96
    %v1879 = vpop.permute.xlu0 %1878
    %1880 = vrot.lane.b32.xlu0 %v256, 96
    %v1881 = vpop.permute.xlu0 %1880
    %1882 = vrot.lane.b32.xlu0 %v261, 96
    %v1883 = vpop.permute.xlu0 %1882
    %1884 = vrot.lane.b32.xlu0 %v266, 96
    %v1885 = vpop.permute.xlu0 %1884
    %1886 = vrot.lane.b32.xlu0 %v271, 96
    %v1887 = vpop.permute.xlu0 %1886
    %1888 = vrot.lane.b32.xlu0 %v276, 96
    %v1889 = vpop.permute.xlu0 %1888
    %1890 = vrot.lane.b32.xlu0 %v281, 96
    %v1891 = vpop.permute.xlu0 %1890
    %1892 = vrot.lane.b32.xlu0 %v286, 96
    %v1893 = vpop.permute.xlu0 %1892
    %1894 = vrot.lane.b32.xlu0 %v291, 96
    %v1895 = vpop.permute.xlu0 %1894
    %1896 = vrot.lane.b32.xlu0 %v296, 96
    %v1897 = vpop.permute.xlu0 %1896
    %1898 = vrot.lane.b32.xlu0 %v301, 96
    %v1899 = vpop.permute.xlu0 %1898
    %1900 = vrot.lane.b32.xlu0 %v306, 96
    %v1901 = vpop.permute.xlu0 %1900
    %1902 = vrot.lane.b32.xlu0 %v311, 96
    %v1903 = vpop.permute.xlu0 %1902
    %1904 = vrot.lane.b32.xlu0 %v316, 96
    %v1905 = vpop.permute.xlu0 %1904
    %1906 = vrot.lane.b32.xlu0 %v321, 96
    %v1907 = vpop.permute.xlu0 %1906
    %1908 = vrot.lane.b32.xlu0 %v326, 96
    %v1909 = vpop.permute.xlu0 %1908
    %1910 = vrot.lane.b32.xlu0 %v331, 96
    %v1911 = vpop.permute.xlu0 %1910
    %1912 = vrot.lane.b32.xlu0 %v336, 96
    %v1913 = vpop.permute.xlu0 %1912
    %1914 = vrot.lane.b32.xlu0 %v341, 96
    %v1915 = vpop.permute.xlu0 %1914
    %1916 = vrot.lane.b32.xlu0 %v346, 96
    %v1917 = vpop.permute.xlu0 %1916
    %1918 = vrot.lane.b32.xlu0 %v351, 96
    %v1919 = vpop.permute.xlu0 %1918
    %1920 = vrot.lane.b32.xlu0 %v356, 96
    %v1921 = vpop.permute.xlu0 %1920
    %1922 = vrot.lane.b32.xlu0 %v361, 96
    %v1923 = vpop.permute.xlu0 %1922
    %1924 = vrot.lane.b32.xlu0 %v366, 96
    %v1925 = vpop.permute.xlu0 %1924
    %1926 = vrot.lane.b32.xlu0 %v371, 96
    %v1927 = vpop.permute.xlu0 %1926
    %1928 = vrot.lane.b32.xlu0 %v376, 96
    %v1929 = vpop.permute.xlu0 %1928
    %v1962 = vsel %vm823, %v1867, 1.0
    %v1963 = vsel %vm823, %v1869, 1.0
    %v1964 = vsel %vm823, %v1871, 1.0
    %v1965 = vsel %vm823, %v1873, 1.0
    %v1966 = vsel %vm823, %v1875, 1.0
    %v1967 = vsel %vm823, %v1877, 1.0
    %v1968 = vsel %vm823, %v1879, 1.0
    %v1969 = vsel %vm823, %v1881, 1.0
    %v1970 = vsel %vm823, %v1883, 1.0
    %v1971 = vsel %vm823, %v1885, 1.0
    %v1972 = vsel %vm823, %v1887, 1.0
    %v1973 = vsel %vm823, %v1889, 1.0
    %v1974 = vsel %vm823, %v1891, 1.0
    %v1975 = vsel %vm823, %v1893, 1.0
    %v1976 = vsel %vm823, %v1895, 1.0
    %v1977 = vsel %vm823, %v1897, 1.0
    %v1978 = vsel %vm823, %v1899, 1.0
    %v1979 = vsel %vm823, %v1901, 1.0
    %v1980 = vsel %vm823, %v1903, 1.0
    %v1981 = vsel %vm823, %v1905, 1.0
    %v1982 = vsel %vm823, %v1907, 1.0
    %v1983 = vsel %vm823, %v1909, 1.0
    %v1984 = vsel %vm823, %v1911, 1.0
    %v1985 = vsel %vm823, %v1913, 1.0
    %v1986 = vsel %vm823, %v1915, 1.0
    %v1987 = vsel %vm823, %v1917, 1.0
    %v1988 = vsel %vm823, %v1919, 1.0
    %v1989 = vsel %vm823, %v1921, 1.0
    %v1990 = vsel %vm823, %v1923, 1.0
    %v1991 = vsel %vm823, %v1925, 1.0
    %v1992 = vsel %vm823, %v1927, 1.0
    %v1993 = vsel %vm823, %v1929, 1.0
    %s1994 = scalar_lea.vmem %s4, 1024
    %1995 = vst.msk [vmem:[%s1994] sm:$0xff] %vm856, %v1962
    %1996 = vst.msk [vmem:[%s1994 + $0x8] sm:$0xff] %vm856, %v1963
    %1997 = vst.msk [vmem:[%s1994 + $0x10] sm:$0xff] %vm856, %v1964
    %1998 = vst.msk [vmem:[%s1994 + $0x18] sm:$0xff] %vm856, %v1965
    %1999 = vst.msk [vmem:[%s1994 + $0x20] sm:$0xff] %vm856, %v1966
    %2000 = vst.msk [vmem:[%s1994 + $0x28] sm:$0xff] %vm856, %v1967
    %2001 = vst.msk [vmem:[%s1994 + $0x30] sm:$0xff] %vm856, %v1968
    %2002 = vst.msk [vmem:[%s1994 + $0x38] sm:$0xff] %vm856, %v1969
    %2003 = vst.msk [vmem:[%s1994 + $0x40] sm:$0xff] %vm856, %v1970
    %2004 = vst.msk [vmem:[%s1994 + $0x48] sm:$0xff] %vm856, %v1971
    %2005 = vst.msk [vmem:[%s1994 + $0x50] sm:$0xff] %vm856, %v1972
    %2006 = vst.msk [vmem:[%s1994 + $0x58] sm:$0xff] %vm856, %v1973
    %2007 = vst.msk [vmem:[%s1994 + $0x60] sm:$0xff] %vm856, %v1974
    %2008 = vst.msk [vmem:[%s1994 + $0x68] sm:$0xff] %vm856, %v1975
    %2009 = vst.msk [vmem:[%s1994 + $0x70] sm:$0xff] %vm856, %v1976
    %2010 = vst.msk [vmem:[%s1994 + $0x78] sm:$0xff] %vm856, %v1977
    %2011 = vst.msk [vmem:[%s1994 + $0x80] sm:$0xff] %vm856, %v1978
    %2012 = vst.msk [vmem:[%s1994 + $0x88] sm:$0xff] %vm856, %v1979
    %2013 = vst.msk [vmem:[%s1994 + $0x90] sm:$0xff] %vm856, %v1980
    %2014 = vst.msk [vmem:[%s1994 + $0x98] sm:$0xff] %vm856, %v1981
    %2015 = vst.msk [vmem:[%s1994 + $0xa0] sm:$0xff] %vm856, %v1982
    %2016 = vst.msk [vmem:[%s1994 + $0xa8] sm:$0xff] %vm856, %v1983
    %2017 = vst.msk [vmem:[%s1994 + $0xb0] sm:$0xff] %vm856, %v1984
    %2018 = vst.msk [vmem:[%s1994 + $0xb8] sm:$0xff] %vm856, %v1985
    %2019 = vst.msk [vmem:[%s1994 + $0xc0] sm:$0xff] %vm856, %v1986
    %2020 = vst.msk [vmem:[%s1994 + $0xc8] sm:$0xff] %vm856, %v1987
    %2021 = vst.msk [vmem:[%s1994 + $0xd0] sm:$0xff] %vm856, %v1988
    %2022 = vst.msk [vmem:[%s1994 + $0xd8] sm:$0xff] %vm856, %v1989
    %2023 = vst.msk [vmem:[%s1994 + $0xe0] sm:$0xff] %vm856, %v1990
    %2024 = vst.msk [vmem:[%s1994 + $0xe8] sm:$0xff] %vm856, %v1991
    %2025 = vst.msk [vmem:[%s1994 + $0xf0] sm:$0xff] %vm856, %v1992
    %2026 = vst.msk [vmem:[%s1994 + $0xf8] sm:$0xff] %vm856, %v1993
    %v2027 = vcombine.high %v586, %v588
    %v2029 = vunpack.c.l.s4 1966171168
    %v2030 = vunpack.c.0.s8 %v2029
    %v2031 = vlaneseq
    %v2032 = vshrl.u32 %v2031, 7
    %v2033 = vsub.s32 %v2030, %v2032
    %v2034 = vrot.slane %v2027, %v2033
    %v2036 = vunpack.c.l.s4 1966171168
    %v2037 = vunpack.c.0.s8 %v2036
    %v2038 = vlaneseq
    %v2039 = vshrl.u32 %v2038, 7
    %v2040 = vsub.s32 %v2037, %v2039
    %v2041 = vrot.slane %v2034, %v2040
    %s2043 = scalar_lea.vmem [#allocation2], 8
    %2044 = vst.msk [vmem:[%s2043] sm:$0x3] %vm910, %v2041
    %2045 = vrot.lane.b32.xlu0 %v665, 124
    %v2046 = vpop.permute.xlu0 %2045
    %2047 = vrot.lane.b32.xlu0 %v670, 124
    %v2048 = vpop.permute.xlu0 %2047
    %2049 = vrot.lane.b32.xlu0 %v675, 124
    %v2050 = vpop.permute.xlu0 %2049
    %2051 = vrot.lane.b32.xlu0 %v680, 124
    %v2052 = vpop.permute.xlu0 %2051
    %2053 = vrot.lane.b32.xlu0 %v685, 124
    %v2054 = vpop.permute.xlu0 %2053
    %2055 = vrot.lane.b32.xlu0 %v690, 124
    %v2056 = vpop.permute.xlu0 %2055
    %2057 = vrot.lane.b32.xlu0 %v695, 124
    %v2058 = vpop.permute.xlu0 %2057
    %2059 = vrot.lane.b32.xlu0 %v700, 124
    %v2060 = vpop.permute.xlu0 %2059
    %2061 = vrot.lane.b32.xlu0 %v705, 124
    %v2062 = vpop.permute.xlu0 %2061
    %2063 = vrot.lane.b32.xlu0 %v710, 124
    %v2064 = vpop.permute.xlu0 %2063
    %2065 = vrot.lane.b32.xlu0 %v715, 124
    %v2066 = vpop.permute.xlu0 %2065
    %2067 = vrot.lane.b32.xlu0 %v720, 124
    %v2068 = vpop.permute.xlu0 %2067
    %2069 = vrot.lane.b32.xlu0 %v725, 124
    %v2070 = vpop.permute.xlu0 %2069
    %2071 = vrot.lane.b32.xlu0 %v730, 124
    %v2072 = vpop.permute.xlu0 %2071
    %2073 = vrot.lane.b32.xlu0 %v735, 124
    %v2074 = vpop.permute.xlu0 %2073
    %2075 = vrot.lane.b32.xlu0 %v740, 124
    %v2076 = vpop.permute.xlu0 %2075
    %2077 = vrot.lane.b32.xlu0 %v745, 124
    %v2078 = vpop.permute.xlu0 %2077
    %2079 = vrot.lane.b32.xlu0 %v750, 124
    %v2080 = vpop.permute.xlu0 %2079
    %2081 = vrot.lane.b32.xlu0 %v755, 124
    %v2082 = vpop.permute.xlu0 %2081
    %2083 = vrot.lane.b32.xlu0 %v760, 124
    %v2084 = vpop.permute.xlu0 %2083
    %2085 = vrot.lane.b32.xlu0 %v765, 124
    %v2086 = vpop.permute.xlu0 %2085
    %2087 = vrot.lane.b32.xlu0 %v770, 124
    %v2088 = vpop.permute.xlu0 %2087
    %2089 = vrot.lane.b32.xlu0 %v775, 124
    %v2090 = vpop.permute.xlu0 %2089
    %2091 = vrot.lane.b32.xlu0 %v780, 124
    %v2092 = vpop.permute.xlu0 %2091
    %2093 = vrot.lane.b32.xlu0 %v785, 124
    %v2094 = vpop.permute.xlu0 %2093
    %2095 = vrot.lane.b32.xlu0 %v790, 124
    %v2096 = vpop.permute.xlu0 %2095
    %2097 = vrot.lane.b32.xlu0 %v795, 124
    %v2098 = vpop.permute.xlu0 %2097
    %2099 = vrot.lane.b32.xlu0 %v800, 124
    %v2100 = vpop.permute.xlu0 %2099
    %2101 = vrot.lane.b32.xlu0 %v805, 124
    %v2102 = vpop.permute.xlu0 %2101
    %2103 = vrot.lane.b32.xlu0 %v810, 124
    %v2104 = vpop.permute.xlu0 %2103
    %2105 = vrot.lane.b32.xlu0 %v815, 124
    %v2106 = vpop.permute.xlu0 %2105
    %2107 = vrot.lane.b32.xlu0 %v820, 124
    %v2108 = vpop.permute.xlu0 %2107
    %s2141 = scalar_lea.vmem %s6, 1024
    %2142 = vst.msk [vmem:[%s2141] sm:$0xff] %vm912, %v2046
    %2143 = vst.msk [vmem:[%s2141 + $0x8] sm:$0xff] %vm912, %v2048
    %2144 = vst.msk [vmem:[%s2141 + $0x10] sm:$0xff] %vm912, %v2050
    %2145 = vst.msk [vmem:[%s2141 + $0x18] sm:$0xff] %vm912, %v2052
    %2146 = vst.msk [vmem:[%s2141 + $0x20] sm:$0xff] %vm912, %v2054
    %2147 = vst.msk [vmem:[%s2141 + $0x28] sm:$0xff] %vm912, %v2056
    %2148 = vst.msk [vmem:[%s2141 + $0x30] sm:$0xff] %vm912, %v2058
    %2149 = vst.msk [vmem:[%s2141 + $0x38] sm:$0xff] %vm912, %v2060
    %2150 = vst.msk [vmem:[%s2141 + $0x40] sm:$0xff] %vm912, %v2062
    %2151 = vst.msk [vmem:[%s2141 + $0x48] sm:$0xff] %vm912, %v2064
    %2152 = vst.msk [vmem:[%s2141 + $0x50] sm:$0xff] %vm912, %v2066
    %2153 = vst.msk [vmem:[%s2141 + $0x58] sm:$0xff] %vm912, %v2068
    %2154 = vst.msk [vmem:[%s2141 + $0x60] sm:$0xff] %vm912, %v2070
    %2155 = vst.msk [vmem:[%s2141 + $0x68] sm:$0xff] %vm912, %v2072
    %2156 = vst.msk [vmem:[%s2141 + $0x70] sm:$0xff] %vm912, %v2074
    %2157 = vst.msk [vmem:[%s2141 + $0x78] sm:$0xff] %vm912, %v2076
    %2158 = vst.msk [vmem:[%s2141 + $0x80] sm:$0xff] %vm912, %v2078
    %2159 = vst.msk [vmem:[%s2141 + $0x88] sm:$0xff] %vm912, %v2080
    %2160 = vst.msk [vmem:[%s2141 + $0x90] sm:$0xff] %vm912, %v2082
    %2161 = vst.msk [vmem:[%s2141 + $0x98] sm:$0xff] %vm912, %v2084
    %2162 = vst.msk [vmem:[%s2141 + $0xa0] sm:$0xff] %vm912, %v2086
    %2163 = vst.msk [vmem:[%s2141 + $0xa8] sm:$0xff] %vm912, %v2088
    %2164 = vst.msk [vmem:[%s2141 + $0xb0] sm:$0xff] %vm912, %v2090
    %2165 = vst.msk [vmem:[%s2141 + $0xb8] sm:$0xff] %vm912, %v2092
    %2166 = vst.msk [vmem:[%s2141 + $0xc0] sm:$0xff] %vm912, %v2094
    %2167 = vst.msk [vmem:[%s2141 + $0xc8] sm:$0xff] %vm912, %v2096
    %2168 = vst.msk [vmem:[%s2141 + $0xd0] sm:$0xff] %vm912, %v2098
    %2169 = vst.msk [vmem:[%s2141 + $0xd8] sm:$0xff] %vm912, %v2100
    %2170 = vst.msk [vmem:[%s2141 + $0xe0] sm:$0xff] %vm912, %v2102
    %2171 = vst.msk [vmem:[%s2141 + $0xe8] sm:$0xff] %vm912, %v2104
    %2172 = vst.msk [vmem:[%s2141 + $0xf0] sm:$0xff] %vm912, %v2106
    %2173 = vst.msk [vmem:[%s2141 + $0xf8] sm:$0xff] %vm912, %v2108
    %2174 = vrot.lane.b32.xlu0 %v221, 88
    %v2175 = vpop.permute.xlu0 %2174
    %2176 = vrot.lane.b32.xlu0 %v226, 88
    %v2177 = vpop.permute.xlu0 %2176
    %2178 = vrot.lane.b32.xlu0 %v231, 88
    %v2179 = vpop.permute.xlu0 %2178
    %2180 = vrot.lane.b32.xlu0 %v236, 88
    %v2181 = vpop.permute.xlu0 %2180
    %2182 = vrot.lane.b32.xlu0 %v241, 88
    %v2183 = vpop.permute.xlu0 %2182
    %2184 = vrot.lane.b32.xlu0 %v246, 88
    %v2185 = vpop.permute.xlu0 %2184
    %2186 = vrot.lane.b32.xlu0 %v251, 88
    %v2187 = vpop.permute.xlu0 %2186
    %2188 = vrot.lane.b32.xlu0 %v256, 88
    %v2189 = vpop.permute.xlu0 %2188
    %2190 = vrot.lane.b32.xlu0 %v261, 88
    %v2191 = vpop.permute.xlu0 %2190
    %2192 = vrot.lane.b32.xlu0 %v266, 88
    %v2193 = vpop.permute.xlu0 %2192
    %2194 = vrot.lane.b32.xlu0 %v271, 88
    %v2195 = vpop.permute.xlu0 %2194
    %2196 = vrot.lane.b32.xlu0 %v276, 88
    %v2197 = vpop.permute.xlu0 %2196
    %2198 = vrot.lane.b32.xlu0 %v281, 88
    %v2199 = vpop.permute.xlu0 %2198
    %2200 = vrot.lane.b32.xlu0 %v286, 88
    %v2201 = vpop.permute.xlu0 %2200
    %2202 = vrot.lane.b32.xlu0 %v291, 88
    %v2203 = vpop.permute.xlu0 %2202
    %2204 = vrot.lane.b32.xlu0 %v296, 88
    %v2205 = vpop.permute.xlu0 %2204
    %2206 = vrot.lane.b32.xlu0 %v301, 88
    %v2207 = vpop.permute.xlu0 %2206
    %2208 = vrot.lane.b32.xlu0 %v306, 88
    %v2209 = vpop.permute.xlu0 %2208
    %2210 = vrot.lane.b32.xlu0 %v311, 88
    %v2211 = vpop.permute.xlu0 %2210
    %2212 = vrot.lane.b32.xlu0 %v316, 88
    %v2213 = vpop.permute.xlu0 %2212
    %2214 = vrot.lane.b32.xlu0 %v321, 88
    %v2215 = vpop.permute.xlu0 %2214
    %2216 = vrot.lane.b32.xlu0 %v326, 88
    %v2217 = vpop.permute.xlu0 %2216
    %2218 = vrot.lane.b32.xlu0 %v331, 88
    %v2219 = vpop.permute.xlu0 %2218
    %2220 = vrot.lane.b32.xlu0 %v336, 88
    %v2221 = vpop.permute.xlu0 %2220
    %2222 = vrot.lane.b32.xlu0 %v341, 88
    %v2223 = vpop.permute.xlu0 %2222
    %2224 = vrot.lane.b32.xlu0 %v346, 88
    %v2225 = vpop.permute.xlu0 %2224
    %2226 = vrot.lane.b32.xlu0 %v351, 88
    %v2227 = vpop.permute.xlu0 %2226
    %2228 = vrot.lane.b32.xlu0 %v356, 88
    %v2229 = vpop.permute.xlu0 %2228
    %2230 = vrot.lane.b32.xlu0 %v361, 88
    %v2231 = vpop.permute.xlu0 %2230
    %2232 = vrot.lane.b32.xlu0 %v366, 88
    %v2233 = vpop.permute.xlu0 %2232
    %2234 = vrot.lane.b32.xlu0 %v371, 88
    %v2235 = vpop.permute.xlu0 %2234
    %2236 = vrot.lane.b32.xlu0 %v376, 88
    %v2237 = vpop.permute.xlu0 %2236
    %v2270 = vsel %vm823, %v2175, 1.0
    %v2271 = vsel %vm823, %v2177, 1.0
    %v2272 = vsel %vm823, %v2179, 1.0
    %v2273 = vsel %vm823, %v2181, 1.0
    %v2274 = vsel %vm823, %v2183, 1.0
    %v2275 = vsel %vm823, %v2185, 1.0
    %v2276 = vsel %vm823, %v2187, 1.0
    %v2277 = vsel %vm823, %v2189, 1.0
    %v2278 = vsel %vm823, %v2191, 1.0
    %v2279 = vsel %vm823, %v2193, 1.0
    %v2280 = vsel %vm823, %v2195, 1.0
    %v2281 = vsel %vm823, %v2197, 1.0
    %v2282 = vsel %vm823, %v2199, 1.0
    %v2283 = vsel %vm823, %v2201, 1.0
    %v2284 = vsel %vm823, %v2203, 1.0
    %v2285 = vsel %vm823, %v2205, 1.0
    %v2286 = vsel %vm823, %v2207, 1.0
    %v2287 = vsel %vm823, %v2209, 1.0
    %v2288 = vsel %vm823, %v2211, 1.0
    %v2289 = vsel %vm823, %v2213, 1.0
    %v2290 = vsel %vm823, %v2215, 1.0
    %v2291 = vsel %vm823, %v2217, 1.0
    %v2292 = vsel %vm823, %v2219, 1.0
    %v2293 = vsel %vm823, %v2221, 1.0
    %v2294 = vsel %vm823, %v2223, 1.0
    %v2295 = vsel %vm823, %v2225, 1.0
    %v2296 = vsel %vm823, %v2227, 1.0
    %v2297 = vsel %vm823, %v2229, 1.0
    %v2298 = vsel %vm823, %v2231, 1.0
    %v2299 = vsel %vm823, %v2233, 1.0
    %v2300 = vsel %vm823, %v2235, 1.0
    %v2301 = vsel %vm823, %v2237, 1.0
    %s2302 = scalar_lea.vmem %s4, 1280
    %2303 = vst.msk [vmem:[%s2302] sm:$0xff] %vm856, %v2270
    %2304 = vst.msk [vmem:[%s2302 + $0x8] sm:$0xff] %vm856, %v2271
    %2305 = vst.msk [vmem:[%s2302 + $0x10] sm:$0xff] %vm856, %v2272
    %2306 = vst.msk [vmem:[%s2302 + $0x18] sm:$0xff] %vm856, %v2273
    %2307 = vst.msk [vmem:[%s2302 + $0x20] sm:$0xff] %vm856, %v2274
    %2308 = vst.msk [vmem:[%s2302 + $0x28] sm:$0xff] %vm856, %v2275
    %2309 = vst.msk [vmem:[%s2302 + $0x30] sm:$0xff] %vm856, %v2276
    %2310 = vst.msk [vmem:[%s2302 + $0x38] sm:$0xff] %vm856, %v2277
    %2311 = vst.msk [vmem:[%s2302 + $0x40] sm:$0xff] %vm856, %v2278
    %2312 = vst.msk [vmem:[%s2302 + $0x48] sm:$0xff] %vm856, %v2279
    %2313 = vst.msk [vmem:[%s2302 + $0x50] sm:$0xff] %vm856, %v2280
    %2314 = vst.msk [vmem:[%s2302 + $0x58] sm:$0xff] %vm856, %v2281
    %2315 = vst.msk [vmem:[%s2302 + $0x60] sm:$0xff] %vm856, %v2282
    %2316 = vst.msk [vmem:[%s2302 + $0x68] sm:$0xff] %vm856, %v2283
    %2317 = vst.msk [vmem:[%s2302 + $0x70] sm:$0xff] %vm856, %v2284
    %2318 = vst.msk [vmem:[%s2302 + $0x78] sm:$0xff] %vm856, %v2285
    %2319 = vst.msk [vmem:[%s2302 + $0x80] sm:$0xff] %vm856, %v2286
    %2320 = vst.msk [vmem:[%s2302 + $0x88] sm:$0xff] %vm856, %v2287
    %2321 = vst.msk [vmem:[%s2302 + $0x90] sm:$0xff] %vm856, %v2288
    %2322 = vst.msk [vmem:[%s2302 + $0x98] sm:$0xff] %vm856, %v2289
    %2323 = vst.msk [vmem:[%s2302 + $0xa0] sm:$0xff] %vm856, %v2290
    %2324 = vst.msk [vmem:[%s2302 + $0xa8] sm:$0xff] %vm856, %v2291
    %2325 = vst.msk [vmem:[%s2302 + $0xb0] sm:$0xff] %vm856, %v2292
    %2326 = vst.msk [vmem:[%s2302 + $0xb8] sm:$0xff] %vm856, %v2293
    %2327 = vst.msk [vmem:[%s2302 + $0xc0] sm:$0xff] %vm856, %v2294
    %2328 = vst.msk [vmem:[%s2302 + $0xc8] sm:$0xff] %vm856, %v2295
    %2329 = vst.msk [vmem:[%s2302 + $0xd0] sm:$0xff] %vm856, %v2296
    %2330 = vst.msk [vmem:[%s2302 + $0xd8] sm:$0xff] %vm856, %v2297
    %2331 = vst.msk [vmem:[%s2302 + $0xe0] sm:$0xff] %vm856, %v2298
    %2332 = vst.msk [vmem:[%s2302 + $0xe8] sm:$0xff] %vm856, %v2299
    %2333 = vst.msk [vmem:[%s2302 + $0xf0] sm:$0xff] %vm856, %v2300
    %2334 = vst.msk [vmem:[%s2302 + $0xf8] sm:$0xff] %vm856, %v2301
    %v2335 = vcombine.high %v2034, %v2034
    %v2337 = vunpack.c.l.s4 1966171168
    %v2338 = vunpack.c.0.s8 %v2337
    %v2339 = vlaneseq
    %v2340 = vshrl.u32 %v2339, 7
    %v2341 = vsub.s32 %v2338, %v2340
    %v2342 = vrot.slane %v2335, %v2341
    %s2344 = scalar_lea.vmem [#allocation2], 10
    %2345 = vst.msk [vmem:[%s2344] sm:$0x3] %vm910, %v2342
    %2346 = vrot.lane.b32.xlu0 %v665, 123
    %v2347 = vpop.permute.xlu0 %2346
    %2348 = vrot.lane.b32.xlu0 %v670, 123
    %v2349 = vpop.permute.xlu0 %2348
    %2350 = vrot.lane.b32.xlu0 %v675, 123
    %v2351 = vpop.permute.xlu0 %2350
    %2352 = vrot.lane.b32.xlu0 %v680, 123
    %v2353 = vpop.permute.xlu0 %2352
    %2354 = vrot.lane.b32.xlu0 %v685, 123
    %v2355 = vpop.permute.xlu0 %2354
    %2356 = vrot.lane.b32.xlu0 %v690, 123
    %v2357 = vpop.permute.xlu0 %2356
    %2358 = vrot.lane.b32.xlu0 %v695, 123
    %v2359 = vpop.permute.xlu0 %2358
    %2360 = vrot.lane.b32.xlu0 %v700, 123
    %v2361 = vpop.permute.xlu0 %2360
    %2362 = vrot.lane.b32.xlu0 %v705, 123
    %v2363 = vpop.permute.xlu0 %2362
    %2364 = vrot.lane.b32.xlu0 %v710, 123
    %v2365 = vpop.permute.xlu0 %2364
    %2366 = vrot.lane.b32.xlu0 %v715, 123
    %v2367 = vpop.permute.xlu0 %2366
    %2368 = vrot.lane.b32.xlu0 %v720, 123
    %v2369 = vpop.permute.xlu0 %2368
    %2370 = vrot.lane.b32.xlu0 %v725, 123
    %v2371 = vpop.permute.xlu0 %2370
    %2372 = vrot.lane.b32.xlu0 %v730, 123
    %v2373 = vpop.permute.xlu0 %2372
    %2374 = vrot.lane.b32.xlu0 %v735, 123
    %v2375 = vpop.permute.xlu0 %2374
    %2376 = vrot.lane.b32.xlu0 %v740, 123
    %v2377 = vpop.permute.xlu0 %2376
    %2378 = vrot.lane.b32.xlu0 %v745, 123
    %v2379 = vpop.permute.xlu0 %2378
    %2380 = vrot.lane.b32.xlu0 %v750, 123
    %v2381 = vpop.permute.xlu0 %2380
    %2382 = vrot.lane.b32.xlu0 %v755, 123
    %v2383 = vpop.permute.xlu0 %2382
    %2384 = vrot.lane.b32.xlu0 %v760, 123
    %v2385 = vpop.permute.xlu0 %2384
    %2386 = vrot.lane.b32.xlu0 %v765, 123
    %v2387 = vpop.permute.xlu0 %2386
    %2388 = vrot.lane.b32.xlu0 %v770, 123
    %v2389 = vpop.permute.xlu0 %2388
    %2390 = vrot.lane.b32.xlu0 %v775, 123
    %v2391 = vpop.permute.xlu0 %2390
    %2392 = vrot.lane.b32.xlu0 %v780, 123
    %v2393 = vpop.permute.xlu0 %2392
    %2394 = vrot.lane.b32.xlu0 %v785, 123
    %v2395 = vpop.permute.xlu0 %2394
    %2396 = vrot.lane.b32.xlu0 %v790, 123
    %v2397 = vpop.permute.xlu0 %2396
    %2398 = vrot.lane.b32.xlu0 %v795, 123
    %v2399 = vpop.permute.xlu0 %2398
    %2400 = vrot.lane.b32.xlu0 %v800, 123
    %v2401 = vpop.permute.xlu0 %2400
    %2402 = vrot.lane.b32.xlu0 %v805, 123
    %v2403 = vpop.permute.xlu0 %2402
    %2404 = vrot.lane.b32.xlu0 %v810, 123
    %v2405 = vpop.permute.xlu0 %2404
    %2406 = vrot.lane.b32.xlu0 %v815, 123
    %v2407 = vpop.permute.xlu0 %2406
    %2408 = vrot.lane.b32.xlu0 %v820, 123
    %v2409 = vpop.permute.xlu0 %2408
    %s2442 = scalar_lea.vmem %s6, 1280
    %2443 = vst.msk [vmem:[%s2442] sm:$0xff] %vm912, %v2347
    %2444 = vst.msk [vmem:[%s2442 + $0x8] sm:$0xff] %vm912, %v2349
    %2445 = vst.msk [vmem:[%s2442 + $0x10] sm:$0xff] %vm912, %v2351
    %2446 = vst.msk [vmem:[%s2442 + $0x18] sm:$0xff] %vm912, %v2353
    %2447 = vst.msk [vmem:[%s2442 + $0x20] sm:$0xff] %vm912, %v2355
    %2448 = vst.msk [vmem:[%s2442 + $0x28] sm:$0xff] %vm912, %v2357
    %2449 = vst.msk [vmem:[%s2442 + $0x30] sm:$0xff] %vm912, %v2359
    %2450 = vst.msk [vmem:[%s2442 + $0x38] sm:$0xff] %vm912, %v2361
    %2451 = vst.msk [vmem:[%s2442 + $0x40] sm:$0xff] %vm912, %v2363
    %2452 = vst.msk [vmem:[%s2442 + $0x48] sm:$0xff] %vm912, %v2365
    %2453 = vst.msk [vmem:[%s2442 + $0x50] sm:$0xff] %vm912, %v2367
    %2454 = vst.msk [vmem:[%s2442 + $0x58] sm:$0xff] %vm912, %v2369
    %2455 = vst.msk [vmem:[%s2442 + $0x60] sm:$0xff] %vm912, %v2371
    %2456 = vst.msk [vmem:[%s2442 + $0x68] sm:$0xff] %vm912, %v2373
    %2457 = vst.msk [vmem:[%s2442 + $0x70] sm:$0xff] %vm912, %v2375
    %2458 = vst.msk [vmem:[%s2442 + $0x78] sm:$0xff] %vm912, %v2377
    %2459 = vst.msk [vmem:[%s2442 + $0x80] sm:$0xff] %vm912, %v2379
    %2460 = vst.msk [vmem:[%s2442 + $0x88] sm:$0xff] %vm912, %v2381
    %2461 = vst.msk [vmem:[%s2442 + $0x90] sm:$0xff] %vm912, %v2383
    %2462 = vst.msk [vmem:[%s2442 + $0x98] sm:$0xff] %vm912, %v2385
    %2463 = vst.msk [vmem:[%s2442 + $0xa0] sm:$0xff] %vm912, %v2387
    %2464 = vst.msk [vmem:[%s2442 + $0xa8] sm:$0xff] %vm912, %v2389
    %2465 = vst.msk [vmem:[%s2442 + $0xb0] sm:$0xff] %vm912, %v2391
    %2466 = vst.msk [vmem:[%s2442 + $0xb8] sm:$0xff] %vm912, %v2393
    %2467 = vst.msk [vmem:[%s2442 + $0xc0] sm:$0xff] %vm912, %v2395
    %2468 = vst.msk [vmem:[%s2442 + $0xc8] sm:$0xff] %vm912, %v2397
    %2469 = vst.msk [vmem:[%s2442 + $0xd0] sm:$0xff] %vm912, %v2399
    %2470 = vst.msk [vmem:[%s2442 + $0xd8] sm:$0xff] %vm912, %v2401
    %2471 = vst.msk [vmem:[%s2442 + $0xe0] sm:$0xff] %vm912, %v2403
    %2472 = vst.msk [vmem:[%s2442 + $0xe8] sm:$0xff] %vm912, %v2405
    %2473 = vst.msk [vmem:[%s2442 + $0xf0] sm:$0xff] %vm912, %v2407
    %2474 = vst.msk [vmem:[%s2442 + $0xf8] sm:$0xff] %vm912, %v2409
    %2475 = vrot.lane.b32.xlu0 %v221, 80
    %v2476 = vpop.permute.xlu0 %2475
    %2477 = vrot.lane.b32.xlu0 %v226, 80
    %v2478 = vpop.permute.xlu0 %2477
    %2479 = vrot.lane.b32.xlu0 %v231, 80
    %v2480 = vpop.permute.xlu0 %2479
    %2481 = vrot.lane.b32.xlu0 %v236, 80
    %v2482 = vpop.permute.xlu0 %2481
    %2483 = vrot.lane.b32.xlu0 %v241, 80
    %v2484 = vpop.permute.xlu0 %2483
    %2485 = vrot.lane.b32.xlu0 %v246, 80
    %v2486 = vpop.permute.xlu0 %2485
    %2487 = vrot.lane.b32.xlu0 %v251, 80
    %v2488 = vpop.permute.xlu0 %2487
    %2489 = vrot.lane.b32.xlu0 %v256, 80
    %v2490 = vpop.permute.xlu0 %2489
    %2491 = vrot.lane.b32.xlu0 %v261, 80
    %v2492 = vpop.permute.xlu0 %2491
    %2493 = vrot.lane.b32.xlu0 %v266, 80
    %v2494 = vpop.permute.xlu0 %2493
    %2495 = vrot.lane.b32.xlu0 %v271, 80
    %v2496 = vpop.permute.xlu0 %2495
    %2497 = vrot.lane.b32.xlu0 %v276, 80
    %v2498 = vpop.permute.xlu0 %2497
    %2499 = vrot.lane.b32.xlu0 %v281, 80
    %v2500 = vpop.permute.xlu0 %2499
    %2501 = vrot.lane.b32.xlu0 %v286, 80
    %v2502 = vpop.permute.xlu0 %2501
    %2503 = vrot.lane.b32.xlu0 %v291, 80
    %v2504 = vpop.permute.xlu0 %2503
    %2505 = vrot.lane.b32.xlu0 %v296, 80
    %v2506 = vpop.permute.xlu0 %2505
    %2507 = vrot.lane.b32.xlu0 %v301, 80
    %v2508 = vpop.permute.xlu0 %2507
    %2509 = vrot.lane.b32.xlu0 %v306, 80
    %v2510 = vpop.permute.xlu0 %2509
    %2511 = vrot.lane.b32.xlu0 %v311, 80
    %v2512 = vpop.permute.xlu0 %2511
    %2513 = vrot.lane.b32.xlu0 %v316, 80
    %v2514 = vpop.permute.xlu0 %2513
    %2515 = vrot.lane.b32.xlu0 %v321, 80
    %v2516 = vpop.permute.xlu0 %2515
    %2517 = vrot.lane.b32.xlu0 %v326, 80
    %v2518 = vpop.permute.xlu0 %2517
    %2519 = vrot.lane.b32.xlu0 %v331, 80
    %v2520 = vpop.permute.xlu0 %2519
    %2521 = vrot.lane.b32.xlu0 %v336, 80
    %v2522 = vpop.permute.xlu0 %2521
    %2523 = vrot.lane.b32.xlu0 %v341, 80
    %v2524 = vpop.permute.xlu0 %2523
    %2525 = vrot.lane.b32.xlu0 %v346, 80
    %v2526 = vpop.permute.xlu0 %2525
    %2527 = vrot.lane.b32.xlu0 %v351, 80
    %v2528 = vpop.permute.xlu0 %2527
    %2529 = vrot.lane.b32.xlu0 %v356, 80
    %v2530 = vpop.permute.xlu0 %2529
    %2531 = vrot.lane.b32.xlu0 %v361, 80
    %v2532 = vpop.permute.xlu0 %2531
    %2533 = vrot.lane.b32.xlu0 %v366, 80
    %v2534 = vpop.permute.xlu0 %2533
    %2535 = vrot.lane.b32.xlu0 %v371, 80
    %v2536 = vpop.permute.xlu0 %2535
    %2537 = vrot.lane.b32.xlu0 %v376, 80
    %v2538 = vpop.permute.xlu0 %2537
    %v2571 = vsel %vm823, %v2476, 1.0
    %v2572 = vsel %vm823, %v2478, 1.0
    %v2573 = vsel %vm823, %v2480, 1.0
    %v2574 = vsel %vm823, %v2482, 1.0
    %v2575 = vsel %vm823, %v2484, 1.0
    %v2576 = vsel %vm823, %v2486, 1.0
    %v2577 = vsel %vm823, %v2488, 1.0
    %v2578 = vsel %vm823, %v2490, 1.0
    %v2579 = vsel %vm823, %v2492, 1.0
    %v2580 = vsel %vm823, %v2494, 1.0
    %v2581 = vsel %vm823, %v2496, 1.0
    %v2582 = vsel %vm823, %v2498, 1.0
    %v2583 = vsel %vm823, %v2500, 1.0
    %v2584 = vsel %vm823, %v2502, 1.0
    %v2585 = vsel %vm823, %v2504, 1.0
    %v2586 = vsel %vm823, %v2506, 1.0
    %v2587 = vsel %vm823, %v2508, 1.0
    %v2588 = vsel %vm823, %v2510, 1.0
    %v2589 = vsel %vm823, %v2512, 1.0
    %v2590 = vsel %vm823, %v2514, 1.0
    %v2591 = vsel %vm823, %v2516, 1.0
    %v2592 = vsel %vm823, %v2518, 1.0
    %v2593 = vsel %vm823, %v2520, 1.0
    %v2594 = vsel %vm823, %v2522, 1.0
    %v2595 = vsel %vm823, %v2524, 1.0
    %v2596 = vsel %vm823, %v2526, 1.0
    %v2597 = vsel %vm823, %v2528, 1.0
    %v2598 = vsel %vm823, %v2530, 1.0
    %v2599 = vsel %vm823, %v2532, 1.0
    %v2600 = vsel %vm823, %v2534, 1.0
    %v2601 = vsel %vm823, %v2536, 1.0
    %v2602 = vsel %vm823, %v2538, 1.0
    %s2603 = scalar_lea.vmem %s4, 1536
    %2604 = vst.msk [vmem:[%s2603] sm:$0xff] %vm856, %v2571
    %2605 = vst.msk [vmem:[%s2603 + $0x8] sm:$0xff] %vm856, %v2572
    %2606 = vst.msk [vmem:[%s2603 + $0x10] sm:$0xff] %vm856, %v2573
    %2607 = vst.msk [vmem:[%s2603 + $0x18] sm:$0xff] %vm856, %v2574
    %2608 = vst.msk [vmem:[%s2603 + $0x20] sm:$0xff] %vm856, %v2575
    %2609 = vst.msk [vmem:[%s2603 + $0x28] sm:$0xff] %vm856, %v2576
    %2610 = vst.msk [vmem:[%s2603 + $0x30] sm:$0xff] %vm856, %v2577
    %2611 = vst.msk [vmem:[%s2603 + $0x38] sm:$0xff] %vm856, %v2578
    %2612 = vst.msk [vmem:[%s2603 + $0x40] sm:$0xff] %vm856, %v2579
    %2613 = vst.msk [vmem:[%s2603 + $0x48] sm:$0xff] %vm856, %v2580
    %2614 = vst.msk [vmem:[%s2603 + $0x50] sm:$0xff] %vm856, %v2581
    %2615 = vst.msk [vmem:[%s2603 + $0x58] sm:$0xff] %vm856, %v2582
    %2616 = vst.msk [vmem:[%s2603 + $0x60] sm:$0xff] %vm856, %v2583
    %2617 = vst.msk [vmem:[%s2603 + $0x68] sm:$0xff] %vm856, %v2584
    %2618 = vst.msk [vmem:[%s2603 + $0x70] sm:$0xff] %vm856, %v2585
    %2619 = vst.msk [vmem:[%s2603 + $0x78] sm:$0xff] %vm856, %v2586
    %2620 = vst.msk [vmem:[%s2603 + $0x80] sm:$0xff] %vm856, %v2587
    %2621 = vst.msk [vmem:[%s2603 + $0x88] sm:$0xff] %vm856, %v2588
    %2622 = vst.msk [vmem:[%s2603 + $0x90] sm:$0xff] %vm856, %v2589
    %2623 = vst.msk [vmem:[%s2603 + $0x98] sm:$0xff] %vm856, %v2590
    %2624 = vst.msk [vmem:[%s2603 + $0xa0] sm:$0xff] %vm856, %v2591
    %2625 = vst.msk [vmem:[%s2603 + $0xa8] sm:$0xff] %vm856, %v2592
    %2626 = vst.msk [vmem:[%s2603 + $0xb0] sm:$0xff] %vm856, %v2593
    %2627 = vst.msk [vmem:[%s2603 + $0xb8] sm:$0xff] %vm856, %v2594
    %2628 = vst.msk [vmem:[%s2603 + $0xc0] sm:$0xff] %vm856, %v2595
    %2629 = vst.msk [vmem:[%s2603 + $0xc8] sm:$0xff] %vm856, %v2596
    %2630 = vst.msk [vmem:[%s2603 + $0xd0] sm:$0xff] %vm856, %v2597
    %2631 = vst.msk [vmem:[%s2603 + $0xd8] sm:$0xff] %vm856, %v2598
    %2632 = vst.msk [vmem:[%s2603 + $0xe0] sm:$0xff] %vm856, %v2599
    %2633 = vst.msk [vmem:[%s2603 + $0xe8] sm:$0xff] %vm856, %v2600
    %2634 = vst.msk [vmem:[%s2603 + $0xf0] sm:$0xff] %vm856, %v2601
    %2635 = vst.msk [vmem:[%s2603 + $0xf8] sm:$0xff] %vm856, %v2602
    %v2636 = vcombine.high %v2041, %v2041
    %s2638 = scalar_lea.vmem [#allocation2], 12
    %2639 = vst.msk [vmem:[%s2638] sm:$0x3] %vm910, %v2636
    %2640 = vrot.lane.b32.xlu0 %v665, 122
    %v2641 = vpop.permute.xlu0 %2640
    %2642 = vrot.lane.b32.xlu0 %v670, 122
    %v2643 = vpop.permute.xlu0 %2642
    %2644 = vrot.lane.b32.xlu0 %v675, 122
    %v2645 = vpop.permute.xlu0 %2644
    %2646 = vrot.lane.b32.xlu0 %v680, 122
    %v2647 = vpop.permute.xlu0 %2646
    %2648 = vrot.lane.b32.xlu0 %v685, 122
    %v2649 = vpop.permute.xlu0 %2648
    %2650 = vrot.lane.b32.xlu0 %v690, 122
    %v2651 = vpop.permute.xlu0 %2650
    %2652 = vrot.lane.b32.xlu0 %v695, 122
    %v2653 = vpop.permute.xlu0 %2652
    %2654 = vrot.lane.b32.xlu0 %v700, 122
    %v2655 = vpop.permute.xlu0 %2654
    %2656 = vrot.lane.b32.xlu0 %v705, 122
    %v2657 = vpop.permute.xlu0 %2656
    %2658 = vrot.lane.b32.xlu0 %v710, 122
    %v2659 = vpop.permute.xlu0 %2658
    %2660 = vrot.lane.b32.xlu0 %v715, 122
    %v2661 = vpop.permute.xlu0 %2660
    %2662 = vrot.lane.b32.xlu0 %v720, 122
    %v2663 = vpop.permute.xlu0 %2662
    %2664 = vrot.lane.b32.xlu0 %v725, 122
    %v2665 = vpop.permute.xlu0 %2664
    %2666 = vrot.lane.b32.xlu0 %v730, 122
    %v2667 = vpop.permute.xlu0 %2666
    %2668 = vrot.lane.b32.xlu0 %v735, 122
    %v2669 = vpop.permute.xlu0 %2668
    %2670 = vrot.lane.b32.xlu0 %v740, 122
    %v2671 = vpop.permute.xlu0 %2670
    %2672 = vrot.lane.b32.xlu0 %v745, 122
    %v2673 = vpop.permute.xlu0 %2672
    %2674 = vrot.lane.b32.xlu0 %v750, 122
    %v2675 = vpop.permute.xlu0 %2674
    %2676 = vrot.lane.b32.xlu0 %v755, 122
    %v2677 = vpop.permute.xlu0 %2676
    %2678 = vrot.lane.b32.xlu0 %v760, 122
    %v2679 = vpop.permute.xlu0 %2678
    %2680 = vrot.lane.b32.xlu0 %v765, 122
    %v2681 = vpop.permute.xlu0 %2680
    %2682 = vrot.lane.b32.xlu0 %v770, 122
    %v2683 = vpop.permute.xlu0 %2682
    %2684 = vrot.lane.b32.xlu0 %v775, 122
    %v2685 = vpop.permute.xlu0 %2684
    %2686 = vrot.lane.b32.xlu0 %v780, 122
    %v2687 = vpop.permute.xlu0 %2686
    %2688 = vrot.lane.b32.xlu0 %v785, 122
    %v2689 = vpop.permute.xlu0 %2688
    %2690 = vrot.lane.b32.xlu0 %v790, 122
    %v2691 = vpop.permute.xlu0 %2690
    %2692 = vrot.lane.b32.xlu0 %v795, 122
    %v2693 = vpop.permute.xlu0 %2692
    %2694 = vrot.lane.b32.xlu0 %v800, 122
    %v2695 = vpop.permute.xlu0 %2694
    %2696 = vrot.lane.b32.xlu0 %v805, 122
    %v2697 = vpop.permute.xlu0 %2696
    %2698 = vrot.lane.b32.xlu0 %v810, 122
    %v2699 = vpop.permute.xlu0 %2698
    %2700 = vrot.lane.b32.xlu0 %v815, 122
    %v2701 = vpop.permute.xlu0 %2700
    %2702 = vrot.lane.b32.xlu0 %v820, 122
    %v2703 = vpop.permute.xlu0 %2702
    %s2736 = scalar_lea.vmem %s6, 1536
    %2737 = vst.msk [vmem:[%s2736] sm:$0xff] %vm912, %v2641
    %2738 = vst.msk [vmem:[%s2736 + $0x8] sm:$0xff] %vm912, %v2643
    %2739 = vst.msk [vmem:[%s2736 + $0x10] sm:$0xff] %vm912, %v2645
    %2740 = vst.msk [vmem:[%s2736 + $0x18] sm:$0xff] %vm912, %v2647
    %2741 = vst.msk [vmem:[%s2736 + $0x20] sm:$0xff] %vm912, %v2649
    %2742 = vst.msk [vmem:[%s2736 + $0x28] sm:$0xff] %vm912, %v2651
    %2743 = vst.msk [vmem:[%s2736 + $0x30] sm:$0xff] %vm912, %v2653
    %2744 = vst.msk [vmem:[%s2736 + $0x38] sm:$0xff] %vm912, %v2655
    %2745 = vst.msk [vmem:[%s2736 + $0x40] sm:$0xff] %vm912, %v2657
    %2746 = vst.msk [vmem:[%s2736 + $0x48] sm:$0xff] %vm912, %v2659
    %2747 = vst.msk [vmem:[%s2736 + $0x50] sm:$0xff] %vm912, %v2661
    %2748 = vst.msk [vmem:[%s2736 + $0x58] sm:$0xff] %vm912, %v2663
    %2749 = vst.msk [vmem:[%s2736 + $0x60] sm:$0xff] %vm912, %v2665
    %2750 = vst.msk [vmem:[%s2736 + $0x68] sm:$0xff] %vm912, %v2667
    %2751 = vst.msk [vmem:[%s2736 + $0x70] sm:$0xff] %vm912, %v2669
    %2752 = vst.msk [vmem:[%s2736 + $0x78] sm:$0xff] %vm912, %v2671
    %2753 = vst.msk [vmem:[%s2736 + $0x80] sm:$0xff] %vm912, %v2673
    %2754 = vst.msk [vmem:[%s2736 + $0x88] sm:$0xff] %vm912, %v2675
    %2755 = vst.msk [vmem:[%s2736 + $0x90] sm:$0xff] %vm912, %v2677
    %2756 = vst.msk [vmem:[%s2736 + $0x98] sm:$0xff] %vm912, %v2679
    %2757 = vst.msk [vmem:[%s2736 + $0xa0] sm:$0xff] %vm912, %v2681
    %2758 = vst.msk [vmem:[%s2736 + $0xa8] sm:$0xff] %vm912, %v2683
    %2759 = vst.msk [vmem:[%s2736 + $0xb0] sm:$0xff] %vm912, %v2685
    %2760 = vst.msk [vmem:[%s2736 + $0xb8] sm:$0xff] %vm912, %v2687
    %2761 = vst.msk [vmem:[%s2736 + $0xc0] sm:$0xff] %vm912, %v2689
    %2762 = vst.msk [vmem:[%s2736 + $0xc8] sm:$0xff] %vm912, %v2691
    %2763 = vst.msk [vmem:[%s2736 + $0xd0] sm:$0xff] %vm912, %v2693
    %2764 = vst.msk [vmem:[%s2736 + $0xd8] sm:$0xff] %vm912, %v2695
    %2765 = vst.msk [vmem:[%s2736 + $0xe0] sm:$0xff] %vm912, %v2697
    %2766 = vst.msk [vmem:[%s2736 + $0xe8] sm:$0xff] %vm912, %v2699
    %2767 = vst.msk [vmem:[%s2736 + $0xf0] sm:$0xff] %vm912, %v2701
    %2768 = vst.msk [vmem:[%s2736 + $0xf8] sm:$0xff] %vm912, %v2703
    %2769 = vrot.lane.b32.xlu0 %v221, 72
    %v2770 = vpop.permute.xlu0 %2769
    %2771 = vrot.lane.b32.xlu0 %v226, 72
    %v2772 = vpop.permute.xlu0 %2771
    %2773 = vrot.lane.b32.xlu0 %v231, 72
    %v2774 = vpop.permute.xlu0 %2773
    %2775 = vrot.lane.b32.xlu0 %v236, 72
    %v2776 = vpop.permute.xlu0 %2775
    %2777 = vrot.lane.b32.xlu0 %v241, 72
    %v2778 = vpop.permute.xlu0 %2777
    %2779 = vrot.lane.b32.xlu0 %v246, 72
    %v2780 = vpop.permute.xlu0 %2779
    %2781 = vrot.lane.b32.xlu0 %v251, 72
    %v2782 = vpop.permute.xlu0 %2781
    %2783 = vrot.lane.b32.xlu0 %v256, 72
    %v2784 = vpop.permute.xlu0 %2783
    %2785 = vrot.lane.b32.xlu0 %v261, 72
    %v2786 = vpop.permute.xlu0 %2785
    %2787 = vrot.lane.b32.xlu0 %v266, 72
    %v2788 = vpop.permute.xlu0 %2787
    %2789 = vrot.lane.b32.xlu0 %v271, 72
    %v2790 = vpop.permute.xlu0 %2789
    %2791 = vrot.lane.b32.xlu0 %v276, 72
    %v2792 = vpop.permute.xlu0 %2791
    %2793 = vrot.lane.b32.xlu0 %v281, 72
    %v2794 = vpop.permute.xlu0 %2793
    %2795 = vrot.lane.b32.xlu0 %v286, 72
    %v2796 = vpop.permute.xlu0 %2795
    %2797 = vrot.lane.b32.xlu0 %v291, 72
    %v2798 = vpop.permute.xlu0 %2797
    %2799 = vrot.lane.b32.xlu0 %v296, 72
    %v2800 = vpop.permute.xlu0 %2799
    %2801 = vrot.lane.b32.xlu0 %v301, 72
    %v2802 = vpop.permute.xlu0 %2801
    %2803 = vrot.lane.b32.xlu0 %v306, 72
    %v2804 = vpop.permute.xlu0 %2803
    %2805 = vrot.lane.b32.xlu0 %v311, 72
    %v2806 = vpop.permute.xlu0 %2805
    %2807 = vrot.lane.b32.xlu0 %v316, 72
    %v2808 = vpop.permute.xlu0 %2807
    %2809 = vrot.lane.b32.xlu0 %v321, 72
    %v2810 = vpop.permute.xlu0 %2809
    %2811 = vrot.lane.b32.xlu0 %v326, 72
    %v2812 = vpop.permute.xlu0 %2811
    %2813 = vrot.lane.b32.xlu0 %v331, 72
    %v2814 = vpop.permute.xlu0 %2813
    %2815 = vrot.lane.b32.xlu0 %v336, 72
    %v2816 = vpop.permute.xlu0 %2815
    %2817 = vrot.lane.b32.xlu0 %v341, 72
    %v2818 = vpop.permute.xlu0 %2817
    %2819 = vrot.lane.b32.xlu0 %v346, 72
    %v2820 = vpop.permute.xlu0 %2819
    %2821 = vrot.lane.b32.xlu0 %v351, 72
    %v2822 = vpop.permute.xlu0 %2821
    %2823 = vrot.lane.b32.xlu0 %v356, 72
    %v2824 = vpop.permute.xlu0 %2823
    %2825 = vrot.lane.b32.xlu0 %v361, 72
    %v2826 = vpop.permute.xlu0 %2825
    %2827 = vrot.lane.b32.xlu0 %v366, 72
    %v2828 = vpop.permute.xlu0 %2827
    %2829 = vrot.lane.b32.xlu0 %v371, 72
    %v2830 = vpop.permute.xlu0 %2829
    %2831 = vrot.lane.b32.xlu0 %v376, 72
    %v2832 = vpop.permute.xlu0 %2831
    %v2865 = vsel %vm823, %v2770, 1.0
    %v2866 = vsel %vm823, %v2772, 1.0
    %v2867 = vsel %vm823, %v2774, 1.0
    %v2868 = vsel %vm823, %v2776, 1.0
    %v2869 = vsel %vm823, %v2778, 1.0
    %v2870 = vsel %vm823, %v2780, 1.0
    %v2871 = vsel %vm823, %v2782, 1.0
    %v2872 = vsel %vm823, %v2784, 1.0
    %v2873 = vsel %vm823, %v2786, 1.0
    %v2874 = vsel %vm823, %v2788, 1.0
    %v2875 = vsel %vm823, %v2790, 1.0
    %v2876 = vsel %vm823, %v2792, 1.0
    %v2877 = vsel %vm823, %v2794, 1.0
    %v2878 = vsel %vm823, %v2796, 1.0
    %v2879 = vsel %vm823, %v2798, 1.0
    %v2880 = vsel %vm823, %v2800, 1.0
    %v2881 = vsel %vm823, %v2802, 1.0
    %v2882 = vsel %vm823, %v2804, 1.0
    %v2883 = vsel %vm823, %v2806, 1.0
    %v2884 = vsel %vm823, %v2808, 1.0
    %v2885 = vsel %vm823, %v2810, 1.0
    %v2886 = vsel %vm823, %v2812, 1.0
    %v2887 = vsel %vm823, %v2814, 1.0
    %v2888 = vsel %vm823, %v2816, 1.0
    %v2889 = vsel %vm823, %v2818, 1.0
    %v2890 = vsel %vm823, %v2820, 1.0
    %v2891 = vsel %vm823, %v2822, 1.0
    %v2892 = vsel %vm823, %v2824, 1.0
    %v2893 = vsel %vm823, %v2826, 1.0
    %v2894 = vsel %vm823, %v2828, 1.0
    %v2895 = vsel %vm823, %v2830, 1.0
    %v2896 = vsel %vm823, %v2832, 1.0
    %s2897 = scalar_lea.vmem %s4, 1792
    %2898 = vst.msk [vmem:[%s2897] sm:$0xff] %vm856, %v2865
    %2899 = vst.msk [vmem:[%s2897 + $0x8] sm:$0xff] %vm856, %v2866
    %2900 = vst.msk [vmem:[%s2897 + $0x10] sm:$0xff] %vm856, %v2867
    %2901 = vst.msk [vmem:[%s2897 + $0x18] sm:$0xff] %vm856, %v2868
    %2902 = vst.msk [vmem:[%s2897 + $0x20] sm:$0xff] %vm856, %v2869
    %2903 = vst.msk [vmem:[%s2897 + $0x28] sm:$0xff] %vm856, %v2870
    %2904 = vst.msk [vmem:[%s2897 + $0x30] sm:$0xff] %vm856, %v2871
    %2905 = vst.msk [vmem:[%s2897 + $0x38] sm:$0xff] %vm856, %v2872
    %2906 = vst.msk [vmem:[%s2897 + $0x40] sm:$0xff] %vm856, %v2873
    %2907 = vst.msk [vmem:[%s2897 + $0x48] sm:$0xff] %vm856, %v2874
    %2908 = vst.msk [vmem:[%s2897 + $0x50] sm:$0xff] %vm856, %v2875
    %2909 = vst.msk [vmem:[%s2897 + $0x58] sm:$0xff] %vm856, %v2876
    %2910 = vst.msk [vmem:[%s2897 + $0x60] sm:$0xff] %vm856, %v2877
    %2911 = vst.msk [vmem:[%s2897 + $0x68] sm:$0xff] %vm856, %v2878
    %2912 = vst.msk [vmem:[%s2897 + $0x70] sm:$0xff] %vm856, %v2879
    %2913 = vst.msk [vmem:[%s2897 + $0x78] sm:$0xff] %vm856, %v2880
    %2914 = vst.msk [vmem:[%s2897 + $0x80] sm:$0xff] %vm856, %v2881
    %2915 = vst.msk [vmem:[%s2897 + $0x88] sm:$0xff] %vm856, %v2882
    %2916 = vst.msk [vmem:[%s2897 + $0x90] sm:$0xff] %vm856, %v2883
    %2917 = vst.msk [vmem:[%s2897 + $0x98] sm:$0xff] %vm856, %v2884
    %2918 = vst.msk [vmem:[%s2897 + $0xa0] sm:$0xff] %vm856, %v2885
    %2919 = vst.msk [vmem:[%s2897 + $0xa8] sm:$0xff] %vm856, %v2886
    %2920 = vst.msk [vmem:[%s2897 + $0xb0] sm:$0xff] %vm856, %v2887
    %2921 = vst.msk [vmem:[%s2897 + $0xb8] sm:$0xff] %vm856, %v2888
    %2922 = vst.msk [vmem:[%s2897 + $0xc0] sm:$0xff] %vm856, %v2889
    %2923 = vst.msk [vmem:[%s2897 + $0xc8] sm:$0xff] %vm856, %v2890
    %2924 = vst.msk [vmem:[%s2897 + $0xd0] sm:$0xff] %vm856, %v2891
    %2925 = vst.msk [vmem:[%s2897 + $0xd8] sm:$0xff] %vm856, %v2892
    %2926 = vst.msk [vmem:[%s2897 + $0xe0] sm:$0xff] %vm856, %v2893
    %2927 = vst.msk [vmem:[%s2897 + $0xe8] sm:$0xff] %vm856, %v2894
    %2928 = vst.msk [vmem:[%s2897 + $0xf0] sm:$0xff] %vm856, %v2895
    %2929 = vst.msk [vmem:[%s2897 + $0xf8] sm:$0xff] %vm856, %v2896
    %v2930 = vcombine.high %v2342, %v2342
    %s2932 = scalar_lea.vmem [#allocation2], 14
    %2933 = vst.msk [vmem:[%s2932] sm:$0x3] %vm910, %v2930
    %2934 = vrot.lane.b32.xlu0 %v665, 121
    %v2935 = vpop.permute.xlu0 %2934
    %2936 = vrot.lane.b32.xlu0 %v670, 121
    %v2937 = vpop.permute.xlu0 %2936
    %2938 = vrot.lane.b32.xlu0 %v675, 121
    %v2939 = vpop.permute.xlu0 %2938
    %2940 = vrot.lane.b32.xlu0 %v680, 121
    %v2941 = vpop.permute.xlu0 %2940
    %2942 = vrot.lane.b32.xlu0 %v685, 121
    %v2943 = vpop.permute.xlu0 %2942
    %2944 = vrot.lane.b32.xlu0 %v690, 121
    %v2945 = vpop.permute.xlu0 %2944
    %2946 = vrot.lane.b32.xlu0 %v695, 121
    %v2947 = vpop.permute.xlu0 %2946
    %2948 = vrot.lane.b32.xlu0 %v700, 121
    %v2949 = vpop.permute.xlu0 %2948
    %2950 = vrot.lane.b32.xlu0 %v705, 121
    %v2951 = vpop.permute.xlu0 %2950
    %2952 = vrot.lane.b32.xlu0 %v710, 121
    %v2953 = vpop.permute.xlu0 %2952
    %2954 = vrot.lane.b32.xlu0 %v715, 121
    %v2955 = vpop.permute.xlu0 %2954
    %2956 = vrot.lane.b32.xlu0 %v720, 121
    %v2957 = vpop.permute.xlu0 %2956
    %2958 = vrot.lane.b32.xlu0 %v725, 121
    %v2959 = vpop.permute.xlu0 %2958
    %2960 = vrot.lane.b32.xlu0 %v730, 121
    %v2961 = vpop.permute.xlu0 %2960
    %2962 = vrot.lane.b32.xlu0 %v735, 121
    %v2963 = vpop.permute.xlu0 %2962
    %2964 = vrot.lane.b32.xlu0 %v740, 121
    %v2965 = vpop.permute.xlu0 %2964
    %2966 = vrot.lane.b32.xlu0 %v745, 121
    %v2967 = vpop.permute.xlu0 %2966
    %2968 = vrot.lane.b32.xlu0 %v750, 121
    %v2969 = vpop.permute.xlu0 %2968
    %2970 = vrot.lane.b32.xlu0 %v755, 121
    %v2971 = vpop.permute.xlu0 %2970
    %2972 = vrot.lane.b32.xlu0 %v760, 121
    %v2973 = vpop.permute.xlu0 %2972
    %2974 = vrot.lane.b32.xlu0 %v765, 121
    %v2975 = vpop.permute.xlu0 %2974
    %2976 = vrot.lane.b32.xlu0 %v770, 121
    %v2977 = vpop.permute.xlu0 %2976
    %2978 = vrot.lane.b32.xlu0 %v775, 121
    %v2979 = vpop.permute.xlu0 %2978
    %2980 = vrot.lane.b32.xlu0 %v780, 121
    %v2981 = vpop.permute.xlu0 %2980
    %2982 = vrot.lane.b32.xlu0 %v785, 121
    %v2983 = vpop.permute.xlu0 %2982
    %2984 = vrot.lane.b32.xlu0 %v790, 121
    %v2985 = vpop.permute.xlu0 %2984
    %2986 = vrot.lane.b32.xlu0 %v795, 121
    %v2987 = vpop.permute.xlu0 %2986
    %2988 = vrot.lane.b32.xlu0 %v800, 121
    %v2989 = vpop.permute.xlu0 %2988
    %2990 = vrot.lane.b32.xlu0 %v805, 121
    %v2991 = vpop.permute.xlu0 %2990
    %2992 = vrot.lane.b32.xlu0 %v810, 121
    %v2993 = vpop.permute.xlu0 %2992
    %2994 = vrot.lane.b32.xlu0 %v815, 121
    %v2995 = vpop.permute.xlu0 %2994
    %2996 = vrot.lane.b32.xlu0 %v820, 121
    %v2997 = vpop.permute.xlu0 %2996
    %s3030 = scalar_lea.vmem %s6, 1792
    %3031 = vst.msk [vmem:[%s3030] sm:$0xff] %vm912, %v2935
    %3032 = vst.msk [vmem:[%s3030 + $0x8] sm:$0xff] %vm912, %v2937
    %3033 = vst.msk [vmem:[%s3030 + $0x10] sm:$0xff] %vm912, %v2939
    %3034 = vst.msk [vmem:[%s3030 + $0x18] sm:$0xff] %vm912, %v2941
    %3035 = vst.msk [vmem:[%s3030 + $0x20] sm:$0xff] %vm912, %v2943
    %3036 = vst.msk [vmem:[%s3030 + $0x28] sm:$0xff] %vm912, %v2945
    %3037 = vst.msk [vmem:[%s3030 + $0x30] sm:$0xff] %vm912, %v2947
    %3038 = vst.msk [vmem:[%s3030 + $0x38] sm:$0xff] %vm912, %v2949
    %3039 = vst.msk [vmem:[%s3030 + $0x40] sm:$0xff] %vm912, %v2951
    %3040 = vst.msk [vmem:[%s3030 + $0x48] sm:$0xff] %vm912, %v2953
    %3041 = vst.msk [vmem:[%s3030 + $0x50] sm:$0xff] %vm912, %v2955
    %3042 = vst.msk [vmem:[%s3030 + $0x58] sm:$0xff] %vm912, %v2957
    %3043 = vst.msk [vmem:[%s3030 + $0x60] sm:$0xff] %vm912, %v2959
    %3044 = vst.msk [vmem:[%s3030 + $0x68] sm:$0xff] %vm912, %v2961
    %3045 = vst.msk [vmem:[%s3030 + $0x70] sm:$0xff] %vm912, %v2963
    %3046 = vst.msk [vmem:[%s3030 + $0x78] sm:$0xff] %vm912, %v2965
    %3047 = vst.msk [vmem:[%s3030 + $0x80] sm:$0xff] %vm912, %v2967
    %3048 = vst.msk [vmem:[%s3030 + $0x88] sm:$0xff] %vm912, %v2969
    %3049 = vst.msk [vmem:[%s3030 + $0x90] sm:$0xff] %vm912, %v2971
    %3050 = vst.msk [vmem:[%s3030 + $0x98] sm:$0xff] %vm912, %v2973
    %3051 = vst.msk [vmem:[%s3030 + $0xa0] sm:$0xff] %vm912, %v2975
    %3052 = vst.msk [vmem:[%s3030 + $0xa8] sm:$0xff] %vm912, %v2977
    %3053 = vst.msk [vmem:[%s3030 + $0xb0] sm:$0xff] %vm912, %v2979
    %3054 = vst.msk [vmem:[%s3030 + $0xb8] sm:$0xff] %vm912, %v2981
    %3055 = vst.msk [vmem:[%s3030 + $0xc0] sm:$0xff] %vm912, %v2983
    %3056 = vst.msk [vmem:[%s3030 + $0xc8] sm:$0xff] %vm912, %v2985
    %3057 = vst.msk [vmem:[%s3030 + $0xd0] sm:$0xff] %vm912, %v2987
    %3058 = vst.msk [vmem:[%s3030 + $0xd8] sm:$0xff] %vm912, %v2989
    %3059 = vst.msk [vmem:[%s3030 + $0xe0] sm:$0xff] %vm912, %v2991
    %3060 = vst.msk [vmem:[%s3030 + $0xe8] sm:$0xff] %vm912, %v2993
    %3061 = vst.msk [vmem:[%s3030 + $0xf0] sm:$0xff] %vm912, %v2995
    %3062 = vst.msk [vmem:[%s3030 + $0xf8] sm:$0xff] %vm912, %v2997
    // Predicated region
    $region18: #{tpu_custom_call.1} parent=1 // pred_check
      _
    $region19: #{tpu_custom_call.1} parent=1 // pred_check_branch
      %3064 = sbr.rel (0) target = $region21
    $region20: #{tpu_custom_call.1} parent=1 // pred_region
      _
    $region21: #{tpu_custom_call.1} parent=1 // pred_fallthru
      _
    // Predicated region
    $region22: #{tpu_custom_call.1} parent=1 // pred_check
      _
    $region23: #{tpu_custom_call.1} parent=1 // pred_check_branch
      %3066 = sbr.rel (0) target = $region25
    $region24: #{tpu_custom_call.1} parent=1 // pred_region
      %s3068 = ssub.s32 256, 256
      %3069 = vsyncadd [#allocation3], %s3068
      %s3070 = sshll.u32 [#allocation2], 4
      %s3071 = int_to_ptr.vmem [resolvable:$true] %s3070
      %3076 = dma.vmem_to_hbm [thread:$0]  %s3071, 256, %s5, [#allocation3], 32, 32, 2
    $region25: #{tpu_custom_call.1} parent=1 // pred_fallthru
      _
    // Predicated region
    $region26: #{tpu_custom_call.1} parent=1 // pred_check
      _
    $region27: #{tpu_custom_call.1} parent=1 // pred_check_branch
      %3078 = sbr.rel (0) target = $region29
    $region28: #{tpu_custom_call.1} parent=1 // pred_region
      _
    $region29: #{tpu_custom_call.1} parent=1 // pred_fallthru
      _
    // Predicated region
    $region30: #{tpu_custom_call.1} parent=1 // pred_check
      _
    $region31: #{tpu_custom_call.1} parent=1 // pred_check_branch
      %3080 = sbr.rel (0) target = $region33
    $region32: #{tpu_custom_call.1} parent=1 // pred_region
      _
    $region33: #{tpu_custom_call.1} parent=1 // pred_fallthru
      _
    // Predicated region
    $region34: #{tpu_custom_call.1} parent=1 // pred_check
      _
    $region35: #{tpu_custom_call.1} parent=1 // pred_check_branch
      %3082 = sbr.rel (0) target = $region37
    $region36: #{tpu_custom_call.1} parent=1 // pred_region
      %3083 = dma.done [#allocation3], 256
    $region37: #{tpu_custom_call.1} parent=1 // pred_fallthru
      _
    // Predicated region
    $region38: #{tpu_custom_call.1} parent=1 // pred_check
      _
    $region39: #{tpu_custom_call.1} parent=1 // pred_check_branch
      %3085 = sbr.rel (0) target = $region41
    $region40: #{tpu_custom_call.1} parent=1 // pred_region
      _
    $region41: #{tpu_custom_call.1} parent=1 // pred_fallthru
      _
    %3086 = vsyncpa [#allocation3], 1

</llo_original>
